<compile_context>
chip_gen: v6e
topology: v6e:2x2x1
jax: 0.10.0
libtpu: 0.0.40
codegen_flags: <defaults>
</compile_context>

<pallas_src>
import functools

import jax
import jax.numpy as jnp
from jax.experimental import pallas as pl
from jax.experimental.pallas import tpu as pltpu

_LANE = 128
_MiB = 1024 * 1024


def _min_sublane(itemsize: int) -> int:
    # Minimum second-to-last-dim tile: 8 for 4-byte, 16 for 2-byte, 32 for 1-byte.
    return max(8, 32 // max(1, itemsize))


def _chip_defaults():
    """(block_bytes, min_blocks) tuned per TPU generation."""
    try:
        kind = jax.devices()[0].device_kind.lower()
    except Exception:
        kind = ""
    if "7" in kind:
        # v7x: 3.2 TB/s HBM, 2 TCs/chip -> big blocks, >=8 blocks for core split.
        return 8 * _MiB, 8
    if "v6" in kind or "6e" in kind:
        # v6e: 32 MiB scoped-VMEM default; 4 MiB blocks pipeline to ~16 MiB.
        return 4 * _MiB, 4
    # v5e and older / unknown: 16 MiB scoped default; 2 MiB blocks -> 8 MiB.
    return 2 * _MiB, 4


def _lambda_kernel(x_ref, o_ref, *, func):
    # Elementwise application of the captured `func` on one VMEM tile.
    o_ref[...] = func(x_ref[...]).astype(o_ref.dtype)


def lambda_forward(func, x, *, elementwise=True, block_bytes=None,
                   min_pallas_bytes=2 * _MiB):
    """Apply `func` to `x`; use a Pallas streaming kernel for large elementwise funcs."""
    out_struct = jax.eval_shape(func, x)

    # Non-elementwise / shape-changing funcs (view, flatten, softmax, ...):
    # Lambda is a generic wrapper — run them as plain (fused) XLA.
    if (not elementwise) or out_struct.shape != x.shape:
        return func(x)
    out_dtype = out_struct.dtype

    n = x.size
    in_bytes = n * x.dtype.itemsize
    # Small inputs: launch/reshape glue dominates and the pallas_call breaks
    # producer/consumer fusion; fused XLA is strictly better.
    if n == 0 or in_bytes < min_pallas_bytes:
        return func(x)
    # Non-lane-multiple sizes: a zero-copy (rows, 128) view is impossible and
    # pad + slice would add two full HBM passes (2-3x), so fall back.
    if n % _LANE != 0:
        return func(x)

    default_bb, min_blocks = _chip_defaults()
    if block_bytes is None:
        block_bytes = default_bb

    orig_shape = x.shape
    in_item = x.dtype.itemsize
    out_item = jnp.dtype(out_dtype).itemsize
    # Stricter sublane tile requirement comes from the narrower dtype.
    sub = _min_sublane(min(in_item, out_item))

    rows = n // _LANE
    x2d = x.reshape(rows, _LANE)  # zero-copy bitcast for contiguous layouts

    # ~block_bytes per buffer (of the wider dtype), multiple of `sub`...
    block_rows = max(sub, (block_bytes // (_LANE * max(in_item, out_item))) // sub * sub)
    # ...but split into >= min_blocks grid steps so both v7x TensorCores get
    # work and the DMA pipeline has steps to overlap on mid-size tensors.
    target = (rows + min_blocks - 1) // min_blocks
    cap_rows = max(sub, (target + sub - 1) // sub * sub)
    block_rows = min(block_rows, cap_rows)
    if block_rows >= rows:
        block_rows = rows  # single full-extent block (always a legal shape)

    grid = (pl.cdiv(rows, block_rows),)

    # VMEM budget: in + out, double-buffered, plus headroom.  Needed for the
    # 8 MiB blocks on v7x (32 MiB scoped default of 64 MiB physical per TC);
    # harmless on v5e/v6e (128 MiB physical).
    pipelined = 2 * block_rows * _LANE * (in_item + out_item)
    vmem_limit = int(min(56 * _MiB, max(32 * _MiB, pipelined + 8 * _MiB)))

    # Advisory cost hint so XLA schedules neighboring HLO around the call.
    try:
        cost = pl.estimate_cost(func, x2d)
    except Exception:
        cost = None

    out2d = pl.pallas_call(
        functools.partial(_lambda_kernel, func=func),
        out_shape=jax.ShapeDtypeStruct((rows, _LANE), out_dtype),
        grid_spec=pltpu.PrefetchScalarGridSpec(
            num_scalar_prefetch=0,
            grid=grid,
            in_specs=[pl.BlockSpec((block_rows, _LANE), lambda i: (i, 0))],
            out_specs=pl.BlockSpec((block_rows, _LANE), lambda i: (i, 0)),
        ),
        compiler_params=pltpu.CompilerParams(
            # Shards row blocks across TensorCores on v7x; no-op on v5e/v6e.
            dimension_semantics=("parallel",),
            vmem_limit_bytes=vmem_limit,
        ),
        cost_estimate=cost,
    )(x2d)

    return out2d.reshape(orig_shape)


class LambdaPallas:
    """JAX/Pallas equivalent of the PyTorch `Lambda` nn.Module."""

    def __init__(self, func, *, elementwise=True):
        self.func = func
        self.elementwise = elementwise

    def __call__(self, x):
        return lambda_forward(self.func, x, elementwise=self.elementwise)


if __name__ == "__main__":
    key = jax.random.PRNGKey(0)
    k1, k2, k3, k4 = jax.random.split(key, 4)

    # Concrete instantiation of Lambda: an elementwise function (SiLU-like).
    silu = lambda t: t * jax.nn.sigmoid(t)
    mod = LambdaPallas(silu)

    # 1) Small NCHW feature map per the module spec (2,4,16,16): small-input
    #    fast path (fused XLA), no Pallas launch.
    x_small = jax.random.normal(k1, (2, 4, 16, 16), dtype=jnp.float32)
    out_small = jax.block_until_ready(mod(x_small))
    assert out_small.shape == x_small.shape and out_small.dtype == x_small.dtype
    assert jnp.allclose(out_small, silu(x_small), atol=1e-5, rtol=1e-5)

    # 2) Large, lane-aligned input (8 MiB): Pallas streaming path with a
    #    multi-block grid (sharded across cores on v7x).
    x_big = jax.random.normal(k2, (8, 64, 64, 64), dtype=jnp.float32)
    out_big = jax.block_until_ready(mod(x_big))
    assert out_big.shape == x_big.shape and out_big.dtype == x_big.dtype
    assert jnp.allclose(out_big, silu(x_big), atol=1e-5, rtol=1e-5)

    # 3) Lane-aligned but rows not a multiple of 8: ragged LAST GRID BLOCK
    #    handled in-kernel — no pad, no tail slice, no extra HBM passes.
    x_rag = jax.random.normal(k3, (8200, 128), dtype=jnp.float32)
    out_rag = jax.block_until_ready(mod(x_rag))
    assert out_rag.shape == x_rag.shape and out_rag.dtype == x_rag.dtype
    assert jnp.allclose(out_rag, silu(x_rag), atol=1e-5, rtol=1e-5)

    # 4) Non-128-multiple size: plain XLA fallback (cheaper than pad+slice).
    x_odd = jax.random.normal(k4, (1_000_003,), dtype=jnp.float32)
    out_odd = jax.block_until_ready(mod(x_odd))
    assert out_odd.shape == x_odd.shape
    assert jnp.allclose(out_odd, silu(x_odd), atol=1e-5, rtol=1e-5)

    # 5) dtype-changing elementwise func (bf16 -> f32) through the Pallas path.
    widen = lambda t: t.astype(jnp.float32) * 2.0 + 1.0
    x_bf16 = jax.random.normal(k2, (2048, 1024), dtype=jnp.bfloat16)
    out_w = jax.block_until_ready(LambdaPallas(widen)(x_bf16))
    assert out_w.shape == x_bf16.shape and out_w.dtype == jnp.float32
    assert jnp.allclose(out_w, widen(x_bf16), atol=1e-3, rtol=1e-3)

    # 6) Non-elementwise func (flatten view): explicit fallback, matches
    #    PyTorch Lambda semantics exactly.
    flat = LambdaPallas(lambda t: t.reshape(t.shape[0], -1), elementwise=False)
    out_f = jax.block_until_ready(flat(x_small))
    assert out_f.shape == (2, 4 * 16 * 16)

    print("KERNEL_OK")
</pallas_src>

<mosaic_0001>
module attributes {stable_mosaic.version = 11 : i64} {
  func.func @_lambda_kernel(%arg0: i32, %arg1: memref<4096x128xf32, #tpu.memory_space<vmem>>, %arg2: memref<4096x128xf32, #tpu.memory_space<vmem>>) attributes {dimension_semantics = [#tpu.dimension_semantics<parallel>], iteration_bounds = array<i64: 4>, scalar_prefetch = 0 : i64, scratch_operands = 0 : i64, tpu.core_type = #tpu.core_type<tc>, window_params = [{transform_indices = @transform_0, window_bounds = array<i64: 4096, 128>}, {transform_indices = @transform_1, window_bounds = array<i64: 4096, 128>}]} {
    %c0 = arith.constant 0 : index
    %c0_0 = arith.constant 0 : index
    %0 = vector.load %arg1[%c0, %c0_0] : memref<4096x128xf32, #tpu.memory_space<vmem>>, vector<4096x128xf32>
    %1 = arith.negf %0 : vector<4096x128xf32>
    %2 = math.exp %1 : vector<4096x128xf32>
    %cst = arith.constant 1.000000e+00 : f32
    %3 = vector.broadcast %cst : f32 to vector<4096x128xf32>
    %4 = arith.addf %3, %2 : vector<4096x128xf32>
    %5 = arith.divf %3, %4 : vector<4096x128xf32>
    %6 = arith.mulf %0, %5 : vector<4096x128xf32>
    %c0_1 = arith.constant 0 : index
    %c0_2 = arith.constant 0 : index
    %7 = vector.load %arg2[%c0_1, %c0_2] : memref<4096x128xf32, #tpu.memory_space<vmem>>, vector<4096x128xf32>
    tpu.vector_store %arg2[%c0_1, %c0_2], %6 {strides = array<i32>} : memref<4096x128xf32, #tpu.memory_space<vmem>>, vector<4096x128xf32>,
    return
  }
  func.func @transform_0(%arg0: i32) -> (i32, i32) {
    %c0_i32 = arith.constant 0 : i32
    %c0_i32_0 = arith.constant 0 : i32
    return %arg0, %c0_i32 : i32, i32
  }
  func.func @transform_1(%arg0: i32) -> (i32, i32) {
    %c0_i32 = arith.constant 0 : i32
    %c0_i32_0 = arith.constant 0 : i32
    return %arg0, %c0_i32 : i32, i32
  }
}

</mosaic_0001>

<llo_original>
// kernel: tpu_custom_call.1
$region0: #{tpu_custom_call.1}
  #allocation0 [shape = 'u32[]', space=smem, size = 0x4, offset = 0x4, fixed_abs, tag = 'smem constant byte address 0x4 - core index']
  #allocation1 [shape = 'u32[144,128]{1,0:T(1,128)}', space=vmem, size = 0x12000, scoped, tag = 'internal scratch']
  %s0 = inlined_call_operand.hbm [shape: f32[16384,128], index: 0, kind: input, shape index: {}]
  %s1 = inlined_call_operand.hbm [shape: f32[16384,128], index: 1, kind: output, shape index: {}]
  %s2 = sld [smem:[#allocation0]]
  $region41: #{tpu_custom_call.1} parent=0
    _
  %s4 = ssub.s32 1, %s2
  %s5 = scalar_select 0, %s4, %s2
  $region1: #{tpu_custom_call.1} parent=0
    #allocation2 [shape = 'u8[4194304]{0}', space=vmem, size = 0x400000, scoped, tag = 'input window, operand 0']
    #allocation3 [shape = 's32[2]{0}', space=sflag, size = 0x8, scoped, tag = 'scoped memory for tpu_custom_call.1']
    #allocation4 [shape = 's32[2]{0}', space=sflag, size = 0x8, scoped, tag = 'scoped memory for tpu_custom_call.1']
    #allocation5 [shape = 'u8[4194304]{0}', space=vmem, size = 0x400000, scoped, tag = 'output window, operand 0']
    %6 = vsyncpa [#allocation3], 0
    %s7 = scalar_lea.sflag [#allocation3], 1
    %8 = vsyncpa %s7, 0
    %9 = vsyncpa [#allocation4], 0
    %s10 = scalar_lea.sflag [#allocation4], 1
    %11 = vsyncpa %s10, 0
    loop: start=0, step=1, limit=6
    $region2: #{tpu_custom_call.1} parent=1 // loop_pre_header
      _
    $region3: #{tpu_custom_call.1} parent=1 // loop_header
      %s13 = sphi 0, %s17
      %p14 = scmp.ge.s32.totalorder %s13, 6
      %s23 = sphi 0, %s25
      %s26 = sphi 0, %s23
      %s27 = sphi 0, %s26
      %s43 = sphi 0, %s27
      %s49 = sphi 0, %s51
      %s52 = sphi 0, %s49
      %s53 = sphi 0, %s52
      %s69 = sphi 0, %s53
    $region4: #{tpu_custom_call.1} parent=1 // loop_header_branch
      %16 = sbr.rel (%p14) target = $region8
    $region5: #{tpu_custom_call.1} parent=1 // loop_body
      %s18 = ssub.s32 %s13, 1
      %s19 = ssub.s32 %s13, 2
      %s20 = sadd.s32 %s13, 1
      %s21 = ssub.s32 %s13, %s20
      %p22 = scmp.eq.s32.totalorder %s21, 0
      %s24 = sadd.s32 %s23, 1
      %s25 = scalar_select %p22, %s23, %s24
      %p28 = pneg %p22
      %p29 = scmp.eq.s32.totalorder %s13, 3
      %p30 = por %p28, %p29
      %p31 = scmp.ne.s32.totalorder %s23, %s26
      %p32 = scmp.eq.s32.totalorder %s13, 0
      %p33 = por %p31, %p32
      %p34 = scmp.ne.s32.totalorder %s23, %s26
      %p35 = scmp.eq.s32.totalorder %s18, 3
      %p36 = por %p34, %p35
      %p37 = scmp.ne.s32.totalorder %s26, %s27
      %p38 = scmp.eq.s32.totalorder %s18, 0
      %p39 = por %p37, %p38
      %p40 = scmp.ne.s32.totalorder %s26, %s27
      %p41 = scmp.eq.s32.totalorder %s19, 3
      %p42 = por %p40, %p41
      %p44 = scmp.ne.s32.totalorder %s27, %s43
      %p45 = scmp.eq.s32.totalorder %s19, 0
      %p46 = por %p44, %p45
      %s47 = ssub.s32 %s13, %s20
      %p48 = scmp.eq.s32.totalorder %s47, 0
      %s50 = sadd.s32 %s49, 1
      %s51 = scalar_select %p48, %s49, %s50
      %p54 = pneg %p48
      %p55 = scmp.eq.s32.totalorder %s13, 3
      %p56 = por %p54, %p55
      %p57 = scmp.ne.s32.totalorder %s49, %s52
      %p58 = scmp.eq.s32.totalorder %s13, 0
      %p59 = por %p57, %p58
      %p60 = scmp.ne.s32.totalorder %s49, %s52
      %p61 = scmp.eq.s32.totalorder %s18, 3
      %p62 = por %p60, %p61
      %p63 = scmp.ne.s32.totalorder %s52, %s53
      %p64 = scmp.eq.s32.totalorder %s18, 0
      %p65 = por %p63, %p64
      %p66 = scmp.ne.s32.totalorder %s52, %s53
      %p67 = scmp.eq.s32.totalorder %s19, 3
      %p68 = por %p66, %p67
      %p70 = scmp.ne.s32.totalorder %s53, %s69
      %p71 = scmp.eq.s32.totalorder %s19, 0
      %p72 = por %p70, %p71
      %p73 = scmp.le.s32.totalorder 1, %s13
      %p74 = scmp.lt.s32.totalorder %s13, 5
      %p75 = pnand %p73, %p74
      %p76 = pneg %p75
      // Predicated region
      $region9: #{tpu_custom_call.1} parent=5 // pred_check
        _
      $region10: #{tpu_custom_call.1} parent=5 // pred_check_branch
        %78 = sbr.rel (%p75) target = $region12
      $region11: #{tpu_custom_call.1} parent=5 // pred_region
        %s79 = ssub.s32 %s13, 1
      $region12: #{tpu_custom_call.1} parent=5 // pred_fallthru
        _
      %p80 = scmp.lt.s32.totalorder %s13, 4
      // Predicated region
      $region13: #{tpu_custom_call.1} parent=5 // pred_check
        %p81 = pneg %p80
      $region14: #{tpu_custom_call.1} parent=5 // pred_check_branch
        %83 = sbr.rel (%p81) target = $region16
      $region15: #{tpu_custom_call.1} parent=5 // pred_region
        // Predicated region
        $region17: #{tpu_custom_call.1} parent=15 // pred_check
          %p84 = pneg %p33
        $region18: #{tpu_custom_call.1} parent=15 // pred_check_branch
          %86 = sbr.rel (%p84) target = $region20
        $region19: #{tpu_custom_call.1} parent=15 // pred_region
          %s87 = sand.u32 %s23, 1
          %s88 = scalar_lea.sflag [#allocation3], %s87
          %s89 = sand.u32 %s23, 1
          %s90 = smul.addr %s89, 4096
          %s91 = scalar_lea.vmem [#allocation2], %s90
          %s92 = smul.u32 512, %s13
          %s94 = ssub.s32 65536, 65536
          %95 = vsyncadd %s88, %s94
          %s96 = smul.addr %s92, 128
          %s97 = scalar_lea.hbm %s0, %s96
          %s98 = sshll.u32 %s91, 4
          %s99 = int_to_ptr.vmem [resolvable:$true] %s98
          %104 = dma.hbm_to_vmem [thread:$0]  %s97, 65536, %s99, %s88, 128, 128, 8
        $region20: #{tpu_custom_call.1} parent=15 // pred_fallthru
          _
      $region16: #{tpu_custom_call.1} parent=5 // pred_fallthru
        _
      %p105 = scmp.le.s32.totalorder 1, %s13
      %p106 = scmp.lt.s32.totalorder %s13, 5
      %p107 = pnand %p105, %p106
      %p108 = pneg %p107
      // Predicated region
      $region21: #{tpu_custom_call.1} parent=5 // pred_check
        _
      $region22: #{tpu_custom_call.1} parent=5 // pred_check_branch
        %110 = sbr.rel (%p107) target = $region24
      $region23: #{tpu_custom_call.1} parent=5 // pred_region
        %s111 = ssub.s32 %s13, 1
        %s112 = sand.u32 %s26, 1
        %s113 = scalar_lea.sflag [#allocation3], %s112
        %s114 = sand.u32 %s26, 1
        %s115 = smul.addr %s114, 4096
        %s116 = scalar_lea.vmem [#allocation2], %s115
        // Predicated region
        $region25: #{tpu_custom_call.1} parent=23 // pred_check
          %p117 = pneg %p39
        $region26: #{tpu_custom_call.1} parent=23 // pred_check_branch
          %119 = sbr.rel (%p117) target = $region28
        $region27: #{tpu_custom_call.1} parent=23 // pred_region
          %120 = dma.done %s113, 65536
        $region28: #{tpu_custom_call.1} parent=23 // pred_fallthru
          _
        %s121 = sand.u32 %s26, 1
        %s122 = scalar_lea.sflag [#allocation3], %s121
        %s123 = sand.u32 %s26, 1
        %s124 = smul.addr %s123, 4096
        %s125 = scalar_lea.vmem [#allocation2], %s124
        %p126 = pneg %p39
        %p127 = pneg %p36
        %p128 = pneg %p65
        %p129 = pneg %p62
        %s130 = sand.u32 %s52, 1
        %s131 = scalar_lea.sflag [#allocation4], %s130
        %s132 = sand.u32 %s52, 1
        %s133 = smul.addr %s132, 4096
        %s134 = scalar_lea.vmem [#allocation5], %s133
        %s135 = smul.u32 512, %s18
        %s136 = smul.u32 512, %s18
        %v137 = vld [vmem:[%s116] sm:$0xff]
        %v138 = vld [vmem:[%s116 + $0x8] sm:$0xff]
        %v139 = vld [vmem:[%s116 + $0x10] sm:$0xff]
        %v140 = vld [vmem:[%s116 + $0x18] sm:$0xff]
        %v141 = vld [vmem:[%s116 + $0x20] sm:$0xff]
        %v142 = vld [vmem:[%s116 + $0x28] sm:$0xff]
        %v143 = vld [vmem:[%s116 + $0x30] sm:$0xff]
        %v144 = vld [vmem:[%s116 + $0x38] sm:$0xff]
        %v145 = vld [vmem:[%s116 + $0x40] sm:$0xff]
        %v146 = vld [vmem:[%s116 + $0x48] sm:$0xff]
        %v147 = vld [vmem:[%s116 + $0x50] sm:$0xff]
        %v148 = vld [vmem:[%s116 + $0x58] sm:$0xff]
        %v149 = vld [vmem:[%s116 + $0x60] sm:$0xff]
        %v150 = vld [vmem:[%s116 + $0x68] sm:$0xff]
        %v151 = vld [vmem:[%s116 + $0x70] sm:$0xff]
        %v152 = vld [vmem:[%s116 + $0x78] sm:$0xff]
        %v153 = vld [vmem:[%s116 + $0x80] sm:$0xff]
        %v154 = vld [vmem:[%s116 + $0x88] sm:$0xff]
        %v155 = vld [vmem:[%s116 + $0x90] sm:$0xff]
        %v156 = vld [vmem:[%s116 + $0x98] sm:$0xff]
        %v157 = vld [vmem:[%s116 + $0xa0] sm:$0xff]
        %v158 = vld [vmem:[%s116 + $0xa8] sm:$0xff]
        %v159 = vld [vmem:[%s116 + $0xb0] sm:$0xff]
        %v160 = vld [vmem:[%s116 + $0xb8] sm:$0xff]
        %v161 = vld [vmem:[%s116 + $0xc0] sm:$0xff]
        %v162 = vld [vmem:[%s116 + $0xc8] sm:$0xff]
        %v163 = vld [vmem:[%s116 + $0xd0] sm:$0xff]
        %v164 = vld [vmem:[%s116 + $0xd8] sm:$0xff]
        %v165 = vld [vmem:[%s116 + $0xe0] sm:$0xff]
        %v166 = vld [vmem:[%s116 + $0xe8] sm:$0xff]
        %v167 = vld [vmem:[%s116 + $0xf0] sm:$0xff]
        %v168 = vld [vmem:[%s116 + $0xf8] sm:$0xff]
        %v169 = vld [vmem:[%s116 + $0x100] sm:$0xff]
        %v170 = vld [vmem:[%s116 + $0x108] sm:$0xff]
        %v171 = vld [vmem:[%s116 + $0x110] sm:$0xff]
        %v172 = vld [vmem:[%s116 + $0x118] sm:$0xff]
        %v173 = vld [vmem:[%s116 + $0x120] sm:$0xff]
        %v174 = vld [vmem:[%s116 + $0x128] sm:$0xff]
        %v175 = vld [vmem:[%s116 + $0x130] sm:$0xff]
        %v176 = vld [vmem:[%s116 + $0x138] sm:$0xff]
        %v177 = vld [vmem:[%s116 + $0x140] sm:$0xff]
        %v178 = vld [vmem:[%s116 + $0x148] sm:$0xff]
        %v179 = vld [vmem:[%s116 + $0x150] sm:$0xff]
        %v180 = vld [vmem:[%s116 + $0x158] sm:$0xff]
        %v181 = vld [vmem:[%s116 + $0x160] sm:$0xff]
        %v182 = vld [vmem:[%s116 + $0x168] sm:$0xff]
        %v183 = vld [vmem:[%s116 + $0x170] sm:$0xff]
        %v184 = vld [vmem:[%s116 + $0x178] sm:$0xff]
        %v185 = vld [vmem:[%s116 + $0x180] sm:$0xff]
        %v186 = vld [vmem:[%s116 + $0x188] sm:$0xff]
        %v187 = vld [vmem:[%s116 + $0x190] sm:$0xff]
        %v188 = vld [vmem:[%s116 + $0x198] sm:$0xff]
        %v189 = vld [vmem:[%s116 + $0x1a0] sm:$0xff]
        %v190 = vld [vmem:[%s116 + $0x1a8] sm:$0xff]
        %v191 = vld [vmem:[%s116 + $0x1b0] sm:$0xff]
        %v192 = vld [vmem:[%s116 + $0x1b8] sm:$0xff]
        %v193 = vld [vmem:[%s116 + $0x1c0] sm:$0xff]
        %v194 = vld [vmem:[%s116 + $0x1c8] sm:$0xff]
        %v195 = vld [vmem:[%s116 + $0x1d0] sm:$0xff]
        %v196 = vld [vmem:[%s116 + $0x1d8] sm:$0xff]
        %v197 = vld [vmem:[%s116 + $0x1e0] sm:$0xff]
        %v198 = vld [vmem:[%s116 + $0x1e8] sm:$0xff]
        %v199 = vld [vmem:[%s116 + $0x1f0] sm:$0xff]
        %v200 = vld [vmem:[%s116 + $0x1f8] sm:$0xff]
        %v201 = vld [vmem:[%s116 + $0x200] sm:$0xff]
        %v202 = vld [vmem:[%s116 + $0x208] sm:$0xff]
        %v203 = vld [vmem:[%s116 + $0x210] sm:$0xff]
        %v204 = vld [vmem:[%s116 + $0x218] sm:$0xff]
        %v205 = vld [vmem:[%s116 + $0x220] sm:$0xff]
        %v206 = vld [vmem:[%s116 + $0x228] sm:$0xff]
        %v207 = vld [vmem:[%s116 + $0x230] sm:$0xff]
        %v208 = vld [vmem:[%s116 + $0x238] sm:$0xff]
        %v209 = vld [vmem:[%s116 + $0x240] sm:$0xff]
        %v210 = vld [vmem:[%s116 + $0x248] sm:$0xff]
        %v211 = vld [vmem:[%s116 + $0x250] sm:$0xff]
        %v212 = vld [vmem:[%s116 + $0x258] sm:$0xff]
        %v213 = vld [vmem:[%s116 + $0x260] sm:$0xff]
        %v214 = vld [vmem:[%s116 + $0x268] sm:$0xff]
        %v215 = vld [vmem:[%s116 + $0x270] sm:$0xff]
        %v216 = vld [vmem:[%s116 + $0x278] sm:$0xff]
        %v217 = vld [vmem:[%s116 + $0x280] sm:$0xff]
        %v218 = vld [vmem:[%s116 + $0x288] sm:$0xff]
        %v219 = vld [vmem:[%s116 + $0x290] sm:$0xff]
        %v220 = vld [vmem:[%s116 + $0x298] sm:$0xff]
        %v221 = vld [vmem:[%s116 + $0x2a0] sm:$0xff]
        %v222 = vld [vmem:[%s116 + $0x2a8] sm:$0xff]
        %v223 = vld [vmem:[%s116 + $0x2b0] sm:$0xff]
        %v224 = vld [vmem:[%s116 + $0x2b8] sm:$0xff]
        %v225 = vld [vmem:[%s116 + $0x2c0] sm:$0xff]
        %v226 = vld [vmem:[%s116 + $0x2c8] sm:$0xff]
        %v227 = vld [vmem:[%s116 + $0x2d0] sm:$0xff]
        %v228 = vld [vmem:[%s116 + $0x2d8] sm:$0xff]
        %v229 = vld [vmem:[%s116 + $0x2e0] sm:$0xff]
        %v230 = vld [vmem:[%s116 + $0x2e8] sm:$0xff]
        %v231 = vld [vmem:[%s116 + $0x2f0] sm:$0xff]
        %v232 = vld [vmem:[%s116 + $0x2f8] sm:$0xff]
        %v233 = vld [vmem:[%s116 + $0x300] sm:$0xff]
        %v234 = vld [vmem:[%s116 + $0x308] sm:$0xff]
        %v235 = vld [vmem:[%s116 + $0x310] sm:$0xff]
        %v236 = vld [vmem:[%s116 + $0x318] sm:$0xff]
        %v237 = vld [vmem:[%s116 + $0x320] sm:$0xff]
        %v238 = vld [vmem:[%s116 + $0x328] sm:$0xff]
        %v239 = vld [vmem:[%s116 + $0x330] sm:$0xff]
        %v240 = vld [vmem:[%s116 + $0x338] sm:$0xff]
        %v241 = vld [vmem:[%s116 + $0x340] sm:$0xff]
        %v242 = vld [vmem:[%s116 + $0x348] sm:$0xff]
        %v243 = vld [vmem:[%s116 + $0x350] sm:$0xff]
        %v244 = vld [vmem:[%s116 + $0x358] sm:$0xff]
        %v245 = vld [vmem:[%s116 + $0x360] sm:$0xff]
        %v246 = vld [vmem:[%s116 + $0x368] sm:$0xff]
        %v247 = vld [vmem:[%s116 + $0x370] sm:$0xff]
        %v248 = vld [vmem:[%s116 + $0x378] sm:$0xff]
        %v249 = vld [vmem:[%s116 + $0x380] sm:$0xff]
        %v250 = vld [vmem:[%s116 + $0x388] sm:$0xff]
        %v251 = vld [vmem:[%s116 + $0x390] sm:$0xff]
        %v252 = vld [vmem:[%s116 + $0x398] sm:$0xff]
        %v253 = vld [vmem:[%s116 + $0x3a0] sm:$0xff]
        %v254 = vld [vmem:[%s116 + $0x3a8] sm:$0xff]
        %v255 = vld [vmem:[%s116 + $0x3b0] sm:$0xff]
        %v256 = vld [vmem:[%s116 + $0x3b8] sm:$0xff]
        %v257 = vld [vmem:[%s116 + $0x3c0] sm:$0xff]
        %v258 = vld [vmem:[%s116 + $0x3c8] sm:$0xff]
        %v259 = vld [vmem:[%s116 + $0x3d0] sm:$0xff]
        %v260 = vld [vmem:[%s116 + $0x3d8] sm:$0xff]
        %v261 = vld [vmem:[%s116 + $0x3e0] sm:$0xff]
        %v262 = vld [vmem:[%s116 + $0x3e8] sm:$0xff]
        %v263 = vld [vmem:[%s116 + $0x3f0] sm:$0xff]
        %v264 = vld [vmem:[%s116 + $0x3f8] sm:$0xff]
        %v265 = vld [vmem:[%s116 + $0x400] sm:$0xff]
        %v266 = vld [vmem:[%s116 + $0x408] sm:$0xff]
        %v267 = vld [vmem:[%s116 + $0x410] sm:$0xff]
        %v268 = vld [vmem:[%s116 + $0x418] sm:$0xff]
        %v269 = vld [vmem:[%s116 + $0x420] sm:$0xff]
        %v270 = vld [vmem:[%s116 + $0x428] sm:$0xff]
        %v271 = vld [vmem:[%s116 + $0x430] sm:$0xff]
        %v272 = vld [vmem:[%s116 + $0x438] sm:$0xff]
        %v273 = vld [vmem:[%s116 + $0x440] sm:$0xff]
        %v274 = vld [vmem:[%s116 + $0x448] sm:$0xff]
        %v275 = vld [vmem:[%s116 + $0x450] sm:$0xff]
        %v276 = vld [vmem:[%s116 + $0x458] sm:$0xff]
        %v277 = vld [vmem:[%s116 + $0x460] sm:$0xff]
        %v278 = vld [vmem:[%s116 + $0x468] sm:$0xff]
        %v279 = vld [vmem:[%s116 + $0x470] sm:$0xff]
        %v280 = vld [vmem:[%s116 + $0x478] sm:$0xff]
        %v281 = vld [vmem:[%s116 + $0x480] sm:$0xff]
        %v282 = vld [vmem:[%s116 + $0x488] sm:$0xff]
        %v283 = vld [vmem:[%s116 + $0x490] sm:$0xff]
        %v284 = vld [vmem:[%s116 + $0x498] sm:$0xff]
        %v285 = vld [vmem:[%s116 + $0x4a0] sm:$0xff]
        %v286 = vld [vmem:[%s116 + $0x4a8] sm:$0xff]
        %v287 = vld [vmem:[%s116 + $0x4b0] sm:$0xff]
        %v288 = vld [vmem:[%s116 + $0x4b8] sm:$0xff]
        %v289 = vld [vmem:[%s116 + $0x4c0] sm:$0xff]
        %v290 = vld [vmem:[%s116 + $0x4c8] sm:$0xff]
        %v291 = vld [vmem:[%s116 + $0x4d0] sm:$0xff]
        %v292 = vld [vmem:[%s116 + $0x4d8] sm:$0xff]
        %v293 = vld [vmem:[%s116 + $0x4e0] sm:$0xff]
        %v294 = vld [vmem:[%s116 + $0x4e8] sm:$0xff]
        %v295 = vld [vmem:[%s116 + $0x4f0] sm:$0xff]
        %v296 = vld [vmem:[%s116 + $0x4f8] sm:$0xff]
        %v297 = vld [vmem:[%s116 + $0x500] sm:$0xff]
        %v298 = vld [vmem:[%s116 + $0x508] sm:$0xff]
        %v299 = vld [vmem:[%s116 + $0x510] sm:$0xff]
        %v300 = vld [vmem:[%s116 + $0x518] sm:$0xff]
        %v301 = vld [vmem:[%s116 + $0x520] sm:$0xff]
        %v302 = vld [vmem:[%s116 + $0x528] sm:$0xff]
        %v303 = vld [vmem:[%s116 + $0x530] sm:$0xff]
        %v304 = vld [vmem:[%s116 + $0x538] sm:$0xff]
        %v305 = vld [vmem:[%s116 + $0x540] sm:$0xff]
        %v306 = vld [vmem:[%s116 + $0x548] sm:$0xff]
        %v307 = vld [vmem:[%s116 + $0x550] sm:$0xff]
        %v308 = vld [vmem:[%s116 + $0x558] sm:$0xff]
        %v309 = vld [vmem:[%s116 + $0x560] sm:$0xff]
        %v310 = vld [vmem:[%s116 + $0x568] sm:$0xff]
        %v311 = vld [vmem:[%s116 + $0x570] sm:$0xff]
        %v312 = vld [vmem:[%s116 + $0x578] sm:$0xff]
        %v313 = vld [vmem:[%s116 + $0x580] sm:$0xff]
        %v314 = vld [vmem:[%s116 + $0x588] sm:$0xff]
        %v315 = vld [vmem:[%s116 + $0x590] sm:$0xff]
        %v316 = vld [vmem:[%s116 + $0x598] sm:$0xff]
        %v317 = vld [vmem:[%s116 + $0x5a0] sm:$0xff]
        %v318 = vld [vmem:[%s116 + $0x5a8] sm:$0xff]
        %v319 = vld [vmem:[%s116 + $0x5b0] sm:$0xff]
        %v320 = vld [vmem:[%s116 + $0x5b8] sm:$0xff]
        %v321 = vld [vmem:[%s116 + $0x5c0] sm:$0xff]
        %v322 = vld [vmem:[%s116 + $0x5c8] sm:$0xff]
        %v323 = vld [vmem:[%s116 + $0x5d0] sm:$0xff]
        %v324 = vld [vmem:[%s116 + $0x5d8] sm:$0xff]
        %v325 = vld [vmem:[%s116 + $0x5e0] sm:$0xff]
        %v326 = vld [vmem:[%s116 + $0x5e8] sm:$0xff]
        %v327 = vld [vmem:[%s116 + $0x5f0] sm:$0xff]
        %v328 = vld [vmem:[%s116 + $0x5f8] sm:$0xff]
        %v329 = vld [vmem:[%s116 + $0x600] sm:$0xff]
        %v330 = vld [vmem:[%s116 + $0x608] sm:$0xff]
        %v331 = vld [vmem:[%s116 + $0x610] sm:$0xff]
        %v332 = vld [vmem:[%s116 + $0x618] sm:$0xff]
        %v333 = vld [vmem:[%s116 + $0x620] sm:$0xff]
        %v334 = vld [vmem:[%s116 + $0x628] sm:$0xff]
        %v335 = vld [vmem:[%s116 + $0x630] sm:$0xff]
        %v336 = vld [vmem:[%s116 + $0x638] sm:$0xff]
        %v337 = vld [vmem:[%s116 + $0x640] sm:$0xff]
        %v338 = vld [vmem:[%s116 + $0x648] sm:$0xff]
        %v339 = vld [vmem:[%s116 + $0x650] sm:$0xff]
        %v340 = vld [vmem:[%s116 + $0x658] sm:$0xff]
        %v341 = vld [vmem:[%s116 + $0x660] sm:$0xff]
        %v342 = vld [vmem:[%s116 + $0x668] sm:$0xff]
        %v343 = vld [vmem:[%s116 + $0x670] sm:$0xff]
        %v344 = vld [vmem:[%s116 + $0x678] sm:$0xff]
        %v345 = vld [vmem:[%s116 + $0x680] sm:$0xff]
        %v346 = vld [vmem:[%s116 + $0x688] sm:$0xff]
        %v347 = vld [vmem:[%s116 + $0x690] sm:$0xff]
        %v348 = vld [vmem:[%s116 + $0x698] sm:$0xff]
        %v349 = vld [vmem:[%s116 + $0x6a0] sm:$0xff]
        %v350 = vld [vmem:[%s116 + $0x6a8] sm:$0xff]
        %v351 = vld [vmem:[%s116 + $0x6b0] sm:$0xff]
        %v352 = vld [vmem:[%s116 + $0x6b8] sm:$0xff]
        %v353 = vld [vmem:[%s116 + $0x6c0] sm:$0xff]
        %v354 = vld [vmem:[%s116 + $0x6c8] sm:$0xff]
        %v355 = vld [vmem:[%s116 + $0x6d0] sm:$0xff]
        %v356 = vld [vmem:[%s116 + $0x6d8] sm:$0xff]
        %v357 = vld [vmem:[%s116 + $0x6e0] sm:$0xff]
        %v358 = vld [vmem:[%s116 + $0x6e8] sm:$0xff]
        %v359 = vld [vmem:[%s116 + $0x6f0] sm:$0xff]
        %v360 = vld [vmem:[%s116 + $0x6f8] sm:$0xff]
        %v361 = vld [vmem:[%s116 + $0x700] sm:$0xff]
        %v362 = vld [vmem:[%s116 + $0x708] sm:$0xff]
        %v363 = vld [vmem:[%s116 + $0x710] sm:$0xff]
        %v364 = vld [vmem:[%s116 + $0x718] sm:$0xff]
        %v365 = vld [vmem:[%s116 + $0x720] sm:$0xff]
        %v366 = vld [vmem:[%s116 + $0x728] sm:$0xff]
        %v367 = vld [vmem:[%s116 + $0x730] sm:$0xff]
        %v368 = vld [vmem:[%s116 + $0x738] sm:$0xff]
        %v369 = vld [vmem:[%s116 + $0x740] sm:$0xff]
        %v370 = vld [vmem:[%s116 + $0x748] sm:$0xff]
        %v371 = vld [vmem:[%s116 + $0x750] sm:$0xff]
        %v372 = vld [vmem:[%s116 + $0x758] sm:$0xff]
        %v373 = vld [vmem:[%s116 + $0x760] sm:$0xff]
        %v374 = vld [vmem:[%s116 + $0x768] sm:$0xff]
        %v375 = vld [vmem:[%s116 + $0x770] sm:$0xff]
        %v376 = vld [vmem:[%s116 + $0x778] sm:$0xff]
        %v377 = vld [vmem:[%s116 + $0x780] sm:$0xff]
        %v378 = vld [vmem:[%s116 + $0x788] sm:$0xff]
        %v379 = vld [vmem:[%s116 + $0x790] sm:$0xff]
        %v380 = vld [vmem:[%s116 + $0x798] sm:$0xff]
        %v381 = vld [vmem:[%s116 + $0x7a0] sm:$0xff]
        %v382 = vld [vmem:[%s116 + $0x7a8] sm:$0xff]
        %v383 = vld [vmem:[%s116 + $0x7b0] sm:$0xff]
        %v384 = vld [vmem:[%s116 + $0x7b8] sm:$0xff]
        %v385 = vld [vmem:[%s116 + $0x7c0] sm:$0xff]
        %v386 = vld [vmem:[%s116 + $0x7c8] sm:$0xff]
        %v387 = vld [vmem:[%s116 + $0x7d0] sm:$0xff]
        %v388 = vld [vmem:[%s116 + $0x7d8] sm:$0xff]
        %v389 = vld [vmem:[%s116 + $0x7e0] sm:$0xff]
        %v390 = vld [vmem:[%s116 + $0x7e8] sm:$0xff]
        %v391 = vld [vmem:[%s116 + $0x7f0] sm:$0xff]
        %v392 = vld [vmem:[%s116 + $0x7f8] sm:$0xff]
        %v393 = vld [vmem:[%s116 + $0x800] sm:$0xff]
        %v394 = vld [vmem:[%s116 + $0x808] sm:$0xff]
        %v395 = vld [vmem:[%s116 + $0x810] sm:$0xff]
        %v396 = vld [vmem:[%s116 + $0x818] sm:$0xff]
        %v397 = vld [vmem:[%s116 + $0x820] sm:$0xff]
        %v398 = vld [vmem:[%s116 + $0x828] sm:$0xff]
        %v399 = vld [vmem:[%s116 + $0x830] sm:$0xff]
        %v400 = vld [vmem:[%s116 + $0x838] sm:$0xff]
        %v401 = vld [vmem:[%s116 + $0x840] sm:$0xff]
        %v402 = vld [vmem:[%s116 + $0x848] sm:$0xff]
        %v403 = vld [vmem:[%s116 + $0x850] sm:$0xff]
        %v404 = vld [vmem:[%s116 + $0x858] sm:$0xff]
        %v405 = vld [vmem:[%s116 + $0x860] sm:$0xff]
        %v406 = vld [vmem:[%s116 + $0x868] sm:$0xff]
        %v407 = vld [vmem:[%s116 + $0x870] sm:$0xff]
        %v408 = vld [vmem:[%s116 + $0x878] sm:$0xff]
        %v409 = vld [vmem:[%s116 + $0x880] sm:$0xff]
        %v410 = vld [vmem:[%s116 + $0x888] sm:$0xff]
        %v411 = vld [vmem:[%s116 + $0x890] sm:$0xff]
        %v412 = vld [vmem:[%s116 + $0x898] sm:$0xff]
        %v413 = vld [vmem:[%s116 + $0x8a0] sm:$0xff]
        %v414 = vld [vmem:[%s116 + $0x8a8] sm:$0xff]
        %v415 = vld [vmem:[%s116 + $0x8b0] sm:$0xff]
        %v416 = vld [vmem:[%s116 + $0x8b8] sm:$0xff]
        %v417 = vld [vmem:[%s116 + $0x8c0] sm:$0xff]
        %v418 = vld [vmem:[%s116 + $0x8c8] sm:$0xff]
        %v419 = vld [vmem:[%s116 + $0x8d0] sm:$0xff]
        %v420 = vld [vmem:[%s116 + $0x8d8] sm:$0xff]
        %v421 = vld [vmem:[%s116 + $0x8e0] sm:$0xff]
        %v422 = vld [vmem:[%s116 + $0x8e8] sm:$0xff]
        %v423 = vld [vmem:[%s116 + $0x8f0] sm:$0xff]
        %v424 = vld [vmem:[%s116 + $0x8f8] sm:$0xff]
        %v425 = vld [vmem:[%s116 + $0x900] sm:$0xff]
        %v426 = vld [vmem:[%s116 + $0x908] sm:$0xff]
        %v427 = vld [vmem:[%s116 + $0x910] sm:$0xff]
        %v428 = vld [vmem:[%s116 + $0x918] sm:$0xff]
        %v429 = vld [vmem:[%s116 + $0x920] sm:$0xff]
        %v430 = vld [vmem:[%s116 + $0x928] sm:$0xff]
        %v431 = vld [vmem:[%s116 + $0x930] sm:$0xff]
        %v432 = vld [vmem:[%s116 + $0x938] sm:$0xff]
        %v433 = vld [vmem:[%s116 + $0x940] sm:$0xff]
        %v434 = vld [vmem:[%s116 + $0x948] sm:$0xff]
        %v435 = vld [vmem:[%s116 + $0x950] sm:$0xff]
        %v436 = vld [vmem:[%s116 + $0x958] sm:$0xff]
        %v437 = vld [vmem:[%s116 + $0x960] sm:$0xff]
        %v438 = vld [vmem:[%s116 + $0x968] sm:$0xff]
        %v439 = vld [vmem:[%s116 + $0x970] sm:$0xff]
        %v440 = vld [vmem:[%s116 + $0x978] sm:$0xff]
        %v441 = vld [vmem:[%s116 + $0x980] sm:$0xff]
        %v442 = vld [vmem:[%s116 + $0x988] sm:$0xff]
        %v443 = vld [vmem:[%s116 + $0x990] sm:$0xff]
        %v444 = vld [vmem:[%s116 + $0x998] sm:$0xff]
        %v445 = vld [vmem:[%s116 + $0x9a0] sm:$0xff]
        %v446 = vld [vmem:[%s116 + $0x9a8] sm:$0xff]
        %v447 = vld [vmem:[%s116 + $0x9b0] sm:$0xff]
        %v448 = vld [vmem:[%s116 + $0x9b8] sm:$0xff]
        %v449 = vld [vmem:[%s116 + $0x9c0] sm:$0xff]
        %v450 = vld [vmem:[%s116 + $0x9c8] sm:$0xff]
        %v451 = vld [vmem:[%s116 + $0x9d0] sm:$0xff]
        %v452 = vld [vmem:[%s116 + $0x9d8] sm:$0xff]
        %v453 = vld [vmem:[%s116 + $0x9e0] sm:$0xff]
        %v454 = vld [vmem:[%s116 + $0x9e8] sm:$0xff]
        %v455 = vld [vmem:[%s116 + $0x9f0] sm:$0xff]
        %v456 = vld [vmem:[%s116 + $0x9f8] sm:$0xff]
        %v457 = vld [vmem:[%s116 + $0xa00] sm:$0xff]
        %v458 = vld [vmem:[%s116 + $0xa08] sm:$0xff]
        %v459 = vld [vmem:[%s116 + $0xa10] sm:$0xff]
        %v460 = vld [vmem:[%s116 + $0xa18] sm:$0xff]
        %v461 = vld [vmem:[%s116 + $0xa20] sm:$0xff]
        %v462 = vld [vmem:[%s116 + $0xa28] sm:$0xff]
        %v463 = vld [vmem:[%s116 + $0xa30] sm:$0xff]
        %v464 = vld [vmem:[%s116 + $0xa38] sm:$0xff]
        %v465 = vld [vmem:[%s116 + $0xa40] sm:$0xff]
        %v466 = vld [vmem:[%s116 + $0xa48] sm:$0xff]
        %v467 = vld [vmem:[%s116 + $0xa50] sm:$0xff]
        %v468 = vld [vmem:[%s116 + $0xa58] sm:$0xff]
        %v469 = vld [vmem:[%s116 + $0xa60] sm:$0xff]
        %v470 = vld [vmem:[%s116 + $0xa68] sm:$0xff]
        %v471 = vld [vmem:[%s116 + $0xa70] sm:$0xff]
        %v472 = vld [vmem:[%s116 + $0xa78] sm:$0xff]
        %v473 = vld [vmem:[%s116 + $0xa80] sm:$0xff]
        %v474 = vld [vmem:[%s116 + $0xa88] sm:$0xff]
        %v475 = vld [vmem:[%s116 + $0xa90] sm:$0xff]
        %v476 = vld [vmem:[%s116 + $0xa98] sm:$0xff]
        %v477 = vld [vmem:[%s116 + $0xaa0] sm:$0xff]
        %v478 = vld [vmem:[%s116 + $0xaa8] sm:$0xff]
        %v479 = vld [vmem:[%s116 + $0xab0] sm:$0xff]
        %v480 = vld [vmem:[%s116 + $0xab8] sm:$0xff]
        %v481 = vld [vmem:[%s116 + $0xac0] sm:$0xff]
        %v482 = vld [vmem:[%s116 + $0xac8] sm:$0xff]
        %v483 = vld [vmem:[%s116 + $0xad0] sm:$0xff]
        %v484 = vld [vmem:[%s116 + $0xad8] sm:$0xff]
        %v485 = vld [vmem:[%s116 + $0xae0] sm:$0xff]
        %v486 = vld [vmem:[%s116 + $0xae8] sm:$0xff]
        %v487 = vld [vmem:[%s116 + $0xaf0] sm:$0xff]
        %v488 = vld [vmem:[%s116 + $0xaf8] sm:$0xff]
        %v489 = vld [vmem:[%s116 + $0xb00] sm:$0xff]
        %v490 = vld [vmem:[%s116 + $0xb08] sm:$0xff]
        %v491 = vld [vmem:[%s116 + $0xb10] sm:$0xff]
        %v492 = vld [vmem:[%s116 + $0xb18] sm:$0xff]
        %v493 = vld [vmem:[%s116 + $0xb20] sm:$0xff]
        %v494 = vld [vmem:[%s116 + $0xb28] sm:$0xff]
        %v495 = vld [vmem:[%s116 + $0xb30] sm:$0xff]
        %v496 = vld [vmem:[%s116 + $0xb38] sm:$0xff]
        %v497 = vld [vmem:[%s116 + $0xb40] sm:$0xff]
        %v498 = vld [vmem:[%s116 + $0xb48] sm:$0xff]
        %v499 = vld [vmem:[%s116 + $0xb50] sm:$0xff]
        %v500 = vld [vmem:[%s116 + $0xb58] sm:$0xff]
        %v501 = vld [vmem:[%s116 + $0xb60] sm:$0xff]
        %v502 = vld [vmem:[%s116 + $0xb68] sm:$0xff]
        %v503 = vld [vmem:[%s116 + $0xb70] sm:$0xff]
        %v504 = vld [vmem:[%s116 + $0xb78] sm:$0xff]
        %v505 = vld [vmem:[%s116 + $0xb80] sm:$0xff]
        %v506 = vld [vmem:[%s116 + $0xb88] sm:$0xff]
        %v507 = vld [vmem:[%s116 + $0xb90] sm:$0xff]
        %v508 = vld [vmem:[%s116 + $0xb98] sm:$0xff]
        %v509 = vld [vmem:[%s116 + $0xba0] sm:$0xff]
        %v510 = vld [vmem:[%s116 + $0xba8] sm:$0xff]
        %v511 = vld [vmem:[%s116 + $0xbb0] sm:$0xff]
        %v512 = vld [vmem:[%s116 + $0xbb8] sm:$0xff]
        %v513 = vld [vmem:[%s116 + $0xbc0] sm:$0xff]
        %v514 = vld [vmem:[%s116 + $0xbc8] sm:$0xff]
        %v515 = vld [vmem:[%s116 + $0xbd0] sm:$0xff]
        %v516 = vld [vmem:[%s116 + $0xbd8] sm:$0xff]
        %v517 = vld [vmem:[%s116 + $0xbe0] sm:$0xff]
        %v518 = vld [vmem:[%s116 + $0xbe8] sm:$0xff]
        %v519 = vld [vmem:[%s116 + $0xbf0] sm:$0xff]
        %v520 = vld [vmem:[%s116 + $0xbf8] sm:$0xff]
        %v521 = vld [vmem:[%s116 + $0xc00] sm:$0xff]
        %v522 = vld [vmem:[%s116 + $0xc08] sm:$0xff]
        %v523 = vld [vmem:[%s116 + $0xc10] sm:$0xff]
        %v524 = vld [vmem:[%s116 + $0xc18] sm:$0xff]
        %v525 = vld [vmem:[%s116 + $0xc20] sm:$0xff]
        %v526 = vld [vmem:[%s116 + $0xc28] sm:$0xff]
        %v527 = vld [vmem:[%s116 + $0xc30] sm:$0xff]
        %v528 = vld [vmem:[%s116 + $0xc38] sm:$0xff]
        %v529 = vld [vmem:[%s116 + $0xc40] sm:$0xff]
        %v530 = vld [vmem:[%s116 + $0xc48] sm:$0xff]
        %v531 = vld [vmem:[%s116 + $0xc50] sm:$0xff]
        %v532 = vld [vmem:[%s116 + $0xc58] sm:$0xff]
        %v533 = vld [vmem:[%s116 + $0xc60] sm:$0xff]
        %v534 = vld [vmem:[%s116 + $0xc68] sm:$0xff]
        %v535 = vld [vmem:[%s116 + $0xc70] sm:$0xff]
        %v536 = vld [vmem:[%s116 + $0xc78] sm:$0xff]
        %v537 = vld [vmem:[%s116 + $0xc80] sm:$0xff]
        %v538 = vld [vmem:[%s116 + $0xc88] sm:$0xff]
        %v539 = vld [vmem:[%s116 + $0xc90] sm:$0xff]
        %v540 = vld [vmem:[%s116 + $0xc98] sm:$0xff]
        %v541 = vld [vmem:[%s116 + $0xca0] sm:$0xff]
        %v542 = vld [vmem:[%s116 + $0xca8] sm:$0xff]
        %v543 = vld [vmem:[%s116 + $0xcb0] sm:$0xff]
        %v544 = vld [vmem:[%s116 + $0xcb8] sm:$0xff]
        %v545 = vld [vmem:[%s116 + $0xcc0] sm:$0xff]
        %v546 = vld [vmem:[%s116 + $0xcc8] sm:$0xff]
        %v547 = vld [vmem:[%s116 + $0xcd0] sm:$0xff]
        %v548 = vld [vmem:[%s116 + $0xcd8] sm:$0xff]
        %v549 = vld [vmem:[%s116 + $0xce0] sm:$0xff]
        %v550 = vld [vmem:[%s116 + $0xce8] sm:$0xff]
        %v551 = vld [vmem:[%s116 + $0xcf0] sm:$0xff]
        %v552 = vld [vmem:[%s116 + $0xcf8] sm:$0xff]
        %v553 = vld [vmem:[%s116 + $0xd00] sm:$0xff]
        %v554 = vld [vmem:[%s116 + $0xd08] sm:$0xff]
        %v555 = vld [vmem:[%s116 + $0xd10] sm:$0xff]
        %v556 = vld [vmem:[%s116 + $0xd18] sm:$0xff]
        %v557 = vld [vmem:[%s116 + $0xd20] sm:$0xff]
        %v558 = vld [vmem:[%s116 + $0xd28] sm:$0xff]
        %v559 = vld [vmem:[%s116 + $0xd30] sm:$0xff]
        %v560 = vld [vmem:[%s116 + $0xd38] sm:$0xff]
        %v561 = vld [vmem:[%s116 + $0xd40] sm:$0xff]
        %v562 = vld [vmem:[%s116 + $0xd48] sm:$0xff]
        %v563 = vld [vmem:[%s116 + $0xd50] sm:$0xff]
        %v564 = vld [vmem:[%s116 + $0xd58] sm:$0xff]
        %v565 = vld [vmem:[%s116 + $0xd60] sm:$0xff]
        %v566 = vld [vmem:[%s116 + $0xd68] sm:$0xff]
        %v567 = vld [vmem:[%s116 + $0xd70] sm:$0xff]
        %v568 = vld [vmem:[%s116 + $0xd78] sm:$0xff]
        %v569 = vld [vmem:[%s116 + $0xd80] sm:$0xff]
        %v570 = vld [vmem:[%s116 + $0xd88] sm:$0xff]
        %v571 = vld [vmem:[%s116 + $0xd90] sm:$0xff]
        %v572 = vld [vmem:[%s116 + $0xd98] sm:$0xff]
        %v573 = vld [vmem:[%s116 + $0xda0] sm:$0xff]
        %v574 = vld [vmem:[%s116 + $0xda8] sm:$0xff]
        %v575 = vld [vmem:[%s116 + $0xdb0] sm:$0xff]
        %v576 = vld [vmem:[%s116 + $0xdb8] sm:$0xff]
        %v577 = vld [vmem:[%s116 + $0xdc0] sm:$0xff]
        %v578 = vld [vmem:[%s116 + $0xdc8] sm:$0xff]
        %v579 = vld [vmem:[%s116 + $0xdd0] sm:$0xff]
        %v580 = vld [vmem:[%s116 + $0xdd8] sm:$0xff]
        %v581 = vld [vmem:[%s116 + $0xde0] sm:$0xff]
        %v582 = vld [vmem:[%s116 + $0xde8] sm:$0xff]
        %v583 = vld [vmem:[%s116 + $0xdf0] sm:$0xff]
        %v584 = vld [vmem:[%s116 + $0xdf8] sm:$0xff]
        %v585 = vld [vmem:[%s116 + $0xe00] sm:$0xff]
        %v586 = vld [vmem:[%s116 + $0xe08] sm:$0xff]
        %v587 = vld [vmem:[%s116 + $0xe10] sm:$0xff]
        %v588 = vld [vmem:[%s116 + $0xe18] sm:$0xff]
        %v589 = vld [vmem:[%s116 + $0xe20] sm:$0xff]
        %v590 = vld [vmem:[%s116 + $0xe28] sm:$0xff]
        %v591 = vld [vmem:[%s116 + $0xe30] sm:$0xff]
        %v592 = vld [vmem:[%s116 + $0xe38] sm:$0xff]
        %v593 = vld [vmem:[%s116 + $0xe40] sm:$0xff]
        %v594 = vld [vmem:[%s116 + $0xe48] sm:$0xff]
        %v595 = vld [vmem:[%s116 + $0xe50] sm:$0xff]
        %v596 = vld [vmem:[%s116 + $0xe58] sm:$0xff]
        %v597 = vld [vmem:[%s116 + $0xe60] sm:$0xff]
        %v598 = vld [vmem:[%s116 + $0xe68] sm:$0xff]
        %v599 = vld [vmem:[%s116 + $0xe70] sm:$0xff]
        %v600 = vld [vmem:[%s116 + $0xe78] sm:$0xff]
        %v601 = vld [vmem:[%s116 + $0xe80] sm:$0xff]
        %v602 = vld [vmem:[%s116 + $0xe88] sm:$0xff]
        %v603 = vld [vmem:[%s116 + $0xe90] sm:$0xff]
        %v604 = vld [vmem:[%s116 + $0xe98] sm:$0xff]
        %v605 = vld [vmem:[%s116 + $0xea0] sm:$0xff]
        %v606 = vld [vmem:[%s116 + $0xea8] sm:$0xff]
        %v607 = vld [vmem:[%s116 + $0xeb0] sm:$0xff]
        %v608 = vld [vmem:[%s116 + $0xeb8] sm:$0xff]
        %v609 = vld [vmem:[%s116 + $0xec0] sm:$0xff]
        %v610 = vld [vmem:[%s116 + $0xec8] sm:$0xff]
        %v611 = vld [vmem:[%s116 + $0xed0] sm:$0xff]
        %v612 = vld [vmem:[%s116 + $0xed8] sm:$0xff]
        %v613 = vld [vmem:[%s116 + $0xee0] sm:$0xff]
        %v614 = vld [vmem:[%s116 + $0xee8] sm:$0xff]
        %v615 = vld [vmem:[%s116 + $0xef0] sm:$0xff]
        %v616 = vld [vmem:[%s116 + $0xef8] sm:$0xff]
        %v617 = vld [vmem:[%s116 + $0xf00] sm:$0xff]
        %v618 = vld [vmem:[%s116 + $0xf08] sm:$0xff]
        %v619 = vld [vmem:[%s116 + $0xf10] sm:$0xff]
        %v620 = vld [vmem:[%s116 + $0xf18] sm:$0xff]
        %v621 = vld [vmem:[%s116 + $0xf20] sm:$0xff]
        %v622 = vld [vmem:[%s116 + $0xf28] sm:$0xff]
        %v623 = vld [vmem:[%s116 + $0xf30] sm:$0xff]
        %v624 = vld [vmem:[%s116 + $0xf38] sm:$0xff]
        %v625 = vld [vmem:[%s116 + $0xf40] sm:$0xff]
        %v626 = vld [vmem:[%s116 + $0xf48] sm:$0xff]
        %v627 = vld [vmem:[%s116 + $0xf50] sm:$0xff]
        %v628 = vld [vmem:[%s116 + $0xf58] sm:$0xff]
        %v629 = vld [vmem:[%s116 + $0xf60] sm:$0xff]
        %v630 = vld [vmem:[%s116 + $0xf68] sm:$0xff]
        %v631 = vld [vmem:[%s116 + $0xf70] sm:$0xff]
        %v632 = vld [vmem:[%s116 + $0xf78] sm:$0xff]
        %v633 = vld [vmem:[%s116 + $0xf80] sm:$0xff]
        %v634 = vld [vmem:[%s116 + $0xf88] sm:$0xff]
        %v635 = vld [vmem:[%s116 + $0xf90] sm:$0xff]
        %v636 = vld [vmem:[%s116 + $0xf98] sm:$0xff]
        %v637 = vld [vmem:[%s116 + $0xfa0] sm:$0xff]
        %v638 = vld [vmem:[%s116 + $0xfa8] sm:$0xff]
        %v639 = vld [vmem:[%s116 + $0xfb0] sm:$0xff]
        %v640 = vld [vmem:[%s116 + $0xfb8] sm:$0xff]
        %v641 = vld [vmem:[%s116 + $0xfc0] sm:$0xff]
        %v642 = vld [vmem:[%s116 + $0xfc8] sm:$0xff]
        %v643 = vld [vmem:[%s116 + $0xfd0] sm:$0xff]
        %v644 = vld [vmem:[%s116 + $0xfd8] sm:$0xff]
        %v645 = vld [vmem:[%s116 + $0xfe0] sm:$0xff]
        %v646 = vld [vmem:[%s116 + $0xfe8] sm:$0xff]
        %v647 = vld [vmem:[%s116 + $0xff0] sm:$0xff]
        %v648 = vld [vmem:[%s116 + $0xff8] sm:$0xff]
        %v649 = vxor.u32 %v137, 2147483648
        %v650 = vxor.u32 %v138, 2147483648
        %v651 = vxor.u32 %v139, 2147483648
        %v652 = vxor.u32 %v140, 2147483648
        %v653 = vxor.u32 %v141, 2147483648
        %v654 = vxor.u32 %v142, 2147483648
        %v655 = vxor.u32 %v143, 2147483648
        %v656 = vxor.u32 %v144, 2147483648
        %v657 = vxor.u32 %v145, 2147483648
        %v658 = vxor.u32 %v146, 2147483648
        %v659 = vxor.u32 %v147, 2147483648
        %v660 = vxor.u32 %v148, 2147483648
        %v661 = vxor.u32 %v149, 2147483648
        %v662 = vxor.u32 %v150, 2147483648
        %v663 = vxor.u32 %v151, 2147483648
        %v664 = vxor.u32 %v152, 2147483648
        %v665 = vxor.u32 %v153, 2147483648
        %v666 = vxor.u32 %v154, 2147483648
        %v667 = vxor.u32 %v155, 2147483648
        %v668 = vxor.u32 %v156, 2147483648
        %v669 = vxor.u32 %v157, 2147483648
        %v670 = vxor.u32 %v158, 2147483648
        %v671 = vxor.u32 %v159, 2147483648
        %v672 = vxor.u32 %v160, 2147483648
        %v673 = vxor.u32 %v161, 2147483648
        %v674 = vxor.u32 %v162, 2147483648
        %v675 = vxor.u32 %v163, 2147483648
        %v676 = vxor.u32 %v164, 2147483648
        %v677 = vxor.u32 %v165, 2147483648
        %v678 = vxor.u32 %v166, 2147483648
        %v679 = vxor.u32 %v167, 2147483648
        %v680 = vxor.u32 %v168, 2147483648
        %v681 = vxor.u32 %v169, 2147483648
        %v682 = vxor.u32 %v170, 2147483648
        %v683 = vxor.u32 %v171, 2147483648
        %v684 = vxor.u32 %v172, 2147483648
        %v685 = vxor.u32 %v173, 2147483648
        %v686 = vxor.u32 %v174, 2147483648
        %v687 = vxor.u32 %v175, 2147483648
        %v688 = vxor.u32 %v176, 2147483648
        %v689 = vxor.u32 %v177, 2147483648
        %v690 = vxor.u32 %v178, 2147483648
        %v691 = vxor.u32 %v179, 2147483648
        %v692 = vxor.u32 %v180, 2147483648
        %v693 = vxor.u32 %v181, 2147483648
        %v694 = vxor.u32 %v182, 2147483648
        %v695 = vxor.u32 %v183, 2147483648
        %v696 = vxor.u32 %v184, 2147483648
        %v697 = vxor.u32 %v185, 2147483648
        %v698 = vxor.u32 %v186, 2147483648
        %v699 = vxor.u32 %v187, 2147483648
        %v700 = vxor.u32 %v188, 2147483648
        %v701 = vxor.u32 %v189, 2147483648
        %v702 = vxor.u32 %v190, 2147483648
        %v703 = vxor.u32 %v191, 2147483648
        %v704 = vxor.u32 %v192, 2147483648
        %v705 = vxor.u32 %v193, 2147483648
        %v706 = vxor.u32 %v194, 2147483648
        %v707 = vxor.u32 %v195, 2147483648
        %v708 = vxor.u32 %v196, 2147483648
        %v709 = vxor.u32 %v197, 2147483648
        %v710 = vxor.u32 %v198, 2147483648
        %v711 = vxor.u32 %v199, 2147483648
        %v712 = vxor.u32 %v200, 2147483648
        %v713 = vxor.u32 %v201, 2147483648
        %v714 = vxor.u32 %v202, 2147483648
        %v715 = vxor.u32 %v203, 2147483648
        %v716 = vxor.u32 %v204, 2147483648
        %v717 = vxor.u32 %v205, 2147483648
        %v718 = vxor.u32 %v206, 2147483648
        %v719 = vxor.u32 %v207, 2147483648
        %v720 = vxor.u32 %v208, 2147483648
        %v721 = vxor.u32 %v209, 2147483648
        %v722 = vxor.u32 %v210, 2147483648
        %v723 = vxor.u32 %v211, 2147483648
        %v724 = vxor.u32 %v212, 2147483648
        %v725 = vxor.u32 %v213, 2147483648
        %v726 = vxor.u32 %v214, 2147483648
        %v727 = vxor.u32 %v215, 2147483648
        %v728 = vxor.u32 %v216, 2147483648
        %v729 = vxor.u32 %v217, 2147483648
        %v730 = vxor.u32 %v218, 2147483648
        %v731 = vxor.u32 %v219, 2147483648
        %v732 = vxor.u32 %v220, 2147483648
        %v733 = vxor.u32 %v221, 2147483648
        %v734 = vxor.u32 %v222, 2147483648
        %v735 = vxor.u32 %v223, 2147483648
        %v736 = vxor.u32 %v224, 2147483648
        %v737 = vxor.u32 %v225, 2147483648
        %v738 = vxor.u32 %v226, 2147483648
        %v739 = vxor.u32 %v227, 2147483648
        %v740 = vxor.u32 %v228, 2147483648
        %v741 = vxor.u32 %v229, 2147483648
        %v742 = vxor.u32 %v230, 2147483648
        %v743 = vxor.u32 %v231, 2147483648
        %v744 = vxor.u32 %v232, 2147483648
        %v745 = vxor.u32 %v233, 2147483648
        %v746 = vxor.u32 %v234, 2147483648
        %v747 = vxor.u32 %v235, 2147483648
        %v748 = vxor.u32 %v236, 2147483648
        %v749 = vxor.u32 %v237, 2147483648
        %v750 = vxor.u32 %v238, 2147483648
        %v751 = vxor.u32 %v239, 2147483648
        %v752 = vxor.u32 %v240, 2147483648
        %v753 = vxor.u32 %v241, 2147483648
        %v754 = vxor.u32 %v242, 2147483648
        %v755 = vxor.u32 %v243, 2147483648
        %v756 = vxor.u32 %v244, 2147483648
        %v757 = vxor.u32 %v245, 2147483648
        %v758 = vxor.u32 %v246, 2147483648
        %v759 = vxor.u32 %v247, 2147483648
        %v760 = vxor.u32 %v248, 2147483648
        %v761 = vxor.u32 %v249, 2147483648
        %v762 = vxor.u32 %v250, 2147483648
        %v763 = vxor.u32 %v251, 2147483648
        %v764 = vxor.u32 %v252, 2147483648
        %v765 = vxor.u32 %v253, 2147483648
        %v766 = vxor.u32 %v254, 2147483648
        %v767 = vxor.u32 %v255, 2147483648
        %v768 = vxor.u32 %v256, 2147483648
        %v769 = vxor.u32 %v257, 2147483648
        %v770 = vxor.u32 %v258, 2147483648
        %v771 = vxor.u32 %v259, 2147483648
        %v772 = vxor.u32 %v260, 2147483648
        %v773 = vxor.u32 %v261, 2147483648
        %v774 = vxor.u32 %v262, 2147483648
        %v775 = vxor.u32 %v263, 2147483648
        %v776 = vxor.u32 %v264, 2147483648
        %v777 = vxor.u32 %v265, 2147483648
        %v778 = vxor.u32 %v266, 2147483648
        %v779 = vxor.u32 %v267, 2147483648
        %v780 = vxor.u32 %v268, 2147483648
        %v781 = vxor.u32 %v269, 2147483648
        %v782 = vxor.u32 %v270, 2147483648
        %v783 = vxor.u32 %v271, 2147483648
        %v784 = vxor.u32 %v272, 2147483648
        %v785 = vxor.u32 %v273, 2147483648
        %v786 = vxor.u32 %v274, 2147483648
        %v787 = vxor.u32 %v275, 2147483648
        %v788 = vxor.u32 %v276, 2147483648
        %v789 = vxor.u32 %v277, 2147483648
        %v790 = vxor.u32 %v278, 2147483648
        %v791 = vxor.u32 %v279, 2147483648
        %v792 = vxor.u32 %v280, 2147483648
        %v793 = vxor.u32 %v281, 2147483648
        %v794 = vxor.u32 %v282, 2147483648
        %v795 = vxor.u32 %v283, 2147483648
        %v796 = vxor.u32 %v284, 2147483648
        %v797 = vxor.u32 %v285, 2147483648
        %v798 = vxor.u32 %v286, 2147483648
        %v799 = vxor.u32 %v287, 2147483648
        %v800 = vxor.u32 %v288, 2147483648
        %v801 = vxor.u32 %v289, 2147483648
        %v802 = vxor.u32 %v290, 2147483648
        %v803 = vxor.u32 %v291, 2147483648
        %v804 = vxor.u32 %v292, 2147483648
        %v805 = vxor.u32 %v293, 2147483648
        %v806 = vxor.u32 %v294, 2147483648
        %v807 = vxor.u32 %v295, 2147483648
        %v808 = vxor.u32 %v296, 2147483648
        %v809 = vxor.u32 %v297, 2147483648
        %v810 = vxor.u32 %v298, 2147483648
        %v811 = vxor.u32 %v299, 2147483648
        %v812 = vxor.u32 %v300, 2147483648
        %v813 = vxor.u32 %v301, 2147483648
        %v814 = vxor.u32 %v302, 2147483648
        %v815 = vxor.u32 %v303, 2147483648
        %v816 = vxor.u32 %v304, 2147483648
        %v817 = vxor.u32 %v305, 2147483648
        %v818 = vxor.u32 %v306, 2147483648
        %v819 = vxor.u32 %v307, 2147483648
        %v820 = vxor.u32 %v308, 2147483648
        %v821 = vxor.u32 %v309, 2147483648
        %v822 = vxor.u32 %v310, 2147483648
        %v823 = vxor.u32 %v311, 2147483648
        %v824 = vxor.u32 %v312, 2147483648
        %v825 = vxor.u32 %v313, 2147483648
        %v826 = vxor.u32 %v314, 2147483648
        %v827 = vxor.u32 %v315, 2147483648
        %v828 = vxor.u32 %v316, 2147483648
        %v829 = vxor.u32 %v317, 2147483648
        %v830 = vxor.u32 %v318, 2147483648
        %v831 = vxor.u32 %v319, 2147483648
        %v832 = vxor.u32 %v320, 2147483648
        %v833 = vxor.u32 %v321, 2147483648
        %v834 = vxor.u32 %v322, 2147483648
        %v835 = vxor.u32 %v323, 2147483648
        %v836 = vxor.u32 %v324, 2147483648
        %v837 = vxor.u32 %v325, 2147483648
        %v838 = vxor.u32 %v326, 2147483648
        %v839 = vxor.u32 %v327, 2147483648
        %v840 = vxor.u32 %v328, 2147483648
        %v841 = vxor.u32 %v329, 2147483648
        %v842 = vxor.u32 %v330, 2147483648
        %v843 = vxor.u32 %v331, 2147483648
        %v844 = vxor.u32 %v332, 2147483648
        %v845 = vxor.u32 %v333, 2147483648
        %v846 = vxor.u32 %v334, 2147483648
        %v847 = vxor.u32 %v335, 2147483648
        %v848 = vxor.u32 %v336, 2147483648
        %v849 = vxor.u32 %v337, 2147483648
        %v850 = vxor.u32 %v338, 2147483648
        %v851 = vxor.u32 %v339, 2147483648
        %v852 = vxor.u32 %v340, 2147483648
        %v853 = vxor.u32 %v341, 2147483648
        %v854 = vxor.u32 %v342, 2147483648
        %v855 = vxor.u32 %v343, 2147483648
        %v856 = vxor.u32 %v344, 2147483648
        %v857 = vxor.u32 %v345, 2147483648
        %v858 = vxor.u32 %v346, 2147483648
        %v859 = vxor.u32 %v347, 2147483648
        %v860 = vxor.u32 %v348, 2147483648
        %v861 = vxor.u32 %v349, 2147483648
        %v862 = vxor.u32 %v350, 2147483648
        %v863 = vxor.u32 %v351, 2147483648
        %v864 = vxor.u32 %v352, 2147483648
        %v865 = vxor.u32 %v353, 2147483648
        %v866 = vxor.u32 %v354, 2147483648
        %v867 = vxor.u32 %v355, 2147483648
        %v868 = vxor.u32 %v356, 2147483648
        %v869 = vxor.u32 %v357, 2147483648
        %v870 = vxor.u32 %v358, 2147483648
        %v871 = vxor.u32 %v359, 2147483648
        %v872 = vxor.u32 %v360, 2147483648
        %v873 = vxor.u32 %v361, 2147483648
        %v874 = vxor.u32 %v362, 2147483648
        %v875 = vxor.u32 %v363, 2147483648
        %v876 = vxor.u32 %v364, 2147483648
        %v877 = vxor.u32 %v365, 2147483648
        %v878 = vxor.u32 %v366, 2147483648
        %v879 = vxor.u32 %v367, 2147483648
        %v880 = vxor.u32 %v368, 2147483648
        %v881 = vxor.u32 %v369, 2147483648
        %v882 = vxor.u32 %v370, 2147483648
        %v883 = vxor.u32 %v371, 2147483648
        %v884 = vxor.u32 %v372, 2147483648
        %v885 = vxor.u32 %v373, 2147483648
        %v886 = vxor.u32 %v374, 2147483648
        %v887 = vxor.u32 %v375, 2147483648
        %v888 = vxor.u32 %v376, 2147483648
        %v889 = vxor.u32 %v377, 2147483648
        %v890 = vxor.u32 %v378, 2147483648
        %v891 = vxor.u32 %v379, 2147483648
        %v892 = vxor.u32 %v380, 2147483648
        %v893 = vxor.u32 %v381, 2147483648
        %v894 = vxor.u32 %v382, 2147483648
        %v895 = vxor.u32 %v383, 2147483648
        %v896 = vxor.u32 %v384, 2147483648
        %v897 = vxor.u32 %v385, 2147483648
        %v898 = vxor.u32 %v386, 2147483648
        %v899 = vxor.u32 %v387, 2147483648
        %v900 = vxor.u32 %v388, 2147483648
        %v901 = vxor.u32 %v389, 2147483648
        %v902 = vxor.u32 %v390, 2147483648
        %v903 = vxor.u32 %v391, 2147483648
        %v904 = vxor.u32 %v392, 2147483648
        %v905 = vxor.u32 %v393, 2147483648
        %v906 = vxor.u32 %v394, 2147483648
        %v907 = vxor.u32 %v395, 2147483648
        %v908 = vxor.u32 %v396, 2147483648
        %v909 = vxor.u32 %v397, 2147483648
        %v910 = vxor.u32 %v398, 2147483648
        %v911 = vxor.u32 %v399, 2147483648
        %v912 = vxor.u32 %v400, 2147483648
        %v913 = vxor.u32 %v401, 2147483648
        %v914 = vxor.u32 %v402, 2147483648
        %v915 = vxor.u32 %v403, 2147483648
        %v916 = vxor.u32 %v404, 2147483648
        %v917 = vxor.u32 %v405, 2147483648
        %v918 = vxor.u32 %v406, 2147483648
        %v919 = vxor.u32 %v407, 2147483648
        %v920 = vxor.u32 %v408, 2147483648
        %v921 = vxor.u32 %v409, 2147483648
        %v922 = vxor.u32 %v410, 2147483648
        %v923 = vxor.u32 %v411, 2147483648
        %v924 = vxor.u32 %v412, 2147483648
        %v925 = vxor.u32 %v413, 2147483648
        %v926 = vxor.u32 %v414, 2147483648
        %v927 = vxor.u32 %v415, 2147483648
        %v928 = vxor.u32 %v416, 2147483648
        %v929 = vxor.u32 %v417, 2147483648
        %v930 = vxor.u32 %v418, 2147483648
        %v931 = vxor.u32 %v419, 2147483648
        %v932 = vxor.u32 %v420, 2147483648
        %v933 = vxor.u32 %v421, 2147483648
        %v934 = vxor.u32 %v422, 2147483648
        %v935 = vxor.u32 %v423, 2147483648
        %v936 = vxor.u32 %v424, 2147483648
        %v937 = vxor.u32 %v425, 2147483648
        %v938 = vxor.u32 %v426, 2147483648
        %v939 = vxor.u32 %v427, 2147483648
        %v940 = vxor.u32 %v428, 2147483648
        %v941 = vxor.u32 %v429, 2147483648
        %v942 = vxor.u32 %v430, 2147483648
        %v943 = vxor.u32 %v431, 2147483648
        %v944 = vxor.u32 %v432, 2147483648
        %v945 = vxor.u32 %v433, 2147483648
        %v946 = vxor.u32 %v434, 2147483648
        %v947 = vxor.u32 %v435, 2147483648
        %v948 = vxor.u32 %v436, 2147483648
        %v949 = vxor.u32 %v437, 2147483648
        %v950 = vxor.u32 %v438, 2147483648
        %v951 = vxor.u32 %v439, 2147483648
        %v952 = vxor.u32 %v440, 2147483648
        %v953 = vxor.u32 %v441, 2147483648
        %v954 = vxor.u32 %v442, 2147483648
        %v955 = vxor.u32 %v443, 2147483648
        %v956 = vxor.u32 %v444, 2147483648
        %v957 = vxor.u32 %v445, 2147483648
        %v958 = vxor.u32 %v446, 2147483648
        %v959 = vxor.u32 %v447, 2147483648
        %v960 = vxor.u32 %v448, 2147483648
        %v961 = vxor.u32 %v449, 2147483648
        %v962 = vxor.u32 %v450, 2147483648
        %v963 = vxor.u32 %v451, 2147483648
        %v964 = vxor.u32 %v452, 2147483648
        %v965 = vxor.u32 %v453, 2147483648
        %v966 = vxor.u32 %v454, 2147483648
        %v967 = vxor.u32 %v455, 2147483648
        %v968 = vxor.u32 %v456, 2147483648
        %v969 = vxor.u32 %v457, 2147483648
        %v970 = vxor.u32 %v458, 2147483648
        %v971 = vxor.u32 %v459, 2147483648
        %v972 = vxor.u32 %v460, 2147483648
        %v973 = vxor.u32 %v461, 2147483648
        %v974 = vxor.u32 %v462, 2147483648
        %v975 = vxor.u32 %v463, 2147483648
        %v976 = vxor.u32 %v464, 2147483648
        %v977 = vxor.u32 %v465, 2147483648
        %v978 = vxor.u32 %v466, 2147483648
        %v979 = vxor.u32 %v467, 2147483648
        %v980 = vxor.u32 %v468, 2147483648
        %v981 = vxor.u32 %v469, 2147483648
        %v982 = vxor.u32 %v470, 2147483648
        %v983 = vxor.u32 %v471, 2147483648
        %v984 = vxor.u32 %v472, 2147483648
        %v985 = vxor.u32 %v473, 2147483648
        %v986 = vxor.u32 %v474, 2147483648
        %v987 = vxor.u32 %v475, 2147483648
        %v988 = vxor.u32 %v476, 2147483648
        %v989 = vxor.u32 %v477, 2147483648
        %v990 = vxor.u32 %v478, 2147483648
        %v991 = vxor.u32 %v479, 2147483648
        %v992 = vxor.u32 %v480, 2147483648
        %v993 = vxor.u32 %v481, 2147483648
        %v994 = vxor.u32 %v482, 2147483648
        %v995 = vxor.u32 %v483, 2147483648
        %v996 = vxor.u32 %v484, 2147483648
        %v997 = vxor.u32 %v485, 2147483648
        %v998 = vxor.u32 %v486, 2147483648
        %v999 = vxor.u32 %v487, 2147483648
        %v1000 = vxor.u32 %v488, 2147483648
        %v1001 = vxor.u32 %v489, 2147483648
        %v1002 = vxor.u32 %v490, 2147483648
        %v1003 = vxor.u32 %v491, 2147483648
        %v1004 = vxor.u32 %v492, 2147483648
        %v1005 = vxor.u32 %v493, 2147483648
        %v1006 = vxor.u32 %v494, 2147483648
        %v1007 = vxor.u32 %v495, 2147483648
        %v1008 = vxor.u32 %v496, 2147483648
        %v1009 = vxor.u32 %v497, 2147483648
        %v1010 = vxor.u32 %v498, 2147483648
        %v1011 = vxor.u32 %v499, 2147483648
        %v1012 = vxor.u32 %v500, 2147483648
        %v1013 = vxor.u32 %v501, 2147483648
        %v1014 = vxor.u32 %v502, 2147483648
        %v1015 = vxor.u32 %v503, 2147483648
        %v1016 = vxor.u32 %v504, 2147483648
        %v1017 = vxor.u32 %v505, 2147483648
        %v1018 = vxor.u32 %v506, 2147483648
        %v1019 = vxor.u32 %v507, 2147483648
        %v1020 = vxor.u32 %v508, 2147483648
        %v1021 = vxor.u32 %v509, 2147483648
        %v1022 = vxor.u32 %v510, 2147483648
        %v1023 = vxor.u32 %v511, 2147483648
        %v1024 = vxor.u32 %v512, 2147483648
        %v1025 = vxor.u32 %v513, 2147483648
        %v1026 = vxor.u32 %v514, 2147483648
        %v1027 = vxor.u32 %v515, 2147483648
        %v1028 = vxor.u32 %v516, 2147483648
        %v1029 = vxor.u32 %v517, 2147483648
        %v1030 = vxor.u32 %v518, 2147483648
        %v1031 = vxor.u32 %v519, 2147483648
        %v1032 = vxor.u32 %v520, 2147483648
        %v1033 = vxor.u32 %v521, 2147483648
        %v1034 = vxor.u32 %v522, 2147483648
        %v1035 = vxor.u32 %v523, 2147483648
        %v1036 = vxor.u32 %v524, 2147483648
        %v1037 = vxor.u32 %v525, 2147483648
        %v1038 = vxor.u32 %v526, 2147483648
        %v1039 = vxor.u32 %v527, 2147483648
        %v1040 = vxor.u32 %v528, 2147483648
        %v1041 = vxor.u32 %v529, 2147483648
        %v1042 = vxor.u32 %v530, 2147483648
        %v1043 = vxor.u32 %v531, 2147483648
        %v1044 = vxor.u32 %v532, 2147483648
        %v1045 = vxor.u32 %v533, 2147483648
        %v1046 = vxor.u32 %v534, 2147483648
        %v1047 = vxor.u32 %v535, 2147483648
        %v1048 = vxor.u32 %v536, 2147483648
        %v1049 = vxor.u32 %v537, 2147483648
        %v1050 = vxor.u32 %v538, 2147483648
        %v1051 = vxor.u32 %v539, 2147483648
        %v1052 = vxor.u32 %v540, 2147483648
        %v1053 = vxor.u32 %v541, 2147483648
        %v1054 = vxor.u32 %v542, 2147483648
        %v1055 = vxor.u32 %v543, 2147483648
        %v1056 = vxor.u32 %v544, 2147483648
        %v1057 = vxor.u32 %v545, 2147483648
        %v1058 = vxor.u32 %v546, 2147483648
        %v1059 = vxor.u32 %v547, 2147483648
        %v1060 = vxor.u32 %v548, 2147483648
        %v1061 = vxor.u32 %v549, 2147483648
        %v1062 = vxor.u32 %v550, 2147483648
        %v1063 = vxor.u32 %v551, 2147483648
        %v1064 = vxor.u32 %v552, 2147483648
        %v1065 = vxor.u32 %v553, 2147483648
        %v1066 = vxor.u32 %v554, 2147483648
        %v1067 = vxor.u32 %v555, 2147483648
        %v1068 = vxor.u32 %v556, 2147483648
        %v1069 = vxor.u32 %v557, 2147483648
        %v1070 = vxor.u32 %v558, 2147483648
        %v1071 = vxor.u32 %v559, 2147483648
        %v1072 = vxor.u32 %v560, 2147483648
        %v1073 = vxor.u32 %v561, 2147483648
        %v1074 = vxor.u32 %v562, 2147483648
        %v1075 = vxor.u32 %v563, 2147483648
        %v1076 = vxor.u32 %v564, 2147483648
        %v1077 = vxor.u32 %v565, 2147483648
        %v1078 = vxor.u32 %v566, 2147483648
        %v1079 = vxor.u32 %v567, 2147483648
        %v1080 = vxor.u32 %v568, 2147483648
        %v1081 = vxor.u32 %v569, 2147483648
        %v1082 = vxor.u32 %v570, 2147483648
        %v1083 = vxor.u32 %v571, 2147483648
        %v1084 = vxor.u32 %v572, 2147483648
        %v1085 = vxor.u32 %v573, 2147483648
        %v1086 = vxor.u32 %v574, 2147483648
        %v1087 = vxor.u32 %v575, 2147483648
        %v1088 = vxor.u32 %v576, 2147483648
        %v1089 = vxor.u32 %v577, 2147483648
        %v1090 = vxor.u32 %v578, 2147483648
        %v1091 = vxor.u32 %v579, 2147483648
        %v1092 = vxor.u32 %v580, 2147483648
        %v1093 = vxor.u32 %v581, 2147483648
        %v1094 = vxor.u32 %v582, 2147483648
        %v1095 = vxor.u32 %v583, 2147483648
        %v1096 = vxor.u32 %v584, 2147483648
        %v1097 = vxor.u32 %v585, 2147483648
        %v1098 = vxor.u32 %v586, 2147483648
        %v1099 = vxor.u32 %v587, 2147483648
        %v1100 = vxor.u32 %v588, 2147483648
        %v1101 = vxor.u32 %v589, 2147483648
        %v1102 = vxor.u32 %v590, 2147483648
        %v1103 = vxor.u32 %v591, 2147483648
        %v1104 = vxor.u32 %v592, 2147483648
        %v1105 = vxor.u32 %v593, 2147483648
        %v1106 = vxor.u32 %v594, 2147483648
        %v1107 = vxor.u32 %v595, 2147483648
        %v1108 = vxor.u32 %v596, 2147483648
        %v1109 = vxor.u32 %v597, 2147483648
        %v1110 = vxor.u32 %v598, 2147483648
        %v1111 = vxor.u32 %v599, 2147483648
        %v1112 = vxor.u32 %v600, 2147483648
        %v1113 = vxor.u32 %v601, 2147483648
        %v1114 = vxor.u32 %v602, 2147483648
        %v1115 = vxor.u32 %v603, 2147483648
        %v1116 = vxor.u32 %v604, 2147483648
        %v1117 = vxor.u32 %v605, 2147483648
        %v1118 = vxor.u32 %v606, 2147483648
        %v1119 = vxor.u32 %v607, 2147483648
        %v1120 = vxor.u32 %v608, 2147483648
        %v1121 = vxor.u32 %v609, 2147483648
        %v1122 = vxor.u32 %v610, 2147483648
        %v1123 = vxor.u32 %v611, 2147483648
        %v1124 = vxor.u32 %v612, 2147483648
        %v1125 = vxor.u32 %v613, 2147483648
        %v1126 = vxor.u32 %v614, 2147483648
        %v1127 = vxor.u32 %v615, 2147483648
        %v1128 = vxor.u32 %v616, 2147483648
        %v1129 = vxor.u32 %v617, 2147483648
        %v1130 = vxor.u32 %v618, 2147483648
        %v1131 = vxor.u32 %v619, 2147483648
        %v1132 = vxor.u32 %v620, 2147483648
        %v1133 = vxor.u32 %v621, 2147483648
        %v1134 = vxor.u32 %v622, 2147483648
        %v1135 = vxor.u32 %v623, 2147483648
        %v1136 = vxor.u32 %v624, 2147483648
        %v1137 = vxor.u32 %v625, 2147483648
        %v1138 = vxor.u32 %v626, 2147483648
        %v1139 = vxor.u32 %v627, 2147483648
        %v1140 = vxor.u32 %v628, 2147483648
        %v1141 = vxor.u32 %v629, 2147483648
        %v1142 = vxor.u32 %v630, 2147483648
        %v1143 = vxor.u32 %v631, 2147483648
        %v1144 = vxor.u32 %v632, 2147483648
        %v1145 = vxor.u32 %v633, 2147483648
        %v1146 = vxor.u32 %v634, 2147483648
        %v1147 = vxor.u32 %v635, 2147483648
        %v1148 = vxor.u32 %v636, 2147483648
        %v1149 = vxor.u32 %v637, 2147483648
        %v1150 = vxor.u32 %v638, 2147483648
        %v1151 = vxor.u32 %v639, 2147483648
        %v1152 = vxor.u32 %v640, 2147483648
        %v1153 = vxor.u32 %v641, 2147483648
        %v1154 = vxor.u32 %v642, 2147483648
        %v1155 = vxor.u32 %v643, 2147483648
        %v1156 = vxor.u32 %v644, 2147483648
        %v1157 = vxor.u32 %v645, 2147483648
        %v1158 = vxor.u32 %v646, 2147483648
        %v1159 = vxor.u32 %v647, 2147483648
        %v1160 = vxor.u32 %v648, 2147483648
        %v1161 = vmul.f32 %v649, 1.442695
        %v1162 = vpow.pop %v1161
        %v1163 = vmul.f32 %v650, 1.442695
        %v1164 = vpow.pop %v1163
        %v1165 = vmul.f32 %v651, 1.442695
        %v1166 = vpow.pop %v1165
        %v1167 = vmul.f32 %v652, 1.442695
        %v1168 = vpow.pop %v1167
        %v1169 = vmul.f32 %v653, 1.442695
        %v1170 = vpow.pop %v1169
        %v1171 = vmul.f32 %v654, 1.442695
        %v1172 = vpow.pop %v1171
        %v1173 = vmul.f32 %v655, 1.442695
        %v1174 = vpow.pop %v1173
        %v1175 = vmul.f32 %v656, 1.442695
        %v1176 = vpow.pop %v1175
        %v1177 = vmul.f32 %v657, 1.442695
        %v1178 = vpow.pop %v1177
        %v1179 = vmul.f32 %v658, 1.442695
        %v1180 = vpow.pop %v1179
        %v1181 = vmul.f32 %v659, 1.442695
        %v1182 = vpow.pop %v1181
        %v1183 = vmul.f32 %v660, 1.442695
        %v1184 = vpow.pop %v1183
        %v1185 = vmul.f32 %v661, 1.442695
        %v1186 = vpow.pop %v1185
        %v1187 = vmul.f32 %v662, 1.442695
        %v1188 = vpow.pop %v1187
        %v1189 = vmul.f32 %v663, 1.442695
        %v1190 = vpow.pop %v1189
        %v1191 = vmul.f32 %v664, 1.442695
        %v1192 = vpow.pop %v1191
        %v1193 = vmul.f32 %v665, 1.442695
        %v1194 = vpow.pop %v1193
        %v1195 = vmul.f32 %v666, 1.442695
        %v1196 = vpow.pop %v1195
        %v1197 = vmul.f32 %v667, 1.442695
        %v1198 = vpow.pop %v1197
        %v1199 = vmul.f32 %v668, 1.442695
        %v1200 = vpow.pop %v1199
        %v1201 = vmul.f32 %v669, 1.442695
        %v1202 = vpow.pop %v1201
        %v1203 = vmul.f32 %v670, 1.442695
        %v1204 = vpow.pop %v1203
        %v1205 = vmul.f32 %v671, 1.442695
        %v1206 = vpow.pop %v1205
        %v1207 = vmul.f32 %v672, 1.442695
        %v1208 = vpow.pop %v1207
        %v1209 = vmul.f32 %v673, 1.442695
        %v1210 = vpow.pop %v1209
        %v1211 = vmul.f32 %v674, 1.442695
        %v1212 = vpow.pop %v1211
        %v1213 = vmul.f32 %v675, 1.442695
        %v1214 = vpow.pop %v1213
        %v1215 = vmul.f32 %v676, 1.442695
        %v1216 = vpow.pop %v1215
        %v1217 = vmul.f32 %v677, 1.442695
        %v1218 = vpow.pop %v1217
        %v1219 = vmul.f32 %v678, 1.442695
        %v1220 = vpow.pop %v1219
        %v1221 = vmul.f32 %v679, 1.442695
        %v1222 = vpow.pop %v1221
        %v1223 = vmul.f32 %v680, 1.442695
        %v1224 = vpow.pop %v1223
        %v1225 = vmul.f32 %v681, 1.442695
        %v1226 = vpow.pop %v1225
        %v1227 = vmul.f32 %v682, 1.442695
        %v1228 = vpow.pop %v1227
        %v1229 = vmul.f32 %v683, 1.442695
        %v1230 = vpow.pop %v1229
        %v1231 = vmul.f32 %v684, 1.442695
        %v1232 = vpow.pop %v1231
        %v1233 = vmul.f32 %v685, 1.442695
        %v1234 = vpow.pop %v1233
        %v1235 = vmul.f32 %v686, 1.442695
        %v1236 = vpow.pop %v1235
        %v1237 = vmul.f32 %v687, 1.442695
        %v1238 = vpow.pop %v1237
        %v1239 = vmul.f32 %v688, 1.442695
        %v1240 = vpow.pop %v1239
        %v1241 = vmul.f32 %v689, 1.442695
        %v1242 = vpow.pop %v1241
        %v1243 = vmul.f32 %v690, 1.442695
        %v1244 = vpow.pop %v1243
        %v1245 = vmul.f32 %v691, 1.442695
        %v1246 = vpow.pop %v1245
        %v1247 = vmul.f32 %v692, 1.442695
        %v1248 = vpow.pop %v1247
        %v1249 = vmul.f32 %v693, 1.442695
        %v1250 = vpow.pop %v1249
        %v1251 = vmul.f32 %v694, 1.442695
        %v1252 = vpow.pop %v1251
        %v1253 = vmul.f32 %v695, 1.442695
        %v1254 = vpow.pop %v1253
        %v1255 = vmul.f32 %v696, 1.442695
        %v1256 = vpow.pop %v1255
        %v1257 = vmul.f32 %v697, 1.442695
        %v1258 = vpow.pop %v1257
        %v1259 = vmul.f32 %v698, 1.442695
        %v1260 = vpow.pop %v1259
        %v1261 = vmul.f32 %v699, 1.442695
        %v1262 = vpow.pop %v1261
        %v1263 = vmul.f32 %v700, 1.442695
        %v1264 = vpow.pop %v1263
        %v1265 = vmul.f32 %v701, 1.442695
        %v1266 = vpow.pop %v1265
        %v1267 = vmul.f32 %v702, 1.442695
        %v1268 = vpow.pop %v1267
        %v1269 = vmul.f32 %v703, 1.442695
        %v1270 = vpow.pop %v1269
        %v1271 = vmul.f32 %v704, 1.442695
        %v1272 = vpow.pop %v1271
        %v1273 = vmul.f32 %v705, 1.442695
        %v1274 = vpow.pop %v1273
        %v1275 = vmul.f32 %v706, 1.442695
        %v1276 = vpow.pop %v1275
        %v1277 = vmul.f32 %v707, 1.442695
        %v1278 = vpow.pop %v1277
        %v1279 = vmul.f32 %v708, 1.442695
        %v1280 = vpow.pop %v1279
        %v1281 = vmul.f32 %v709, 1.442695
        %v1282 = vpow.pop %v1281
        %v1283 = vmul.f32 %v710, 1.442695
        %v1284 = vpow.pop %v1283
        %v1285 = vmul.f32 %v711, 1.442695
        %v1286 = vpow.pop %v1285
        %v1287 = vmul.f32 %v712, 1.442695
        %v1288 = vpow.pop %v1287
        %v1289 = vmul.f32 %v713, 1.442695
        %v1290 = vpow.pop %v1289
        %v1291 = vmul.f32 %v714, 1.442695
        %v1292 = vpow.pop %v1291
        %v1293 = vmul.f32 %v715, 1.442695
        %v1294 = vpow.pop %v1293
        %v1295 = vmul.f32 %v716, 1.442695
        %v1296 = vpow.pop %v1295
        %v1297 = vmul.f32 %v717, 1.442695
        %v1298 = vpow.pop %v1297
        %v1299 = vmul.f32 %v718, 1.442695
        %v1300 = vpow.pop %v1299
        %v1301 = vmul.f32 %v719, 1.442695
        %v1302 = vpow.pop %v1301
        %v1303 = vmul.f32 %v720, 1.442695
        %v1304 = vpow.pop %v1303
        %v1305 = vmul.f32 %v721, 1.442695
        %v1306 = vpow.pop %v1305
        %v1307 = vmul.f32 %v722, 1.442695
        %v1308 = vpow.pop %v1307
        %v1309 = vmul.f32 %v723, 1.442695
        %v1310 = vpow.pop %v1309
        %v1311 = vmul.f32 %v724, 1.442695
        %v1312 = vpow.pop %v1311
        %v1313 = vmul.f32 %v725, 1.442695
        %v1314 = vpow.pop %v1313
        %v1315 = vmul.f32 %v726, 1.442695
        %v1316 = vpow.pop %v1315
        %v1317 = vmul.f32 %v727, 1.442695
        %v1318 = vpow.pop %v1317
        %v1319 = vmul.f32 %v728, 1.442695
        %v1320 = vpow.pop %v1319
        %v1321 = vmul.f32 %v729, 1.442695
        %v1322 = vpow.pop %v1321
        %v1323 = vmul.f32 %v730, 1.442695
        %v1324 = vpow.pop %v1323
        %v1325 = vmul.f32 %v731, 1.442695
        %v1326 = vpow.pop %v1325
        %v1327 = vmul.f32 %v732, 1.442695
        %v1328 = vpow.pop %v1327
        %v1329 = vmul.f32 %v733, 1.442695
        %v1330 = vpow.pop %v1329
        %v1331 = vmul.f32 %v734, 1.442695
        %v1332 = vpow.pop %v1331
        %v1333 = vmul.f32 %v735, 1.442695
        %v1334 = vpow.pop %v1333
        %v1335 = vmul.f32 %v736, 1.442695
        %v1336 = vpow.pop %v1335
        %v1337 = vmul.f32 %v737, 1.442695
        %v1338 = vpow.pop %v1337
        %v1339 = vmul.f32 %v738, 1.442695
        %v1340 = vpow.pop %v1339
        %v1341 = vmul.f32 %v739, 1.442695
        %v1342 = vpow.pop %v1341
        %v1343 = vmul.f32 %v740, 1.442695
        %v1344 = vpow.pop %v1343
        %v1345 = vmul.f32 %v741, 1.442695
        %v1346 = vpow.pop %v1345
        %v1347 = vmul.f32 %v742, 1.442695
        %v1348 = vpow.pop %v1347
        %v1349 = vmul.f32 %v743, 1.442695
        %v1350 = vpow.pop %v1349
        %v1351 = vmul.f32 %v744, 1.442695
        %v1352 = vpow.pop %v1351
        %v1353 = vmul.f32 %v745, 1.442695
        %v1354 = vpow.pop %v1353
        %v1355 = vmul.f32 %v746, 1.442695
        %v1356 = vpow.pop %v1355
        %v1357 = vmul.f32 %v747, 1.442695
        %v1358 = vpow.pop %v1357
        %v1359 = vmul.f32 %v748, 1.442695
        %v1360 = vpow.pop %v1359
        %v1361 = vmul.f32 %v749, 1.442695
        %v1362 = vpow.pop %v1361
        %v1363 = vmul.f32 %v750, 1.442695
        %v1364 = vpow.pop %v1363
        %v1365 = vmul.f32 %v751, 1.442695
        %v1366 = vpow.pop %v1365
        %v1367 = vmul.f32 %v752, 1.442695
        %v1368 = vpow.pop %v1367
        %v1369 = vmul.f32 %v753, 1.442695
        %v1370 = vpow.pop %v1369
        %v1371 = vmul.f32 %v754, 1.442695
        %v1372 = vpow.pop %v1371
        %v1373 = vmul.f32 %v755, 1.442695
        %v1374 = vpow.pop %v1373
        %v1375 = vmul.f32 %v756, 1.442695
        %v1376 = vpow.pop %v1375
        %v1377 = vmul.f32 %v757, 1.442695
        %v1378 = vpow.pop %v1377
        %v1379 = vmul.f32 %v758, 1.442695
        %v1380 = vpow.pop %v1379
        %v1381 = vmul.f32 %v759, 1.442695
        %v1382 = vpow.pop %v1381
        %v1383 = vmul.f32 %v760, 1.442695
        %v1384 = vpow.pop %v1383
        %v1385 = vmul.f32 %v761, 1.442695
        %v1386 = vpow.pop %v1385
        %v1387 = vmul.f32 %v762, 1.442695
        %v1388 = vpow.pop %v1387
        %v1389 = vmul.f32 %v763, 1.442695
        %v1390 = vpow.pop %v1389
        %v1391 = vmul.f32 %v764, 1.442695
        %v1392 = vpow.pop %v1391
        %v1393 = vmul.f32 %v765, 1.442695
        %v1394 = vpow.pop %v1393
        %v1395 = vmul.f32 %v766, 1.442695
        %v1396 = vpow.pop %v1395
        %v1397 = vmul.f32 %v767, 1.442695
        %v1398 = vpow.pop %v1397
        %v1399 = vmul.f32 %v768, 1.442695
        %v1400 = vpow.pop %v1399
        %v1401 = vmul.f32 %v769, 1.442695
        %v1402 = vpow.pop %v1401
        %v1403 = vmul.f32 %v770, 1.442695
        %v1404 = vpow.pop %v1403
        %v1405 = vmul.f32 %v771, 1.442695
        %v1406 = vpow.pop %v1405
        %v1407 = vmul.f32 %v772, 1.442695
        %v1408 = vpow.pop %v1407
        %v1409 = vmul.f32 %v773, 1.442695
        %v1410 = vpow.pop %v1409
        %v1411 = vmul.f32 %v774, 1.442695
        %v1412 = vpow.pop %v1411
        %v1413 = vmul.f32 %v775, 1.442695
        %v1414 = vpow.pop %v1413
        %v1415 = vmul.f32 %v776, 1.442695
        %v1416 = vpow.pop %v1415
        %v1417 = vmul.f32 %v777, 1.442695
        %v1418 = vpow.pop %v1417
        %v1419 = vmul.f32 %v778, 1.442695
        %v1420 = vpow.pop %v1419
        %v1421 = vmul.f32 %v779, 1.442695
        %v1422 = vpow.pop %v1421
        %v1423 = vmul.f32 %v780, 1.442695
        %v1424 = vpow.pop %v1423
        %v1425 = vmul.f32 %v781, 1.442695
        %v1426 = vpow.pop %v1425
        %v1427 = vmul.f32 %v782, 1.442695
        %v1428 = vpow.pop %v1427
        %v1429 = vmul.f32 %v783, 1.442695
        %v1430 = vpow.pop %v1429
        %v1431 = vmul.f32 %v784, 1.442695
        %v1432 = vpow.pop %v1431
        %v1433 = vmul.f32 %v785, 1.442695
        %v1434 = vpow.pop %v1433
        %v1435 = vmul.f32 %v786, 1.442695
        %v1436 = vpow.pop %v1435
        %v1437 = vmul.f32 %v787, 1.442695
        %v1438 = vpow.pop %v1437
        %v1439 = vmul.f32 %v788, 1.442695
        %v1440 = vpow.pop %v1439
        %v1441 = vmul.f32 %v789, 1.442695
        %v1442 = vpow.pop %v1441
        %v1443 = vmul.f32 %v790, 1.442695
        %v1444 = vpow.pop %v1443
        %v1445 = vmul.f32 %v791, 1.442695
        %v1446 = vpow.pop %v1445
        %v1447 = vmul.f32 %v792, 1.442695
        %v1448 = vpow.pop %v1447
        %v1449 = vmul.f32 %v793, 1.442695
        %v1450 = vpow.pop %v1449
        %v1451 = vmul.f32 %v794, 1.442695
        %v1452 = vpow.pop %v1451
        %v1453 = vmul.f32 %v795, 1.442695
        %v1454 = vpow.pop %v1453
        %v1455 = vmul.f32 %v796, 1.442695
        %v1456 = vpow.pop %v1455
        %v1457 = vmul.f32 %v797, 1.442695
        %v1458 = vpow.pop %v1457
        %v1459 = vmul.f32 %v798, 1.442695
        %v1460 = vpow.pop %v1459
        %v1461 = vmul.f32 %v799, 1.442695
        %v1462 = vpow.pop %v1461
        %v1463 = vmul.f32 %v800, 1.442695
        %v1464 = vpow.pop %v1463
        %v1465 = vmul.f32 %v801, 1.442695
        %v1466 = vpow.pop %v1465
        %v1467 = vmul.f32 %v802, 1.442695
        %v1468 = vpow.pop %v1467
        %v1469 = vmul.f32 %v803, 1.442695
        %v1470 = vpow.pop %v1469
        %v1471 = vmul.f32 %v804, 1.442695
        %v1472 = vpow.pop %v1471
        %v1473 = vmul.f32 %v805, 1.442695
        %v1474 = vpow.pop %v1473
        %v1475 = vmul.f32 %v806, 1.442695
        %v1476 = vpow.pop %v1475
        %v1477 = vmul.f32 %v807, 1.442695
        %v1478 = vpow.pop %v1477
        %v1479 = vmul.f32 %v808, 1.442695
        %v1480 = vpow.pop %v1479
        %v1481 = vmul.f32 %v809, 1.442695
        %v1482 = vpow.pop %v1481
        %v1483 = vmul.f32 %v810, 1.442695
        %v1484 = vpow.pop %v1483
        %v1485 = vmul.f32 %v811, 1.442695
        %v1486 = vpow.pop %v1485
        %v1487 = vmul.f32 %v812, 1.442695
        %v1488 = vpow.pop %v1487
        %v1489 = vmul.f32 %v813, 1.442695
        %v1490 = vpow.pop %v1489
        %v1491 = vmul.f32 %v814, 1.442695
        %v1492 = vpow.pop %v1491
        %v1493 = vmul.f32 %v815, 1.442695
        %v1494 = vpow.pop %v1493
        %v1495 = vmul.f32 %v816, 1.442695
        %v1496 = vpow.pop %v1495
        %v1497 = vmul.f32 %v817, 1.442695
        %v1498 = vpow.pop %v1497
        %v1499 = vmul.f32 %v818, 1.442695
        %v1500 = vpow.pop %v1499
        %v1501 = vmul.f32 %v819, 1.442695
        %v1502 = vpow.pop %v1501
        %v1503 = vmul.f32 %v820, 1.442695
        %v1504 = vpow.pop %v1503
        %v1505 = vmul.f32 %v821, 1.442695
        %v1506 = vpow.pop %v1505
        %v1507 = vmul.f32 %v822, 1.442695
        %v1508 = vpow.pop %v1507
        %v1509 = vmul.f32 %v823, 1.442695
        %v1510 = vpow.pop %v1509
        %v1511 = vmul.f32 %v824, 1.442695
        %v1512 = vpow.pop %v1511
        %v1513 = vmul.f32 %v825, 1.442695
        %v1514 = vpow.pop %v1513
        %v1515 = vmul.f32 %v826, 1.442695
        %v1516 = vpow.pop %v1515
        %v1517 = vmul.f32 %v827, 1.442695
        %v1518 = vpow.pop %v1517
        %v1519 = vmul.f32 %v828, 1.442695
        %v1520 = vpow.pop %v1519
        %v1521 = vmul.f32 %v829, 1.442695
        %v1522 = vpow.pop %v1521
        %v1523 = vmul.f32 %v830, 1.442695
        %v1524 = vpow.pop %v1523
        %v1525 = vmul.f32 %v831, 1.442695
        %v1526 = vpow.pop %v1525
        %v1527 = vmul.f32 %v832, 1.442695
        %v1528 = vpow.pop %v1527
        %v1529 = vmul.f32 %v833, 1.442695
        %v1530 = vpow.pop %v1529
        %v1531 = vmul.f32 %v834, 1.442695
        %v1532 = vpow.pop %v1531
        %v1533 = vmul.f32 %v835, 1.442695
        %v1534 = vpow.pop %v1533
        %v1535 = vmul.f32 %v836, 1.442695
        %v1536 = vpow.pop %v1535
        %v1537 = vmul.f32 %v837, 1.442695
        %v1538 = vpow.pop %v1537
        %v1539 = vmul.f32 %v838, 1.442695
        %v1540 = vpow.pop %v1539
        %v1541 = vmul.f32 %v839, 1.442695
        %v1542 = vpow.pop %v1541
        %v1543 = vmul.f32 %v840, 1.442695
        %v1544 = vpow.pop %v1543
        %v1545 = vmul.f32 %v841, 1.442695
        %v1546 = vpow.pop %v1545
        %v1547 = vmul.f32 %v842, 1.442695
        %v1548 = vpow.pop %v1547
        %v1549 = vmul.f32 %v843, 1.442695
        %v1550 = vpow.pop %v1549
        %v1551 = vmul.f32 %v844, 1.442695
        %v1552 = vpow.pop %v1551
        %v1553 = vmul.f32 %v845, 1.442695
        %v1554 = vpow.pop %v1553
        %v1555 = vmul.f32 %v846, 1.442695
        %v1556 = vpow.pop %v1555
        %v1557 = vmul.f32 %v847, 1.442695
        %v1558 = vpow.pop %v1557
        %v1559 = vmul.f32 %v848, 1.442695
        %v1560 = vpow.pop %v1559
        %v1561 = vmul.f32 %v849, 1.442695
        %v1562 = vpow.pop %v1561
        %v1563 = vmul.f32 %v850, 1.442695
        %v1564 = vpow.pop %v1563
        %v1565 = vmul.f32 %v851, 1.442695
        %v1566 = vpow.pop %v1565
        %v1567 = vmul.f32 %v852, 1.442695
        %v1568 = vpow.pop %v1567
        %v1569 = vmul.f32 %v853, 1.442695
        %v1570 = vpow.pop %v1569
        %v1571 = vmul.f32 %v854, 1.442695
        %v1572 = vpow.pop %v1571
        %v1573 = vmul.f32 %v855, 1.442695
        %v1574 = vpow.pop %v1573
        %v1575 = vmul.f32 %v856, 1.442695
        %v1576 = vpow.pop %v1575
        %v1577 = vmul.f32 %v857, 1.442695
        %v1578 = vpow.pop %v1577
        %v1579 = vmul.f32 %v858, 1.442695
        %v1580 = vpow.pop %v1579
        %v1581 = vmul.f32 %v859, 1.442695
        %v1582 = vpow.pop %v1581
        %v1583 = vmul.f32 %v860, 1.442695
        %v1584 = vpow.pop %v1583
        %v1585 = vmul.f32 %v861, 1.442695
        %v1586 = vpow.pop %v1585
        %v1587 = vmul.f32 %v862, 1.442695
        %v1588 = vpow.pop %v1587
        %v1589 = vmul.f32 %v863, 1.442695
        %v1590 = vpow.pop %v1589
        %v1591 = vmul.f32 %v864, 1.442695
        %v1592 = vpow.pop %v1591
        %v1593 = vmul.f32 %v865, 1.442695
        %v1594 = vpow.pop %v1593
        %v1595 = vmul.f32 %v866, 1.442695
        %v1596 = vpow.pop %v1595
        %v1597 = vmul.f32 %v867, 1.442695
        %v1598 = vpow.pop %v1597
        %v1599 = vmul.f32 %v868, 1.442695
        %v1600 = vpow.pop %v1599
        %v1601 = vmul.f32 %v869, 1.442695
        %v1602 = vpow.pop %v1601
        %v1603 = vmul.f32 %v870, 1.442695
        %v1604 = vpow.pop %v1603
        %v1605 = vmul.f32 %v871, 1.442695
        %v1606 = vpow.pop %v1605
        %v1607 = vmul.f32 %v872, 1.442695
        %v1608 = vpow.pop %v1607
        %v1609 = vmul.f32 %v873, 1.442695
        %v1610 = vpow.pop %v1609
        %v1611 = vmul.f32 %v874, 1.442695
        %v1612 = vpow.pop %v1611
        %v1613 = vmul.f32 %v875, 1.442695
        %v1614 = vpow.pop %v1613
        %v1615 = vmul.f32 %v876, 1.442695
        %v1616 = vpow.pop %v1615
        %v1617 = vmul.f32 %v877, 1.442695
        %v1618 = vpow.pop %v1617
        %v1619 = vmul.f32 %v878, 1.442695
        %v1620 = vpow.pop %v1619
        %v1621 = vmul.f32 %v879, 1.442695
        %v1622 = vpow.pop %v1621
        %v1623 = vmul.f32 %v880, 1.442695
        %v1624 = vpow.pop %v1623
        %v1625 = vmul.f32 %v881, 1.442695
        %v1626 = vpow.pop %v1625
        %v1627 = vmul.f32 %v882, 1.442695
        %v1628 = vpow.pop %v1627
        %v1629 = vmul.f32 %v883, 1.442695
        %v1630 = vpow.pop %v1629
        %v1631 = vmul.f32 %v884, 1.442695
        %v1632 = vpow.pop %v1631
        %v1633 = vmul.f32 %v885, 1.442695
        %v1634 = vpow.pop %v1633
        %v1635 = vmul.f32 %v886, 1.442695
        %v1636 = vpow.pop %v1635
        %v1637 = vmul.f32 %v887, 1.442695
        %v1638 = vpow.pop %v1637
        %v1639 = vmul.f32 %v888, 1.442695
        %v1640 = vpow.pop %v1639
        %v1641 = vmul.f32 %v889, 1.442695
        %v1642 = vpow.pop %v1641
        %v1643 = vmul.f32 %v890, 1.442695
        %v1644 = vpow.pop %v1643
        %v1645 = vmul.f32 %v891, 1.442695
        %v1646 = vpow.pop %v1645
        %v1647 = vmul.f32 %v892, 1.442695
        %v1648 = vpow.pop %v1647
        %v1649 = vmul.f32 %v893, 1.442695
        %v1650 = vpow.pop %v1649
        %v1651 = vmul.f32 %v894, 1.442695
        %v1652 = vpow.pop %v1651
        %v1653 = vmul.f32 %v895, 1.442695
        %v1654 = vpow.pop %v1653
        %v1655 = vmul.f32 %v896, 1.442695
        %v1656 = vpow.pop %v1655
        %v1657 = vmul.f32 %v897, 1.442695
        %v1658 = vpow.pop %v1657
        %v1659 = vmul.f32 %v898, 1.442695
        %v1660 = vpow.pop %v1659
        %v1661 = vmul.f32 %v899, 1.442695
        %v1662 = vpow.pop %v1661
        %v1663 = vmul.f32 %v900, 1.442695
        %v1664 = vpow.pop %v1663
        %v1665 = vmul.f32 %v901, 1.442695
        %v1666 = vpow.pop %v1665
        %v1667 = vmul.f32 %v902, 1.442695
        %v1668 = vpow.pop %v1667
        %v1669 = vmul.f32 %v903, 1.442695
        %v1670 = vpow.pop %v1669
        %v1671 = vmul.f32 %v904, 1.442695
        %v1672 = vpow.pop %v1671
        %v1673 = vmul.f32 %v905, 1.442695
        %v1674 = vpow.pop %v1673
        %v1675 = vmul.f32 %v906, 1.442695
        %v1676 = vpow.pop %v1675
        %v1677 = vmul.f32 %v907, 1.442695
        %v1678 = vpow.pop %v1677
        %v1679 = vmul.f32 %v908, 1.442695
        %v1680 = vpow.pop %v1679
        %v1681 = vmul.f32 %v909, 1.442695
        %v1682 = vpow.pop %v1681
        %v1683 = vmul.f32 %v910, 1.442695
        %v1684 = vpow.pop %v1683
        %v1685 = vmul.f32 %v911, 1.442695
        %v1686 = vpow.pop %v1685
        %v1687 = vmul.f32 %v912, 1.442695
        %v1688 = vpow.pop %v1687
        %v1689 = vmul.f32 %v913, 1.442695
        %v1690 = vpow.pop %v1689
        %v1691 = vmul.f32 %v914, 1.442695
        %v1692 = vpow.pop %v1691
        %v1693 = vmul.f32 %v915, 1.442695
        %v1694 = vpow.pop %v1693
        %v1695 = vmul.f32 %v916, 1.442695
        %v1696 = vpow.pop %v1695
        %v1697 = vmul.f32 %v917, 1.442695
        %v1698 = vpow.pop %v1697
        %v1699 = vmul.f32 %v918, 1.442695
        %v1700 = vpow.pop %v1699
        %v1701 = vmul.f32 %v919, 1.442695
        %v1702 = vpow.pop %v1701
        %v1703 = vmul.f32 %v920, 1.442695
        %v1704 = vpow.pop %v1703
        %v1705 = vmul.f32 %v921, 1.442695
        %v1706 = vpow.pop %v1705
        %v1707 = vmul.f32 %v922, 1.442695
        %v1708 = vpow.pop %v1707
        %v1709 = vmul.f32 %v923, 1.442695
        %v1710 = vpow.pop %v1709
        %v1711 = vmul.f32 %v924, 1.442695
        %v1712 = vpow.pop %v1711
        %v1713 = vmul.f32 %v925, 1.442695
        %v1714 = vpow.pop %v1713
        %v1715 = vmul.f32 %v926, 1.442695
        %v1716 = vpow.pop %v1715
        %v1717 = vmul.f32 %v927, 1.442695
        %v1718 = vpow.pop %v1717
        %v1719 = vmul.f32 %v928, 1.442695
        %v1720 = vpow.pop %v1719
        %v1721 = vmul.f32 %v929, 1.442695
        %v1722 = vpow.pop %v1721
        %v1723 = vmul.f32 %v930, 1.442695
        %v1724 = vpow.pop %v1723
        %v1725 = vmul.f32 %v931, 1.442695
        %v1726 = vpow.pop %v1725
        %v1727 = vmul.f32 %v932, 1.442695
        %v1728 = vpow.pop %v1727
        %v1729 = vmul.f32 %v933, 1.442695
        %v1730 = vpow.pop %v1729
        %v1731 = vmul.f32 %v934, 1.442695
        %v1732 = vpow.pop %v1731
        %v1733 = vmul.f32 %v935, 1.442695
        %v1734 = vpow.pop %v1733
        %v1735 = vmul.f32 %v936, 1.442695
        %v1736 = vpow.pop %v1735
        %v1737 = vmul.f32 %v937, 1.442695
        %v1738 = vpow.pop %v1737
        %v1739 = vmul.f32 %v938, 1.442695
        %v1740 = vpow.pop %v1739
        %v1741 = vmul.f32 %v939, 1.442695
        %v1742 = vpow.pop %v1741
        %v1743 = vmul.f32 %v940, 1.442695
        %v1744 = vpow.pop %v1743
        %v1745 = vmul.f32 %v941, 1.442695
        %v1746 = vpow.pop %v1745
        %v1747 = vmul.f32 %v942, 1.442695
        %v1748 = vpow.pop %v1747
        %v1749 = vmul.f32 %v943, 1.442695
        %v1750 = vpow.pop %v1749
        %v1751 = vmul.f32 %v944, 1.442695
        %v1752 = vpow.pop %v1751
        %v1753 = vmul.f32 %v945, 1.442695
        %v1754 = vpow.pop %v1753
        %v1755 = vmul.f32 %v946, 1.442695
        %v1756 = vpow.pop %v1755
        %v1757 = vmul.f32 %v947, 1.442695
        %v1758 = vpow.pop %v1757
        %v1759 = vmul.f32 %v948, 1.442695
        %v1760 = vpow.pop %v1759
        %v1761 = vmul.f32 %v949, 1.442695
        %v1762 = vpow.pop %v1761
        %v1763 = vmul.f32 %v950, 1.442695
        %v1764 = vpow.pop %v1763
        %v1765 = vmul.f32 %v951, 1.442695
        %v1766 = vpow.pop %v1765
        %v1767 = vmul.f32 %v952, 1.442695
        %v1768 = vpow.pop %v1767
        %v1769 = vmul.f32 %v953, 1.442695
        %v1770 = vpow.pop %v1769
        %v1771 = vmul.f32 %v954, 1.442695
        %v1772 = vpow.pop %v1771
        %v1773 = vmul.f32 %v955, 1.442695
        %v1774 = vpow.pop %v1773
        %v1775 = vmul.f32 %v956, 1.442695
        %v1776 = vpow.pop %v1775
        %v1777 = vmul.f32 %v957, 1.442695
        %v1778 = vpow.pop %v1777
        %v1779 = vmul.f32 %v958, 1.442695
        %v1780 = vpow.pop %v1779
        %v1781 = vmul.f32 %v959, 1.442695
        %v1782 = vpow.pop %v1781
        %v1783 = vmul.f32 %v960, 1.442695
        %v1784 = vpow.pop %v1783
        %v1785 = vmul.f32 %v961, 1.442695
        %v1786 = vpow.pop %v1785
        %v1787 = vmul.f32 %v962, 1.442695
        %v1788 = vpow.pop %v1787
        %v1789 = vmul.f32 %v963, 1.442695
        %v1790 = vpow.pop %v1789
        %v1791 = vmul.f32 %v964, 1.442695
        %v1792 = vpow.pop %v1791
        %v1793 = vmul.f32 %v965, 1.442695
        %v1794 = vpow.pop %v1793
        %v1795 = vmul.f32 %v966, 1.442695
        %v1796 = vpow.pop %v1795
        %v1797 = vmul.f32 %v967, 1.442695
        %v1798 = vpow.pop %v1797
        %v1799 = vmul.f32 %v968, 1.442695
        %v1800 = vpow.pop %v1799
        %v1801 = vmul.f32 %v969, 1.442695
        %v1802 = vpow.pop %v1801
        %v1803 = vmul.f32 %v970, 1.442695
        %v1804 = vpow.pop %v1803
        %v1805 = vmul.f32 %v971, 1.442695
        %v1806 = vpow.pop %v1805
        %v1807 = vmul.f32 %v972, 1.442695
        %v1808 = vpow.pop %v1807
        %v1809 = vmul.f32 %v973, 1.442695
        %v1810 = vpow.pop %v1809
        %v1811 = vmul.f32 %v974, 1.442695
        %v1812 = vpow.pop %v1811
        %v1813 = vmul.f32 %v975, 1.442695
        %v1814 = vpow.pop %v1813
        %v1815 = vmul.f32 %v976, 1.442695
        %v1816 = vpow.pop %v1815
        %v1817 = vmul.f32 %v977, 1.442695
        %v1818 = vpow.pop %v1817
        %v1819 = vmul.f32 %v978, 1.442695
        %v1820 = vpow.pop %v1819
        %v1821 = vmul.f32 %v979, 1.442695
        %v1822 = vpow.pop %v1821
        %v1823 = vmul.f32 %v980, 1.442695
        %v1824 = vpow.pop %v1823
        %v1825 = vmul.f32 %v981, 1.442695
        %v1826 = vpow.pop %v1825
        %v1827 = vmul.f32 %v982, 1.442695
        %v1828 = vpow.pop %v1827
        %v1829 = vmul.f32 %v983, 1.442695
        %v1830 = vpow.pop %v1829
        %v1831 = vmul.f32 %v984, 1.442695
        %v1832 = vpow.pop %v1831
        %v1833 = vmul.f32 %v985, 1.442695
        %v1834 = vpow.pop %v1833
        %v1835 = vmul.f32 %v986, 1.442695
        %v1836 = vpow.pop %v1835
        %v1837 = vmul.f32 %v987, 1.442695
        %v1838 = vpow.pop %v1837
        %v1839 = vmul.f32 %v988, 1.442695
        %v1840 = vpow.pop %v1839
        %v1841 = vmul.f32 %v989, 1.442695
        %v1842 = vpow.pop %v1841
        %v1843 = vmul.f32 %v990, 1.442695
        %v1844 = vpow.pop %v1843
        %v1845 = vmul.f32 %v991, 1.442695
        %v1846 = vpow.pop %v1845
        %v1847 = vmul.f32 %v992, 1.442695
        %v1848 = vpow.pop %v1847
        %v1849 = vmul.f32 %v993, 1.442695
        %v1850 = vpow.pop %v1849
        %v1851 = vmul.f32 %v994, 1.442695
        %v1852 = vpow.pop %v1851
        %v1853 = vmul.f32 %v995, 1.442695
        %v1854 = vpow.pop %v1853
        %v1855 = vmul.f32 %v996, 1.442695
        %v1856 = vpow.pop %v1855
        %v1857 = vmul.f32 %v997, 1.442695
        %v1858 = vpow.pop %v1857
        %v1859 = vmul.f32 %v998, 1.442695
        %v1860 = vpow.pop %v1859
        %v1861 = vmul.f32 %v999, 1.442695
        %v1862 = vpow.pop %v1861
        %v1863 = vmul.f32 %v1000, 1.442695
        %v1864 = vpow.pop %v1863
        %v1865 = vmul.f32 %v1001, 1.442695
        %v1866 = vpow.pop %v1865
        %v1867 = vmul.f32 %v1002, 1.442695
        %v1868 = vpow.pop %v1867
        %v1869 = vmul.f32 %v1003, 1.442695
        %v1870 = vpow.pop %v1869
        %v1871 = vmul.f32 %v1004, 1.442695
        %v1872 = vpow.pop %v1871
        %v1873 = vmul.f32 %v1005, 1.442695
        %v1874 = vpow.pop %v1873
        %v1875 = vmul.f32 %v1006, 1.442695
        %v1876 = vpow.pop %v1875
        %v1877 = vmul.f32 %v1007, 1.442695
        %v1878 = vpow.pop %v1877
        %v1879 = vmul.f32 %v1008, 1.442695
        %v1880 = vpow.pop %v1879
        %v1881 = vmul.f32 %v1009, 1.442695
        %v1882 = vpow.pop %v1881
        %v1883 = vmul.f32 %v1010, 1.442695
        %v1884 = vpow.pop %v1883
        %v1885 = vmul.f32 %v1011, 1.442695
        %v1886 = vpow.pop %v1885
        %v1887 = vmul.f32 %v1012, 1.442695
        %v1888 = vpow.pop %v1887
        %v1889 = vmul.f32 %v1013, 1.442695
        %v1890 = vpow.pop %v1889
        %v1891 = vmul.f32 %v1014, 1.442695
        %v1892 = vpow.pop %v1891
        %v1893 = vmul.f32 %v1015, 1.442695
        %v1894 = vpow.pop %v1893
        %v1895 = vmul.f32 %v1016, 1.442695
        %v1896 = vpow.pop %v1895
        %v1897 = vmul.f32 %v1017, 1.442695
        %v1898 = vpow.pop %v1897
        %v1899 = vmul.f32 %v1018, 1.442695
        %v1900 = vpow.pop %v1899
        %v1901 = vmul.f32 %v1019, 1.442695
        %v1902 = vpow.pop %v1901
        %v1903 = vmul.f32 %v1020, 1.442695
        %v1904 = vpow.pop %v1903
        %v1905 = vmul.f32 %v1021, 1.442695
        %v1906 = vpow.pop %v1905
        %v1907 = vmul.f32 %v1022, 1.442695
        %v1908 = vpow.pop %v1907
        %v1909 = vmul.f32 %v1023, 1.442695
        %v1910 = vpow.pop %v1909
        %v1911 = vmul.f32 %v1024, 1.442695
        %v1912 = vpow.pop %v1911
        %v1913 = vmul.f32 %v1025, 1.442695
        %v1914 = vpow.pop %v1913
        %v1915 = vmul.f32 %v1026, 1.442695
        %v1916 = vpow.pop %v1915
        %v1917 = vmul.f32 %v1027, 1.442695
        %v1918 = vpow.pop %v1917
        %v1919 = vmul.f32 %v1028, 1.442695
        %v1920 = vpow.pop %v1919
        %v1921 = vmul.f32 %v1029, 1.442695
        %v1922 = vpow.pop %v1921
        %v1923 = vmul.f32 %v1030, 1.442695
        %v1924 = vpow.pop %v1923
        %v1925 = vmul.f32 %v1031, 1.442695
        %v1926 = vpow.pop %v1925
        %v1927 = vmul.f32 %v1032, 1.442695
        %v1928 = vpow.pop %v1927
        %v1929 = vmul.f32 %v1033, 1.442695
        %v1930 = vpow.pop %v1929
        %v1931 = vmul.f32 %v1034, 1.442695
        %v1932 = vpow.pop %v1931
        %v1933 = vmul.f32 %v1035, 1.442695
        %v1934 = vpow.pop %v1933
        %v1935 = vmul.f32 %v1036, 1.442695
        %v1936 = vpow.pop %v1935
        %v1937 = vmul.f32 %v1037, 1.442695
        %v1938 = vpow.pop %v1937
        %v1939 = vmul.f32 %v1038, 1.442695
        %v1940 = vpow.pop %v1939
        %v1941 = vmul.f32 %v1039, 1.442695
        %v1942 = vpow.pop %v1941
        %v1943 = vmul.f32 %v1040, 1.442695
        %v1944 = vpow.pop %v1943
        %v1945 = vmul.f32 %v1041, 1.442695
        %v1946 = vpow.pop %v1945
        %v1947 = vmul.f32 %v1042, 1.442695
        %v1948 = vpow.pop %v1947
        %v1949 = vmul.f32 %v1043, 1.442695
        %v1950 = vpow.pop %v1949
        %v1951 = vmul.f32 %v1044, 1.442695
        %v1952 = vpow.pop %v1951
        %v1953 = vmul.f32 %v1045, 1.442695
        %v1954 = vpow.pop %v1953
        %v1955 = vmul.f32 %v1046, 1.442695
        %v1956 = vpow.pop %v1955
        %v1957 = vmul.f32 %v1047, 1.442695
        %v1958 = vpow.pop %v1957
        %v1959 = vmul.f32 %v1048, 1.442695
        %v1960 = vpow.pop %v1959
        %v1961 = vmul.f32 %v1049, 1.442695
        %v1962 = vpow.pop %v1961
        %v1963 = vmul.f32 %v1050, 1.442695
        %v1964 = vpow.pop %v1963
        %v1965 = vmul.f32 %v1051, 1.442695
        %v1966 = vpow.pop %v1965
        %v1967 = vmul.f32 %v1052, 1.442695
        %v1968 = vpow.pop %v1967
        %v1969 = vmul.f32 %v1053, 1.442695
        %v1970 = vpow.pop %v1969
        %v1971 = vmul.f32 %v1054, 1.442695
        %v1972 = vpow.pop %v1971
        %v1973 = vmul.f32 %v1055, 1.442695
        %v1974 = vpow.pop %v1973
        %v1975 = vmul.f32 %v1056, 1.442695
        %v1976 = vpow.pop %v1975
        %v1977 = vmul.f32 %v1057, 1.442695
        %v1978 = vpow.pop %v1977
        %v1979 = vmul.f32 %v1058, 1.442695
        %v1980 = vpow.pop %v1979
        %v1981 = vmul.f32 %v1059, 1.442695
        %v1982 = vpow.pop %v1981
        %v1983 = vmul.f32 %v1060, 1.442695
        %v1984 = vpow.pop %v1983
        %v1985 = vmul.f32 %v1061, 1.442695
        %v1986 = vpow.pop %v1985
        %v1987 = vmul.f32 %v1062, 1.442695
        %v1988 = vpow.pop %v1987
        %v1989 = vmul.f32 %v1063, 1.442695
        %v1990 = vpow.pop %v1989
        %v1991 = vmul.f32 %v1064, 1.442695
        %v1992 = vpow.pop %v1991
        %v1993 = vmul.f32 %v1065, 1.442695
        %v1994 = vpow.pop %v1993
        %v1995 = vmul.f32 %v1066, 1.442695
        %v1996 = vpow.pop %v1995
        %v1997 = vmul.f32 %v1067, 1.442695
        %v1998 = vpow.pop %v1997
        %v1999 = vmul.f32 %v1068, 1.442695
        %v2000 = vpow.pop %v1999
        %v2001 = vmul.f32 %v1069, 1.442695
        %v2002 = vpow.pop %v2001
        %v2003 = vmul.f32 %v1070, 1.442695
        %v2004 = vpow.pop %v2003
        %v2005 = vmul.f32 %v1071, 1.442695
        %v2006 = vpow.pop %v2005
        %v2007 = vmul.f32 %v1072, 1.442695
        %v2008 = vpow.pop %v2007
        %v2009 = vmul.f32 %v1073, 1.442695
        %v2010 = vpow.pop %v2009
        %v2011 = vmul.f32 %v1074, 1.442695
        %v2012 = vpow.pop %v2011
        %v2013 = vmul.f32 %v1075, 1.442695
        %v2014 = vpow.pop %v2013
        %v2015 = vmul.f32 %v1076, 1.442695
        %v2016 = vpow.pop %v2015
        %v2017 = vmul.f32 %v1077, 1.442695
        %v2018 = vpow.pop %v2017
        %v2019 = vmul.f32 %v1078, 1.442695
        %v2020 = vpow.pop %v2019
        %v2021 = vmul.f32 %v1079, 1.442695
        %v2022 = vpow.pop %v2021
        %v2023 = vmul.f32 %v1080, 1.442695
        %v2024 = vpow.pop %v2023
        %v2025 = vmul.f32 %v1081, 1.442695
        %v2026 = vpow.pop %v2025
        %v2027 = vmul.f32 %v1082, 1.442695
        %v2028 = vpow.pop %v2027
        %v2029 = vmul.f32 %v1083, 1.442695
        %v2030 = vpow.pop %v2029
        %v2031 = vmul.f32 %v1084, 1.442695
        %v2032 = vpow.pop %v2031
        %v2033 = vmul.f32 %v1085, 1.442695
        %v2034 = vpow.pop %v2033
        %v2035 = vmul.f32 %v1086, 1.442695
        %v2036 = vpow.pop %v2035
        %v2037 = vmul.f32 %v1087, 1.442695
        %v2038 = vpow.pop %v2037
        %v2039 = vmul.f32 %v1088, 1.442695
        %v2040 = vpow.pop %v2039
        %v2041 = vmul.f32 %v1089, 1.442695
        %v2042 = vpow.pop %v2041
        %v2043 = vmul.f32 %v1090, 1.442695
        %v2044 = vpow.pop %v2043
        %v2045 = vmul.f32 %v1091, 1.442695
        %v2046 = vpow.pop %v2045
        %v2047 = vmul.f32 %v1092, 1.442695
        %v2048 = vpow.pop %v2047
        %v2049 = vmul.f32 %v1093, 1.442695
        %v2050 = vpow.pop %v2049
        %v2051 = vmul.f32 %v1094, 1.442695
        %v2052 = vpow.pop %v2051
        %v2053 = vmul.f32 %v1095, 1.442695
        %v2054 = vpow.pop %v2053
        %v2055 = vmul.f32 %v1096, 1.442695
        %v2056 = vpow.pop %v2055
        %v2057 = vmul.f32 %v1097, 1.442695
        %v2058 = vpow.pop %v2057
        %v2059 = vmul.f32 %v1098, 1.442695
        %v2060 = vpow.pop %v2059
        %v2061 = vmul.f32 %v1099, 1.442695
        %v2062 = vpow.pop %v2061
        %v2063 = vmul.f32 %v1100, 1.442695
        %v2064 = vpow.pop %v2063
        %v2065 = vmul.f32 %v1101, 1.442695
        %v2066 = vpow.pop %v2065
        %v2067 = vmul.f32 %v1102, 1.442695
        %v2068 = vpow.pop %v2067
        %v2069 = vmul.f32 %v1103, 1.442695
        %v2070 = vpow.pop %v2069
        %v2071 = vmul.f32 %v1104, 1.442695
        %v2072 = vpow.pop %v2071
        %v2073 = vmul.f32 %v1105, 1.442695
        %v2074 = vpow.pop %v2073
        %v2075 = vmul.f32 %v1106, 1.442695
        %v2076 = vpow.pop %v2075
        %v2077 = vmul.f32 %v1107, 1.442695
        %v2078 = vpow.pop %v2077
        %v2079 = vmul.f32 %v1108, 1.442695
        %v2080 = vpow.pop %v2079
        %v2081 = vmul.f32 %v1109, 1.442695
        %v2082 = vpow.pop %v2081
        %v2083 = vmul.f32 %v1110, 1.442695
        %v2084 = vpow.pop %v2083
        %v2085 = vmul.f32 %v1111, 1.442695
        %v2086 = vpow.pop %v2085
        %v2087 = vmul.f32 %v1112, 1.442695
        %v2088 = vpow.pop %v2087
        %v2089 = vmul.f32 %v1113, 1.442695
        %v2090 = vpow.pop %v2089
        %v2091 = vmul.f32 %v1114, 1.442695
        %v2092 = vpow.pop %v2091
        %v2093 = vmul.f32 %v1115, 1.442695
        %v2094 = vpow.pop %v2093
        %v2095 = vmul.f32 %v1116, 1.442695
        %v2096 = vpow.pop %v2095
        %v2097 = vmul.f32 %v1117, 1.442695
        %v2098 = vpow.pop %v2097
        %v2099 = vmul.f32 %v1118, 1.442695
        %v2100 = vpow.pop %v2099
        %v2101 = vmul.f32 %v1119, 1.442695
        %v2102 = vpow.pop %v2101
        %v2103 = vmul.f32 %v1120, 1.442695
        %v2104 = vpow.pop %v2103
        %v2105 = vmul.f32 %v1121, 1.442695
        %v2106 = vpow.pop %v2105
        %v2107 = vmul.f32 %v1122, 1.442695
        %v2108 = vpow.pop %v2107
        %v2109 = vmul.f32 %v1123, 1.442695
        %v2110 = vpow.pop %v2109
        %v2111 = vmul.f32 %v1124, 1.442695
        %v2112 = vpow.pop %v2111
        %v2113 = vmul.f32 %v1125, 1.442695
        %v2114 = vpow.pop %v2113
        %v2115 = vmul.f32 %v1126, 1.442695
        %v2116 = vpow.pop %v2115
        %v2117 = vmul.f32 %v1127, 1.442695
        %v2118 = vpow.pop %v2117
        %v2119 = vmul.f32 %v1128, 1.442695
        %v2120 = vpow.pop %v2119
        %v2121 = vmul.f32 %v1129, 1.442695
        %v2122 = vpow.pop %v2121
        %v2123 = vmul.f32 %v1130, 1.442695
        %v2124 = vpow.pop %v2123
        %v2125 = vmul.f32 %v1131, 1.442695
        %v2126 = vpow.pop %v2125
        %v2127 = vmul.f32 %v1132, 1.442695
        %v2128 = vpow.pop %v2127
        %v2129 = vmul.f32 %v1133, 1.442695
        %v2130 = vpow.pop %v2129
        %v2131 = vmul.f32 %v1134, 1.442695
        %v2132 = vpow.pop %v2131
        %v2133 = vmul.f32 %v1135, 1.442695
        %v2134 = vpow.pop %v2133
        %v2135 = vmul.f32 %v1136, 1.442695
        %v2136 = vpow.pop %v2135
        %v2137 = vmul.f32 %v1137, 1.442695
        %v2138 = vpow.pop %v2137
        %v2139 = vmul.f32 %v1138, 1.442695
        %v2140 = vpow.pop %v2139
        %v2141 = vmul.f32 %v1139, 1.442695
        %v2142 = vpow.pop %v2141
        %v2143 = vmul.f32 %v1140, 1.442695
        %v2144 = vpow.pop %v2143
        %v2145 = vmul.f32 %v1141, 1.442695
        %v2146 = vpow.pop %v2145
        %v2147 = vmul.f32 %v1142, 1.442695
        %v2148 = vpow.pop %v2147
        %v2149 = vmul.f32 %v1143, 1.442695
        %v2150 = vpow.pop %v2149
        %v2151 = vmul.f32 %v1144, 1.442695
        %v2152 = vpow.pop %v2151
        %v2153 = vmul.f32 %v1145, 1.442695
        %v2154 = vpow.pop %v2153
        %v2155 = vmul.f32 %v1146, 1.442695
        %v2156 = vpow.pop %v2155
        %v2157 = vmul.f32 %v1147, 1.442695
        %v2158 = vpow.pop %v2157
        %v2159 = vmul.f32 %v1148, 1.442695
        %v2160 = vpow.pop %v2159
        %v2161 = vmul.f32 %v1149, 1.442695
        %v2162 = vpow.pop %v2161
        %v2163 = vmul.f32 %v1150, 1.442695
        %v2164 = vpow.pop %v2163
        %v2165 = vmul.f32 %v1151, 1.442695
        %v2166 = vpow.pop %v2165
        %v2167 = vmul.f32 %v1152, 1.442695
        %v2168 = vpow.pop %v2167
        %v2169 = vmul.f32 %v1153, 1.442695
        %v2170 = vpow.pop %v2169
        %v2171 = vmul.f32 %v1154, 1.442695
        %v2172 = vpow.pop %v2171
        %v2173 = vmul.f32 %v1155, 1.442695
        %v2174 = vpow.pop %v2173
        %v2175 = vmul.f32 %v1156, 1.442695
        %v2176 = vpow.pop %v2175
        %v2177 = vmul.f32 %v1157, 1.442695
        %v2178 = vpow.pop %v2177
        %v2179 = vmul.f32 %v1158, 1.442695
        %v2180 = vpow.pop %v2179
        %v2181 = vmul.f32 %v1159, 1.442695
        %v2182 = vpow.pop %v2181
        %v2183 = vmul.f32 %v1160, 1.442695
        %v2184 = vpow.pop %v2183
        %v2185 = vadd.f32 %v1162, 1.0
        %v2186 = vadd.f32 %v1164, 1.0
        %v2187 = vadd.f32 %v1166, 1.0
        %v2188 = vadd.f32 %v1168, 1.0
        %v2189 = vadd.f32 %v1170, 1.0
        %v2190 = vadd.f32 %v1172, 1.0
        %v2191 = vadd.f32 %v1174, 1.0
        %v2192 = vadd.f32 %v1176, 1.0
        %v2193 = vadd.f32 %v1178, 1.0
        %v2194 = vadd.f32 %v1180, 1.0
        %v2195 = vadd.f32 %v1182, 1.0
        %v2196 = vadd.f32 %v1184, 1.0
        %v2197 = vadd.f32 %v1186, 1.0
        %v2198 = vadd.f32 %v1188, 1.0
        %v2199 = vadd.f32 %v1190, 1.0
        %v2200 = vadd.f32 %v1192, 1.0
        %v2201 = vadd.f32 %v1194, 1.0
        %v2202 = vadd.f32 %v1196, 1.0
        %v2203 = vadd.f32 %v1198, 1.0
        %v2204 = vadd.f32 %v1200, 1.0
        %v2205 = vadd.f32 %v1202, 1.0
        %v2206 = vadd.f32 %v1204, 1.0
        %v2207 = vadd.f32 %v1206, 1.0
        %v2208 = vadd.f32 %v1208, 1.0
        %v2209 = vadd.f32 %v1210, 1.0
        %v2210 = vadd.f32 %v1212, 1.0
        %v2211 = vadd.f32 %v1214, 1.0
        %v2212 = vadd.f32 %v1216, 1.0
        %v2213 = vadd.f32 %v1218, 1.0
        %v2214 = vadd.f32 %v1220, 1.0
        %v2215 = vadd.f32 %v1222, 1.0
        %v2216 = vadd.f32 %v1224, 1.0
        %v2217 = vadd.f32 %v1226, 1.0
        %v2218 = vadd.f32 %v1228, 1.0
        %v2219 = vadd.f32 %v1230, 1.0
        %v2220 = vadd.f32 %v1232, 1.0
        %v2221 = vadd.f32 %v1234, 1.0
        %v2222 = vadd.f32 %v1236, 1.0
        %v2223 = vadd.f32 %v1238, 1.0
        %v2224 = vadd.f32 %v1240, 1.0
        %v2225 = vadd.f32 %v1242, 1.0
        %v2226 = vadd.f32 %v1244, 1.0
        %v2227 = vadd.f32 %v1246, 1.0
        %v2228 = vadd.f32 %v1248, 1.0
        %v2229 = vadd.f32 %v1250, 1.0
        %v2230 = vadd.f32 %v1252, 1.0
        %v2231 = vadd.f32 %v1254, 1.0
        %v2232 = vadd.f32 %v1256, 1.0
        %v2233 = vadd.f32 %v1258, 1.0
        %v2234 = vadd.f32 %v1260, 1.0
        %v2235 = vadd.f32 %v1262, 1.0
        %v2236 = vadd.f32 %v1264, 1.0
        %v2237 = vadd.f32 %v1266, 1.0
        %v2238 = vadd.f32 %v1268, 1.0
        %v2239 = vadd.f32 %v1270, 1.0
        %v2240 = vadd.f32 %v1272, 1.0
        %v2241 = vadd.f32 %v1274, 1.0
        %v2242 = vadd.f32 %v1276, 1.0
        %v2243 = vadd.f32 %v1278, 1.0
        %v2244 = vadd.f32 %v1280, 1.0
        %v2245 = vadd.f32 %v1282, 1.0
        %v2246 = vadd.f32 %v1284, 1.0
        %v2247 = vadd.f32 %v1286, 1.0
        %v2248 = vadd.f32 %v1288, 1.0
        %v2249 = vadd.f32 %v1290, 1.0
        %v2250 = vadd.f32 %v1292, 1.0
        %v2251 = vadd.f32 %v1294, 1.0
        %v2252 = vadd.f32 %v1296, 1.0
        %v2253 = vadd.f32 %v1298, 1.0
        %v2254 = vadd.f32 %v1300, 1.0
        %v2255 = vadd.f32 %v1302, 1.0
        %v2256 = vadd.f32 %v1304, 1.0
        %v2257 = vadd.f32 %v1306, 1.0
        %v2258 = vadd.f32 %v1308, 1.0
        %v2259 = vadd.f32 %v1310, 1.0
        %v2260 = vadd.f32 %v1312, 1.0
        %v2261 = vadd.f32 %v1314, 1.0
        %v2262 = vadd.f32 %v1316, 1.0
        %v2263 = vadd.f32 %v1318, 1.0
        %v2264 = vadd.f32 %v1320, 1.0
        %v2265 = vadd.f32 %v1322, 1.0
        %v2266 = vadd.f32 %v1324, 1.0
        %v2267 = vadd.f32 %v1326, 1.0
        %v2268 = vadd.f32 %v1328, 1.0
        %v2269 = vadd.f32 %v1330, 1.0
        %v2270 = vadd.f32 %v1332, 1.0
        %v2271 = vadd.f32 %v1334, 1.0
        %v2272 = vadd.f32 %v1336, 1.0
        %v2273 = vadd.f32 %v1338, 1.0
        %v2274 = vadd.f32 %v1340, 1.0
        %v2275 = vadd.f32 %v1342, 1.0
        %v2276 = vadd.f32 %v1344, 1.0
        %v2277 = vadd.f32 %v1346, 1.0
        %v2278 = vadd.f32 %v1348, 1.0
        %v2279 = vadd.f32 %v1350, 1.0
        %v2280 = vadd.f32 %v1352, 1.0
        %v2281 = vadd.f32 %v1354, 1.0
        %v2282 = vadd.f32 %v1356, 1.0
        %v2283 = vadd.f32 %v1358, 1.0
        %v2284 = vadd.f32 %v1360, 1.0
        %v2285 = vadd.f32 %v1362, 1.0
        %v2286 = vadd.f32 %v1364, 1.0
        %v2287 = vadd.f32 %v1366, 1.0
        %v2288 = vadd.f32 %v1368, 1.0
        %v2289 = vadd.f32 %v1370, 1.0
        %v2290 = vadd.f32 %v1372, 1.0
        %v2291 = vadd.f32 %v1374, 1.0
        %v2292 = vadd.f32 %v1376, 1.0
        %v2293 = vadd.f32 %v1378, 1.0
        %v2294 = vadd.f32 %v1380, 1.0
        %v2295 = vadd.f32 %v1382, 1.0
        %v2296 = vadd.f32 %v1384, 1.0
        %v2297 = vadd.f32 %v1386, 1.0
        %v2298 = vadd.f32 %v1388, 1.0
        %v2299 = vadd.f32 %v1390, 1.0
        %v2300 = vadd.f32 %v1392, 1.0
        %v2301 = vadd.f32 %v1394, 1.0
        %v2302 = vadd.f32 %v1396, 1.0
        %v2303 = vadd.f32 %v1398, 1.0
        %v2304 = vadd.f32 %v1400, 1.0
        %v2305 = vadd.f32 %v1402, 1.0
        %v2306 = vadd.f32 %v1404, 1.0
        %v2307 = vadd.f32 %v1406, 1.0
        %v2308 = vadd.f32 %v1408, 1.0
        %v2309 = vadd.f32 %v1410, 1.0
        %v2310 = vadd.f32 %v1412, 1.0
        %v2311 = vadd.f32 %v1414, 1.0
        %v2312 = vadd.f32 %v1416, 1.0
        %v2313 = vadd.f32 %v1418, 1.0
        %v2314 = vadd.f32 %v1420, 1.0
        %v2315 = vadd.f32 %v1422, 1.0
        %v2316 = vadd.f32 %v1424, 1.0
        %v2317 = vadd.f32 %v1426, 1.0
        %v2318 = vadd.f32 %v1428, 1.0
        %v2319 = vadd.f32 %v1430, 1.0
        %v2320 = vadd.f32 %v1432, 1.0
        %v2321 = vadd.f32 %v1434, 1.0
        %v2322 = vadd.f32 %v1436, 1.0
        %v2323 = vadd.f32 %v1438, 1.0
        %v2324 = vadd.f32 %v1440, 1.0
        %v2325 = vadd.f32 %v1442, 1.0
        %v2326 = vadd.f32 %v1444, 1.0
        %v2327 = vadd.f32 %v1446, 1.0
        %v2328 = vadd.f32 %v1448, 1.0
        %v2329 = vadd.f32 %v1450, 1.0
        %v2330 = vadd.f32 %v1452, 1.0
        %v2331 = vadd.f32 %v1454, 1.0
        %v2332 = vadd.f32 %v1456, 1.0
        %v2333 = vadd.f32 %v1458, 1.0
        %v2334 = vadd.f32 %v1460, 1.0
        %v2335 = vadd.f32 %v1462, 1.0
        %v2336 = vadd.f32 %v1464, 1.0
        %v2337 = vadd.f32 %v1466, 1.0
        %v2338 = vadd.f32 %v1468, 1.0
        %v2339 = vadd.f32 %v1470, 1.0
        %v2340 = vadd.f32 %v1472, 1.0
        %v2341 = vadd.f32 %v1474, 1.0
        %v2342 = vadd.f32 %v1476, 1.0
        %v2343 = vadd.f32 %v1478, 1.0
        %v2344 = vadd.f32 %v1480, 1.0
        %v2345 = vadd.f32 %v1482, 1.0
        %v2346 = vadd.f32 %v1484, 1.0
        %v2347 = vadd.f32 %v1486, 1.0
        %v2348 = vadd.f32 %v1488, 1.0
        %v2349 = vadd.f32 %v1490, 1.0
        %v2350 = vadd.f32 %v1492, 1.0
        %v2351 = vadd.f32 %v1494, 1.0
        %v2352 = vadd.f32 %v1496, 1.0
        %v2353 = vadd.f32 %v1498, 1.0
        %v2354 = vadd.f32 %v1500, 1.0
        %v2355 = vadd.f32 %v1502, 1.0
        %v2356 = vadd.f32 %v1504, 1.0
        %v2357 = vadd.f32 %v1506, 1.0
        %v2358 = vadd.f32 %v1508, 1.0
        %v2359 = vadd.f32 %v1510, 1.0
        %v2360 = vadd.f32 %v1512, 1.0
        %v2361 = vadd.f32 %v1514, 1.0
        %v2362 = vadd.f32 %v1516, 1.0
        %v2363 = vadd.f32 %v1518, 1.0
        %v2364 = vadd.f32 %v1520, 1.0
        %v2365 = vadd.f32 %v1522, 1.0
        %v2366 = vadd.f32 %v1524, 1.0
        %v2367 = vadd.f32 %v1526, 1.0
        %v2368 = vadd.f32 %v1528, 1.0
        %v2369 = vadd.f32 %v1530, 1.0
        %v2370 = vadd.f32 %v1532, 1.0
        %v2371 = vadd.f32 %v1534, 1.0
        %v2372 = vadd.f32 %v1536, 1.0
        %v2373 = vadd.f32 %v1538, 1.0
        %v2374 = vadd.f32 %v1540, 1.0
        %v2375 = vadd.f32 %v1542, 1.0
        %v2376 = vadd.f32 %v1544, 1.0
        %v2377 = vadd.f32 %v1546, 1.0
        %v2378 = vadd.f32 %v1548, 1.0
        %v2379 = vadd.f32 %v1550, 1.0
        %v2380 = vadd.f32 %v1552, 1.0
        %v2381 = vadd.f32 %v1554, 1.0
        %v2382 = vadd.f32 %v1556, 1.0
        %v2383 = vadd.f32 %v1558, 1.0
        %v2384 = vadd.f32 %v1560, 1.0
        %v2385 = vadd.f32 %v1562, 1.0
        %v2386 = vadd.f32 %v1564, 1.0
        %v2387 = vadd.f32 %v1566, 1.0
        %v2388 = vadd.f32 %v1568, 1.0
        %v2389 = vadd.f32 %v1570, 1.0
        %v2390 = vadd.f32 %v1572, 1.0
        %v2391 = vadd.f32 %v1574, 1.0
        %v2392 = vadd.f32 %v1576, 1.0
        %v2393 = vadd.f32 %v1578, 1.0
        %v2394 = vadd.f32 %v1580, 1.0
        %v2395 = vadd.f32 %v1582, 1.0
        %v2396 = vadd.f32 %v1584, 1.0
        %v2397 = vadd.f32 %v1586, 1.0
        %v2398 = vadd.f32 %v1588, 1.0
        %v2399 = vadd.f32 %v1590, 1.0
        %v2400 = vadd.f32 %v1592, 1.0
        %v2401 = vadd.f32 %v1594, 1.0
        %v2402 = vadd.f32 %v1596, 1.0
        %v2403 = vadd.f32 %v1598, 1.0
        %v2404 = vadd.f32 %v1600, 1.0
        %v2405 = vadd.f32 %v1602, 1.0
        %v2406 = vadd.f32 %v1604, 1.0
        %v2407 = vadd.f32 %v1606, 1.0
        %v2408 = vadd.f32 %v1608, 1.0
        %v2409 = vadd.f32 %v1610, 1.0
        %v2410 = vadd.f32 %v1612, 1.0
        %v2411 = vadd.f32 %v1614, 1.0
        %v2412 = vadd.f32 %v1616, 1.0
        %v2413 = vadd.f32 %v1618, 1.0
        %v2414 = vadd.f32 %v1620, 1.0
        %v2415 = vadd.f32 %v1622, 1.0
        %v2416 = vadd.f32 %v1624, 1.0
        %v2417 = vadd.f32 %v1626, 1.0
        %v2418 = vadd.f32 %v1628, 1.0
        %v2419 = vadd.f32 %v1630, 1.0
        %v2420 = vadd.f32 %v1632, 1.0
        %v2421 = vadd.f32 %v1634, 1.0
        %v2422 = vadd.f32 %v1636, 1.0
        %v2423 = vadd.f32 %v1638, 1.0
        %v2424 = vadd.f32 %v1640, 1.0
        %v2425 = vadd.f32 %v1642, 1.0
        %v2426 = vadd.f32 %v1644, 1.0
        %v2427 = vadd.f32 %v1646, 1.0
        %v2428 = vadd.f32 %v1648, 1.0
        %v2429 = vadd.f32 %v1650, 1.0
        %v2430 = vadd.f32 %v1652, 1.0
        %v2431 = vadd.f32 %v1654, 1.0
        %v2432 = vadd.f32 %v1656, 1.0
        %v2433 = vadd.f32 %v1658, 1.0
        %v2434 = vadd.f32 %v1660, 1.0
        %v2435 = vadd.f32 %v1662, 1.0
        %v2436 = vadd.f32 %v1664, 1.0
        %v2437 = vadd.f32 %v1666, 1.0
        %v2438 = vadd.f32 %v1668, 1.0
        %v2439 = vadd.f32 %v1670, 1.0
        %v2440 = vadd.f32 %v1672, 1.0
        %v2441 = vadd.f32 %v1674, 1.0
        %v2442 = vadd.f32 %v1676, 1.0
        %v2443 = vadd.f32 %v1678, 1.0
        %v2444 = vadd.f32 %v1680, 1.0
        %v2445 = vadd.f32 %v1682, 1.0
        %v2446 = vadd.f32 %v1684, 1.0
        %v2447 = vadd.f32 %v1686, 1.0
        %v2448 = vadd.f32 %v1688, 1.0
        %v2449 = vadd.f32 %v1690, 1.0
        %v2450 = vadd.f32 %v1692, 1.0
        %v2451 = vadd.f32 %v1694, 1.0
        %v2452 = vadd.f32 %v1696, 1.0
        %v2453 = vadd.f32 %v1698, 1.0
        %v2454 = vadd.f32 %v1700, 1.0
        %v2455 = vadd.f32 %v1702, 1.0
        %v2456 = vadd.f32 %v1704, 1.0
        %v2457 = vadd.f32 %v1706, 1.0
        %v2458 = vadd.f32 %v1708, 1.0
        %v2459 = vadd.f32 %v1710, 1.0
        %v2460 = vadd.f32 %v1712, 1.0
        %v2461 = vadd.f32 %v1714, 1.0
        %v2462 = vadd.f32 %v1716, 1.0
        %v2463 = vadd.f32 %v1718, 1.0
        %v2464 = vadd.f32 %v1720, 1.0
        %v2465 = vadd.f32 %v1722, 1.0
        %v2466 = vadd.f32 %v1724, 1.0
        %v2467 = vadd.f32 %v1726, 1.0
        %v2468 = vadd.f32 %v1728, 1.0
        %v2469 = vadd.f32 %v1730, 1.0
        %v2470 = vadd.f32 %v1732, 1.0
        %v2471 = vadd.f32 %v1734, 1.0
        %v2472 = vadd.f32 %v1736, 1.0
        %v2473 = vadd.f32 %v1738, 1.0
        %v2474 = vadd.f32 %v1740, 1.0
        %v2475 = vadd.f32 %v1742, 1.0
        %v2476 = vadd.f32 %v1744, 1.0
        %v2477 = vadd.f32 %v1746, 1.0
        %v2478 = vadd.f32 %v1748, 1.0
        %v2479 = vadd.f32 %v1750, 1.0
        %v2480 = vadd.f32 %v1752, 1.0
        %v2481 = vadd.f32 %v1754, 1.0
        %v2482 = vadd.f32 %v1756, 1.0
        %v2483 = vadd.f32 %v1758, 1.0
        %v2484 = vadd.f32 %v1760, 1.0
        %v2485 = vadd.f32 %v1762, 1.0
        %v2486 = vadd.f32 %v1764, 1.0
        %v2487 = vadd.f32 %v1766, 1.0
        %v2488 = vadd.f32 %v1768, 1.0
        %v2489 = vadd.f32 %v1770, 1.0
        %v2490 = vadd.f32 %v1772, 1.0
        %v2491 = vadd.f32 %v1774, 1.0
        %v2492 = vadd.f32 %v1776, 1.0
        %v2493 = vadd.f32 %v1778, 1.0
        %v2494 = vadd.f32 %v1780, 1.0
        %v2495 = vadd.f32 %v1782, 1.0
        %v2496 = vadd.f32 %v1784, 1.0
        %v2497 = vadd.f32 %v1786, 1.0
        %v2498 = vadd.f32 %v1788, 1.0
        %v2499 = vadd.f32 %v1790, 1.0
        %v2500 = vadd.f32 %v1792, 1.0
        %v2501 = vadd.f32 %v1794, 1.0
        %v2502 = vadd.f32 %v1796, 1.0
        %v2503 = vadd.f32 %v1798, 1.0
        %v2504 = vadd.f32 %v1800, 1.0
        %v2505 = vadd.f32 %v1802, 1.0
        %v2506 = vadd.f32 %v1804, 1.0
        %v2507 = vadd.f32 %v1806, 1.0
        %v2508 = vadd.f32 %v1808, 1.0
        %v2509 = vadd.f32 %v1810, 1.0
        %v2510 = vadd.f32 %v1812, 1.0
        %v2511 = vadd.f32 %v1814, 1.0
        %v2512 = vadd.f32 %v1816, 1.0
        %v2513 = vadd.f32 %v1818, 1.0
        %v2514 = vadd.f32 %v1820, 1.0
        %v2515 = vadd.f32 %v1822, 1.0
        %v2516 = vadd.f32 %v1824, 1.0
        %v2517 = vadd.f32 %v1826, 1.0
        %v2518 = vadd.f32 %v1828, 1.0
        %v2519 = vadd.f32 %v1830, 1.0
        %v2520 = vadd.f32 %v1832, 1.0
        %v2521 = vadd.f32 %v1834, 1.0
        %v2522 = vadd.f32 %v1836, 1.0
        %v2523 = vadd.f32 %v1838, 1.0
        %v2524 = vadd.f32 %v1840, 1.0
        %v2525 = vadd.f32 %v1842, 1.0
        %v2526 = vadd.f32 %v1844, 1.0
        %v2527 = vadd.f32 %v1846, 1.0
        %v2528 = vadd.f32 %v1848, 1.0
        %v2529 = vadd.f32 %v1850, 1.0
        %v2530 = vadd.f32 %v1852, 1.0
        %v2531 = vadd.f32 %v1854, 1.0
        %v2532 = vadd.f32 %v1856, 1.0
        %v2533 = vadd.f32 %v1858, 1.0
        %v2534 = vadd.f32 %v1860, 1.0
        %v2535 = vadd.f32 %v1862, 1.0
        %v2536 = vadd.f32 %v1864, 1.0
        %v2537 = vadd.f32 %v1866, 1.0
        %v2538 = vadd.f32 %v1868, 1.0
        %v2539 = vadd.f32 %v1870, 1.0
        %v2540 = vadd.f32 %v1872, 1.0
        %v2541 = vadd.f32 %v1874, 1.0
        %v2542 = vadd.f32 %v1876, 1.0
        %v2543 = vadd.f32 %v1878, 1.0
        %v2544 = vadd.f32 %v1880, 1.0
        %v2545 = vadd.f32 %v1882, 1.0
        %v2546 = vadd.f32 %v1884, 1.0
        %v2547 = vadd.f32 %v1886, 1.0
        %v2548 = vadd.f32 %v1888, 1.0
        %v2549 = vadd.f32 %v1890, 1.0
        %v2550 = vadd.f32 %v1892, 1.0
        %v2551 = vadd.f32 %v1894, 1.0
        %v2552 = vadd.f32 %v1896, 1.0
        %v2553 = vadd.f32 %v1898, 1.0
        %v2554 = vadd.f32 %v1900, 1.0
        %v2555 = vadd.f32 %v1902, 1.0
        %v2556 = vadd.f32 %v1904, 1.0
        %v2557 = vadd.f32 %v1906, 1.0
        %v2558 = vadd.f32 %v1908, 1.0
        %v2559 = vadd.f32 %v1910, 1.0
        %v2560 = vadd.f32 %v1912, 1.0
        %v2561 = vadd.f32 %v1914, 1.0
        %v2562 = vadd.f32 %v1916, 1.0
        %v2563 = vadd.f32 %v1918, 1.0
        %v2564 = vadd.f32 %v1920, 1.0
        %v2565 = vadd.f32 %v1922, 1.0
        %v2566 = vadd.f32 %v1924, 1.0
        %v2567 = vadd.f32 %v1926, 1.0
        %v2568 = vadd.f32 %v1928, 1.0
        %v2569 = vadd.f32 %v1930, 1.0
        %v2570 = vadd.f32 %v1932, 1.0
        %v2571 = vadd.f32 %v1934, 1.0
        %v2572 = vadd.f32 %v1936, 1.0
        %v2573 = vadd.f32 %v1938, 1.0
        %v2574 = vadd.f32 %v1940, 1.0
        %v2575 = vadd.f32 %v1942, 1.0
        %v2576 = vadd.f32 %v1944, 1.0
        %v2577 = vadd.f32 %v1946, 1.0
        %v2578 = vadd.f32 %v1948, 1.0
        %v2579 = vadd.f32 %v1950, 1.0
        %v2580 = vadd.f32 %v1952, 1.0
        %v2581 = vadd.f32 %v1954, 1.0
        %v2582 = vadd.f32 %v1956, 1.0
        %v2583 = vadd.f32 %v1958, 1.0
        %v2584 = vadd.f32 %v1960, 1.0
        %v2585 = vadd.f32 %v1962, 1.0
        %v2586 = vadd.f32 %v1964, 1.0
        %v2587 = vadd.f32 %v1966, 1.0
        %v2588 = vadd.f32 %v1968, 1.0
        %v2589 = vadd.f32 %v1970, 1.0
        %v2590 = vadd.f32 %v1972, 1.0
        %v2591 = vadd.f32 %v1974, 1.0
        %v2592 = vadd.f32 %v1976, 1.0
        %v2593 = vadd.f32 %v1978, 1.0
        %v2594 = vadd.f32 %v1980, 1.0
        %v2595 = vadd.f32 %v1982, 1.0
        %v2596 = vadd.f32 %v1984, 1.0
        %v2597 = vadd.f32 %v1986, 1.0
        %v2598 = vadd.f32 %v1988, 1.0
        %v2599 = vadd.f32 %v1990, 1.0
        %v2600 = vadd.f32 %v1992, 1.0
        %v2601 = vadd.f32 %v1994, 1.0
        %v2602 = vadd.f32 %v1996, 1.0
        %v2603 = vadd.f32 %v1998, 1.0
        %v2604 = vadd.f32 %v2000, 1.0
        %v2605 = vadd.f32 %v2002, 1.0
        %v2606 = vadd.f32 %v2004, 1.0
        %v2607 = vadd.f32 %v2006, 1.0
        %v2608 = vadd.f32 %v2008, 1.0
        %v2609 = vadd.f32 %v2010, 1.0
        %v2610 = vadd.f32 %v2012, 1.0
        %v2611 = vadd.f32 %v2014, 1.0
        %v2612 = vadd.f32 %v2016, 1.0
        %v2613 = vadd.f32 %v2018, 1.0
        %v2614 = vadd.f32 %v2020, 1.0
        %v2615 = vadd.f32 %v2022, 1.0
        %v2616 = vadd.f32 %v2024, 1.0
        %v2617 = vadd.f32 %v2026, 1.0
        %v2618 = vadd.f32 %v2028, 1.0
        %v2619 = vadd.f32 %v2030, 1.0
        %v2620 = vadd.f32 %v2032, 1.0
        %v2621 = vadd.f32 %v2034, 1.0
        %v2622 = vadd.f32 %v2036, 1.0
        %v2623 = vadd.f32 %v2038, 1.0
        %v2624 = vadd.f32 %v2040, 1.0
        %v2625 = vadd.f32 %v2042, 1.0
        %v2626 = vadd.f32 %v2044, 1.0
        %v2627 = vadd.f32 %v2046, 1.0
        %v2628 = vadd.f32 %v2048, 1.0
        %v2629 = vadd.f32 %v2050, 1.0
        %v2630 = vadd.f32 %v2052, 1.0
        %v2631 = vadd.f32 %v2054, 1.0
        %v2632 = vadd.f32 %v2056, 1.0
        %v2633 = vadd.f32 %v2058, 1.0
        %v2634 = vadd.f32 %v2060, 1.0
        %v2635 = vadd.f32 %v2062, 1.0
        %v2636 = vadd.f32 %v2064, 1.0
        %v2637 = vadd.f32 %v2066, 1.0
        %v2638 = vadd.f32 %v2068, 1.0
        %v2639 = vadd.f32 %v2070, 1.0
        %v2640 = vadd.f32 %v2072, 1.0
        %v2641 = vadd.f32 %v2074, 1.0
        %v2642 = vadd.f32 %v2076, 1.0
        %v2643 = vadd.f32 %v2078, 1.0
        %v2644 = vadd.f32 %v2080, 1.0
        %v2645 = vadd.f32 %v2082, 1.0
        %v2646 = vadd.f32 %v2084, 1.0
        %v2647 = vadd.f32 %v2086, 1.0
        %v2648 = vadd.f32 %v2088, 1.0
        %v2649 = vadd.f32 %v2090, 1.0
        %v2650 = vadd.f32 %v2092, 1.0
        %v2651 = vadd.f32 %v2094, 1.0
        %v2652 = vadd.f32 %v2096, 1.0
        %v2653 = vadd.f32 %v2098, 1.0
        %v2654 = vadd.f32 %v2100, 1.0
        %v2655 = vadd.f32 %v2102, 1.0
        %v2656 = vadd.f32 %v2104, 1.0
        %v2657 = vadd.f32 %v2106, 1.0
        %v2658 = vadd.f32 %v2108, 1.0
        %v2659 = vadd.f32 %v2110, 1.0
        %v2660 = vadd.f32 %v2112, 1.0
        %v2661 = vadd.f32 %v2114, 1.0
        %v2662 = vadd.f32 %v2116, 1.0
        %v2663 = vadd.f32 %v2118, 1.0
        %v2664 = vadd.f32 %v2120, 1.0
        %v2665 = vadd.f32 %v2122, 1.0
        %v2666 = vadd.f32 %v2124, 1.0
        %v2667 = vadd.f32 %v2126, 1.0
        %v2668 = vadd.f32 %v2128, 1.0
        %v2669 = vadd.f32 %v2130, 1.0
        %v2670 = vadd.f32 %v2132, 1.0
        %v2671 = vadd.f32 %v2134, 1.0
        %v2672 = vadd.f32 %v2136, 1.0
        %v2673 = vadd.f32 %v2138, 1.0
        %v2674 = vadd.f32 %v2140, 1.0
        %v2675 = vadd.f32 %v2142, 1.0
        %v2676 = vadd.f32 %v2144, 1.0
        %v2677 = vadd.f32 %v2146, 1.0
        %v2678 = vadd.f32 %v2148, 1.0
        %v2679 = vadd.f32 %v2150, 1.0
        %v2680 = vadd.f32 %v2152, 1.0
        %v2681 = vadd.f32 %v2154, 1.0
        %v2682 = vadd.f32 %v2156, 1.0
        %v2683 = vadd.f32 %v2158, 1.0
        %v2684 = vadd.f32 %v2160, 1.0
        %v2685 = vadd.f32 %v2162, 1.0
        %v2686 = vadd.f32 %v2164, 1.0
        %v2687 = vadd.f32 %v2166, 1.0
        %v2688 = vadd.f32 %v2168, 1.0
        %v2689 = vadd.f32 %v2170, 1.0
        %v2690 = vadd.f32 %v2172, 1.0
        %v2691 = vadd.f32 %v2174, 1.0
        %v2692 = vadd.f32 %v2176, 1.0
        %v2693 = vadd.f32 %v2178, 1.0
        %v2694 = vadd.f32 %v2180, 1.0
        %v2695 = vadd.f32 %v2182, 1.0
        %v2696 = vadd.f32 %v2184, 1.0
        %v2697 = vrcp.pop %v2185
        %v2698 = vmul.f32 1.0, %v2697
        %v2699 = vrcp.pop %v2186
        %v2700 = vmul.f32 1.0, %v2699
        %v2701 = vrcp.pop %v2187
        %v2702 = vmul.f32 1.0, %v2701
        %v2703 = vrcp.pop %v2188
        %v2704 = vmul.f32 1.0, %v2703
        %v2705 = vrcp.pop %v2189
        %v2706 = vmul.f32 1.0, %v2705
        %v2707 = vrcp.pop %v2190
        %v2708 = vmul.f32 1.0, %v2707
        %v2709 = vrcp.pop %v2191
        %v2710 = vmul.f32 1.0, %v2709
        %v2711 = vrcp.pop %v2192
        %v2712 = vmul.f32 1.0, %v2711
        %v2713 = vrcp.pop %v2193
        %v2714 = vmul.f32 1.0, %v2713
        %v2715 = vrcp.pop %v2194
        %v2716 = vmul.f32 1.0, %v2715
        %v2717 = vrcp.pop %v2195
        %v2718 = vmul.f32 1.0, %v2717
        %v2719 = vrcp.pop %v2196
        %v2720 = vmul.f32 1.0, %v2719
        %v2721 = vrcp.pop %v2197
        %v2722 = vmul.f32 1.0, %v2721
        %v2723 = vrcp.pop %v2198
        %v2724 = vmul.f32 1.0, %v2723
        %v2725 = vrcp.pop %v2199
        %v2726 = vmul.f32 1.0, %v2725
        %v2727 = vrcp.pop %v2200
        %v2728 = vmul.f32 1.0, %v2727
        %v2729 = vrcp.pop %v2201
        %v2730 = vmul.f32 1.0, %v2729
        %v2731 = vrcp.pop %v2202
        %v2732 = vmul.f32 1.0, %v2731
        %v2733 = vrcp.pop %v2203
        %v2734 = vmul.f32 1.0, %v2733
        %v2735 = vrcp.pop %v2204
        %v2736 = vmul.f32 1.0, %v2735
        %v2737 = vrcp.pop %v2205
        %v2738 = vmul.f32 1.0, %v2737
        %v2739 = vrcp.pop %v2206
        %v2740 = vmul.f32 1.0, %v2739
        %v2741 = vrcp.pop %v2207
        %v2742 = vmul.f32 1.0, %v2741
        %v2743 = vrcp.pop %v2208
        %v2744 = vmul.f32 1.0, %v2743
        %v2745 = vrcp.pop %v2209
        %v2746 = vmul.f32 1.0, %v2745
        %v2747 = vrcp.pop %v2210
        %v2748 = vmul.f32 1.0, %v2747
        %v2749 = vrcp.pop %v2211
        %v2750 = vmul.f32 1.0, %v2749
        %v2751 = vrcp.pop %v2212
        %v2752 = vmul.f32 1.0, %v2751
        %v2753 = vrcp.pop %v2213
        %v2754 = vmul.f32 1.0, %v2753
        %v2755 = vrcp.pop %v2214
        %v2756 = vmul.f32 1.0, %v2755
        %v2757 = vrcp.pop %v2215
        %v2758 = vmul.f32 1.0, %v2757
        %v2759 = vrcp.pop %v2216
        %v2760 = vmul.f32 1.0, %v2759
        %v2761 = vrcp.pop %v2217
        %v2762 = vmul.f32 1.0, %v2761
        %v2763 = vrcp.pop %v2218
        %v2764 = vmul.f32 1.0, %v2763
        %v2765 = vrcp.pop %v2219
        %v2766 = vmul.f32 1.0, %v2765
        %v2767 = vrcp.pop %v2220
        %v2768 = vmul.f32 1.0, %v2767
        %v2769 = vrcp.pop %v2221
        %v2770 = vmul.f32 1.0, %v2769
        %v2771 = vrcp.pop %v2222
        %v2772 = vmul.f32 1.0, %v2771
        %v2773 = vrcp.pop %v2223
        %v2774 = vmul.f32 1.0, %v2773
        %v2775 = vrcp.pop %v2224
        %v2776 = vmul.f32 1.0, %v2775
        %v2777 = vrcp.pop %v2225
        %v2778 = vmul.f32 1.0, %v2777
        %v2779 = vrcp.pop %v2226
        %v2780 = vmul.f32 1.0, %v2779
        %v2781 = vrcp.pop %v2227
        %v2782 = vmul.f32 1.0, %v2781
        %v2783 = vrcp.pop %v2228
        %v2784 = vmul.f32 1.0, %v2783
        %v2785 = vrcp.pop %v2229
        %v2786 = vmul.f32 1.0, %v2785
        %v2787 = vrcp.pop %v2230
        %v2788 = vmul.f32 1.0, %v2787
        %v2789 = vrcp.pop %v2231
        %v2790 = vmul.f32 1.0, %v2789
        %v2791 = vrcp.pop %v2232
        %v2792 = vmul.f32 1.0, %v2791
        %v2793 = vrcp.pop %v2233
        %v2794 = vmul.f32 1.0, %v2793
        %v2795 = vrcp.pop %v2234
        %v2796 = vmul.f32 1.0, %v2795
        %v2797 = vrcp.pop %v2235
        %v2798 = vmul.f32 1.0, %v2797
        %v2799 = vrcp.pop %v2236
        %v2800 = vmul.f32 1.0, %v2799
        %v2801 = vrcp.pop %v2237
        %v2802 = vmul.f32 1.0, %v2801
        %v2803 = vrcp.pop %v2238
        %v2804 = vmul.f32 1.0, %v2803
        %v2805 = vrcp.pop %v2239
        %v2806 = vmul.f32 1.0, %v2805
        %v2807 = vrcp.pop %v2240
        %v2808 = vmul.f32 1.0, %v2807
        %v2809 = vrcp.pop %v2241
        %v2810 = vmul.f32 1.0, %v2809
        %v2811 = vrcp.pop %v2242
        %v2812 = vmul.f32 1.0, %v2811
        %v2813 = vrcp.pop %v2243
        %v2814 = vmul.f32 1.0, %v2813
        %v2815 = vrcp.pop %v2244
        %v2816 = vmul.f32 1.0, %v2815
        %v2817 = vrcp.pop %v2245
        %v2818 = vmul.f32 1.0, %v2817
        %v2819 = vrcp.pop %v2246
        %v2820 = vmul.f32 1.0, %v2819
        %v2821 = vrcp.pop %v2247
        %v2822 = vmul.f32 1.0, %v2821
        %v2823 = vrcp.pop %v2248
        %v2824 = vmul.f32 1.0, %v2823
        %v2825 = vrcp.pop %v2249
        %v2826 = vmul.f32 1.0, %v2825
        %v2827 = vrcp.pop %v2250
        %v2828 = vmul.f32 1.0, %v2827
        %v2829 = vrcp.pop %v2251
        %v2830 = vmul.f32 1.0, %v2829
        %v2831 = vrcp.pop %v2252
        %v2832 = vmul.f32 1.0, %v2831
        %v2833 = vrcp.pop %v2253
        %v2834 = vmul.f32 1.0, %v2833
        %v2835 = vrcp.pop %v2254
        %v2836 = vmul.f32 1.0, %v2835
        %v2837 = vrcp.pop %v2255
        %v2838 = vmul.f32 1.0, %v2837
        %v2839 = vrcp.pop %v2256
        %v2840 = vmul.f32 1.0, %v2839
        %v2841 = vrcp.pop %v2257
        %v2842 = vmul.f32 1.0, %v2841
        %v2843 = vrcp.pop %v2258
        %v2844 = vmul.f32 1.0, %v2843
        %v2845 = vrcp.pop %v2259
        %v2846 = vmul.f32 1.0, %v2845
        %v2847 = vrcp.pop %v2260
        %v2848 = vmul.f32 1.0, %v2847
        %v2849 = vrcp.pop %v2261
        %v2850 = vmul.f32 1.0, %v2849
        %v2851 = vrcp.pop %v2262
        %v2852 = vmul.f32 1.0, %v2851
        %v2853 = vrcp.pop %v2263
        %v2854 = vmul.f32 1.0, %v2853
        %v2855 = vrcp.pop %v2264
        %v2856 = vmul.f32 1.0, %v2855
        %v2857 = vrcp.pop %v2265
        %v2858 = vmul.f32 1.0, %v2857
        %v2859 = vrcp.pop %v2266
        %v2860 = vmul.f32 1.0, %v2859
        %v2861 = vrcp.pop %v2267
        %v2862 = vmul.f32 1.0, %v2861
        %v2863 = vrcp.pop %v2268
        %v2864 = vmul.f32 1.0, %v2863
        %v2865 = vrcp.pop %v2269
        %v2866 = vmul.f32 1.0, %v2865
        %v2867 = vrcp.pop %v2270
        %v2868 = vmul.f32 1.0, %v2867
        %v2869 = vrcp.pop %v2271
        %v2870 = vmul.f32 1.0, %v2869
        %v2871 = vrcp.pop %v2272
        %v2872 = vmul.f32 1.0, %v2871
        %v2873 = vrcp.pop %v2273
        %v2874 = vmul.f32 1.0, %v2873
        %v2875 = vrcp.pop %v2274
        %v2876 = vmul.f32 1.0, %v2875
        %v2877 = vrcp.pop %v2275
        %v2878 = vmul.f32 1.0, %v2877
        %v2879 = vrcp.pop %v2276
        %v2880 = vmul.f32 1.0, %v2879
        %v2881 = vrcp.pop %v2277
        %v2882 = vmul.f32 1.0, %v2881
        %v2883 = vrcp.pop %v2278
        %v2884 = vmul.f32 1.0, %v2883
        %v2885 = vrcp.pop %v2279
        %v2886 = vmul.f32 1.0, %v2885
        %v2887 = vrcp.pop %v2280
        %v2888 = vmul.f32 1.0, %v2887
        %v2889 = vrcp.pop %v2281
        %v2890 = vmul.f32 1.0, %v2889
        %v2891 = vrcp.pop %v2282
        %v2892 = vmul.f32 1.0, %v2891
        %v2893 = vrcp.pop %v2283
        %v2894 = vmul.f32 1.0, %v2893
        %v2895 = vrcp.pop %v2284
        %v2896 = vmul.f32 1.0, %v2895
        %v2897 = vrcp.pop %v2285
        %v2898 = vmul.f32 1.0, %v2897
        %v2899 = vrcp.pop %v2286
        %v2900 = vmul.f32 1.0, %v2899
        %v2901 = vrcp.pop %v2287
        %v2902 = vmul.f32 1.0, %v2901
        %v2903 = vrcp.pop %v2288
        %v2904 = vmul.f32 1.0, %v2903
        %v2905 = vrcp.pop %v2289
        %v2906 = vmul.f32 1.0, %v2905
        %v2907 = vrcp.pop %v2290
        %v2908 = vmul.f32 1.0, %v2907
        %v2909 = vrcp.pop %v2291
        %v2910 = vmul.f32 1.0, %v2909
        %v2911 = vrcp.pop %v2292
        %v2912 = vmul.f32 1.0, %v2911
        %v2913 = vrcp.pop %v2293
        %v2914 = vmul.f32 1.0, %v2913
        %v2915 = vrcp.pop %v2294
        %v2916 = vmul.f32 1.0, %v2915
        %v2917 = vrcp.pop %v2295
        %v2918 = vmul.f32 1.0, %v2917
        %v2919 = vrcp.pop %v2296
        %v2920 = vmul.f32 1.0, %v2919
        %v2921 = vrcp.pop %v2297
        %v2922 = vmul.f32 1.0, %v2921
        %v2923 = vrcp.pop %v2298
        %v2924 = vmul.f32 1.0, %v2923
        %v2925 = vrcp.pop %v2299
        %v2926 = vmul.f32 1.0, %v2925
        %v2927 = vrcp.pop %v2300
        %v2928 = vmul.f32 1.0, %v2927
        %v2929 = vrcp.pop %v2301
        %v2930 = vmul.f32 1.0, %v2929
        %v2931 = vrcp.pop %v2302
        %v2932 = vmul.f32 1.0, %v2931
        %v2933 = vrcp.pop %v2303
        %v2934 = vmul.f32 1.0, %v2933
        %v2935 = vrcp.pop %v2304
        %v2936 = vmul.f32 1.0, %v2935
        %v2937 = vrcp.pop %v2305
        %v2938 = vmul.f32 1.0, %v2937
        %v2939 = vrcp.pop %v2306
        %v2940 = vmul.f32 1.0, %v2939
        %v2941 = vrcp.pop %v2307
        %v2942 = vmul.f32 1.0, %v2941
        %v2943 = vrcp.pop %v2308
        %v2944 = vmul.f32 1.0, %v2943
        %v2945 = vrcp.pop %v2309
        %v2946 = vmul.f32 1.0, %v2945
        %v2947 = vrcp.pop %v2310
        %v2948 = vmul.f32 1.0, %v2947
        %v2949 = vrcp.pop %v2311
        %v2950 = vmul.f32 1.0, %v2949
        %v2951 = vrcp.pop %v2312
        %v2952 = vmul.f32 1.0, %v2951
        %v2953 = vrcp.pop %v2313
        %v2954 = vmul.f32 1.0, %v2953
        %v2955 = vrcp.pop %v2314
        %v2956 = vmul.f32 1.0, %v2955
        %v2957 = vrcp.pop %v2315
        %v2958 = vmul.f32 1.0, %v2957
        %v2959 = vrcp.pop %v2316
        %v2960 = vmul.f32 1.0, %v2959
        %v2961 = vrcp.pop %v2317
        %v2962 = vmul.f32 1.0, %v2961
        %v2963 = vrcp.pop %v2318
        %v2964 = vmul.f32 1.0, %v2963
        %v2965 = vrcp.pop %v2319
        %v2966 = vmul.f32 1.0, %v2965
        %v2967 = vrcp.pop %v2320
        %v2968 = vmul.f32 1.0, %v2967
        %v2969 = vrcp.pop %v2321
        %v2970 = vmul.f32 1.0, %v2969
        %v2971 = vrcp.pop %v2322
        %v2972 = vmul.f32 1.0, %v2971
        %v2973 = vrcp.pop %v2323
        %v2974 = vmul.f32 1.0, %v2973
        %v2975 = vrcp.pop %v2324
        %v2976 = vmul.f32 1.0, %v2975
        %v2977 = vrcp.pop %v2325
        %v2978 = vmul.f32 1.0, %v2977
        %v2979 = vrcp.pop %v2326
        %v2980 = vmul.f32 1.0, %v2979
        %v2981 = vrcp.pop %v2327
        %v2982 = vmul.f32 1.0, %v2981
        %v2983 = vrcp.pop %v2328
        %v2984 = vmul.f32 1.0, %v2983
        %v2985 = vrcp.pop %v2329
        %v2986 = vmul.f32 1.0, %v2985
        %v2987 = vrcp.pop %v2330
        %v2988 = vmul.f32 1.0, %v2987
        %v2989 = vrcp.pop %v2331
        %v2990 = vmul.f32 1.0, %v2989
        %v2991 = vrcp.pop %v2332
        %v2992 = vmul.f32 1.0, %v2991
        %v2993 = vrcp.pop %v2333
        %v2994 = vmul.f32 1.0, %v2993
        %v2995 = vrcp.pop %v2334
        %v2996 = vmul.f32 1.0, %v2995
        %v2997 = vrcp.pop %v2335
        %v2998 = vmul.f32 1.0, %v2997
        %v2999 = vrcp.pop %v2336
        %v3000 = vmul.f32 1.0, %v2999
        %v3001 = vrcp.pop %v2337
        %v3002 = vmul.f32 1.0, %v3001
        %v3003 = vrcp.pop %v2338
        %v3004 = vmul.f32 1.0, %v3003
        %v3005 = vrcp.pop %v2339
        %v3006 = vmul.f32 1.0, %v3005
        %v3007 = vrcp.pop %v2340
        %v3008 = vmul.f32 1.0, %v3007
        %v3009 = vrcp.pop %v2341
        %v3010 = vmul.f32 1.0, %v3009
        %v3011 = vrcp.pop %v2342
        %v3012 = vmul.f32 1.0, %v3011
        %v3013 = vrcp.pop %v2343
        %v3014 = vmul.f32 1.0, %v3013
        %v3015 = vrcp.pop %v2344
        %v3016 = vmul.f32 1.0, %v3015
        %v3017 = vrcp.pop %v2345
        %v3018 = vmul.f32 1.0, %v3017
        %v3019 = vrcp.pop %v2346
        %v3020 = vmul.f32 1.0, %v3019
        %v3021 = vrcp.pop %v2347
        %v3022 = vmul.f32 1.0, %v3021
        %v3023 = vrcp.pop %v2348
        %v3024 = vmul.f32 1.0, %v3023
        %v3025 = vrcp.pop %v2349
        %v3026 = vmul.f32 1.0, %v3025
        %v3027 = vrcp.pop %v2350
        %v3028 = vmul.f32 1.0, %v3027
        %v3029 = vrcp.pop %v2351
        %v3030 = vmul.f32 1.0, %v3029
        %v3031 = vrcp.pop %v2352
        %v3032 = vmul.f32 1.0, %v3031
        %v3033 = vrcp.pop %v2353
        %v3034 = vmul.f32 1.0, %v3033
        %v3035 = vrcp.pop %v2354
        %v3036 = vmul.f32 1.0, %v3035
        %v3037 = vrcp.pop %v2355
        %v3038 = vmul.f32 1.0, %v3037
        %v3039 = vrcp.pop %v2356
        %v3040 = vmul.f32 1.0, %v3039
        %v3041 = vrcp.pop %v2357
        %v3042 = vmul.f32 1.0, %v3041
        %v3043 = vrcp.pop %v2358
        %v3044 = vmul.f32 1.0, %v3043
        %v3045 = vrcp.pop %v2359
        %v3046 = vmul.f32 1.0, %v3045
        %v3047 = vrcp.pop %v2360
        %v3048 = vmul.f32 1.0, %v3047
        %v3049 = vrcp.pop %v2361
        %v3050 = vmul.f32 1.0, %v3049
        %v3051 = vrcp.pop %v2362
        %v3052 = vmul.f32 1.0, %v3051
        %v3053 = vrcp.pop %v2363
        %v3054 = vmul.f32 1.0, %v3053
        %v3055 = vrcp.pop %v2364
        %v3056 = vmul.f32 1.0, %v3055
        %v3057 = vrcp.pop %v2365
        %v3058 = vmul.f32 1.0, %v3057
        %v3059 = vrcp.pop %v2366
        %v3060 = vmul.f32 1.0, %v3059
        %v3061 = vrcp.pop %v2367
        %v3062 = vmul.f32 1.0, %v3061
        %v3063 = vrcp.pop %v2368
        %v3064 = vmul.f32 1.0, %v3063
        %v3065 = vrcp.pop %v2369
        %v3066 = vmul.f32 1.0, %v3065
        %v3067 = vrcp.pop %v2370
        %v3068 = vmul.f32 1.0, %v3067
        %v3069 = vrcp.pop %v2371
        %v3070 = vmul.f32 1.0, %v3069
        %v3071 = vrcp.pop %v2372
        %v3072 = vmul.f32 1.0, %v3071
        %v3073 = vrcp.pop %v2373
        %v3074 = vmul.f32 1.0, %v3073
        %v3075 = vrcp.pop %v2374
        %v3076 = vmul.f32 1.0, %v3075
        %v3077 = vrcp.pop %v2375
        %v3078 = vmul.f32 1.0, %v3077
        %v3079 = vrcp.pop %v2376
        %v3080 = vmul.f32 1.0, %v3079
        %v3081 = vrcp.pop %v2377
        %v3082 = vmul.f32 1.0, %v3081
        %v3083 = vrcp.pop %v2378
        %v3084 = vmul.f32 1.0, %v3083
        %v3085 = vrcp.pop %v2379
        %v3086 = vmul.f32 1.0, %v3085
        %v3087 = vrcp.pop %v2380
        %v3088 = vmul.f32 1.0, %v3087
        %v3089 = vrcp.pop %v2381
        %v3090 = vmul.f32 1.0, %v3089
        %v3091 = vrcp.pop %v2382
        %v3092 = vmul.f32 1.0, %v3091
        %v3093 = vrcp.pop %v2383
        %v3094 = vmul.f32 1.0, %v3093
        %v3095 = vrcp.pop %v2384
        %v3096 = vmul.f32 1.0, %v3095
        %v3097 = vrcp.pop %v2385
        %v3098 = vmul.f32 1.0, %v3097
        %v3099 = vrcp.pop %v2386
        %v3100 = vmul.f32 1.0, %v3099
        %v3101 = vrcp.pop %v2387
        %v3102 = vmul.f32 1.0, %v3101
        %v3103 = vrcp.pop %v2388
        %v3104 = vmul.f32 1.0, %v3103
        %v3105 = vrcp.pop %v2389
        %v3106 = vmul.f32 1.0, %v3105
        %v3107 = vrcp.pop %v2390
        %v3108 = vmul.f32 1.0, %v3107
        %v3109 = vrcp.pop %v2391
        %v3110 = vmul.f32 1.0, %v3109
        %v3111 = vrcp.pop %v2392
        %v3112 = vmul.f32 1.0, %v3111
        %v3113 = vrcp.pop %v2393
        %v3114 = vmul.f32 1.0, %v3113
        %v3115 = vrcp.pop %v2394
        %v3116 = vmul.f32 1.0, %v3115
        %v3117 = vrcp.pop %v2395
        %v3118 = vmul.f32 1.0, %v3117
        %v3119 = vrcp.pop %v2396
        %v3120 = vmul.f32 1.0, %v3119
        %v3121 = vrcp.pop %v2397
        %v3122 = vmul.f32 1.0, %v3121
        %v3123 = vrcp.pop %v2398
        %v3124 = vmul.f32 1.0, %v3123
        %v3125 = vrcp.pop %v2399
        %v3126 = vmul.f32 1.0, %v3125
        %v3127 = vrcp.pop %v2400
        %v3128 = vmul.f32 1.0, %v3127
        %v3129 = vrcp.pop %v2401
        %v3130 = vmul.f32 1.0, %v3129
        %v3131 = vrcp.pop %v2402
        %v3132 = vmul.f32 1.0, %v3131
        %v3133 = vrcp.pop %v2403
        %v3134 = vmul.f32 1.0, %v3133
        %v3135 = vrcp.pop %v2404
        %v3136 = vmul.f32 1.0, %v3135
        %v3137 = vrcp.pop %v2405
        %v3138 = vmul.f32 1.0, %v3137
        %v3139 = vrcp.pop %v2406
        %v3140 = vmul.f32 1.0, %v3139
        %v3141 = vrcp.pop %v2407
        %v3142 = vmul.f32 1.0, %v3141
        %v3143 = vrcp.pop %v2408
        %v3144 = vmul.f32 1.0, %v3143
        %v3145 = vrcp.pop %v2409
        %v3146 = vmul.f32 1.0, %v3145
        %v3147 = vrcp.pop %v2410
        %v3148 = vmul.f32 1.0, %v3147
        %v3149 = vrcp.pop %v2411
        %v3150 = vmul.f32 1.0, %v3149
        %v3151 = vrcp.pop %v2412
        %v3152 = vmul.f32 1.0, %v3151
        %v3153 = vrcp.pop %v2413
        %v3154 = vmul.f32 1.0, %v3153
        %v3155 = vrcp.pop %v2414
        %v3156 = vmul.f32 1.0, %v3155
        %v3157 = vrcp.pop %v2415
        %v3158 = vmul.f32 1.0, %v3157
        %v3159 = vrcp.pop %v2416
        %v3160 = vmul.f32 1.0, %v3159
        %v3161 = vrcp.pop %v2417
        %v3162 = vmul.f32 1.0, %v3161
        %v3163 = vrcp.pop %v2418
        %v3164 = vmul.f32 1.0, %v3163
        %v3165 = vrcp.pop %v2419
        %v3166 = vmul.f32 1.0, %v3165
        %v3167 = vrcp.pop %v2420
        %v3168 = vmul.f32 1.0, %v3167
        %v3169 = vrcp.pop %v2421
        %v3170 = vmul.f32 1.0, %v3169
        %v3171 = vrcp.pop %v2422
        %v3172 = vmul.f32 1.0, %v3171
        %v3173 = vrcp.pop %v2423
        %v3174 = vmul.f32 1.0, %v3173
        %v3175 = vrcp.pop %v2424
        %v3176 = vmul.f32 1.0, %v3175
        %v3177 = vrcp.pop %v2425
        %v3178 = vmul.f32 1.0, %v3177
        %v3179 = vrcp.pop %v2426
        %v3180 = vmul.f32 1.0, %v3179
        %v3181 = vrcp.pop %v2427
        %v3182 = vmul.f32 1.0, %v3181
        %v3183 = vrcp.pop %v2428
        %v3184 = vmul.f32 1.0, %v3183
        %v3185 = vrcp.pop %v2429
        %v3186 = vmul.f32 1.0, %v3185
        %v3187 = vrcp.pop %v2430
        %v3188 = vmul.f32 1.0, %v3187
        %v3189 = vrcp.pop %v2431
        %v3190 = vmul.f32 1.0, %v3189
        %v3191 = vrcp.pop %v2432
        %v3192 = vmul.f32 1.0, %v3191
        %v3193 = vrcp.pop %v2433
        %v3194 = vmul.f32 1.0, %v3193
        %v3195 = vrcp.pop %v2434
        %v3196 = vmul.f32 1.0, %v3195
        %v3197 = vrcp.pop %v2435
        %v3198 = vmul.f32 1.0, %v3197
        %v3199 = vrcp.pop %v2436
        %v3200 = vmul.f32 1.0, %v3199
        %v3201 = vrcp.pop %v2437
        %v3202 = vmul.f32 1.0, %v3201
        %v3203 = vrcp.pop %v2438
        %v3204 = vmul.f32 1.0, %v3203
        %v3205 = vrcp.pop %v2439
        %v3206 = vmul.f32 1.0, %v3205
        %v3207 = vrcp.pop %v2440
        %v3208 = vmul.f32 1.0, %v3207
        %v3209 = vrcp.pop %v2441
        %v3210 = vmul.f32 1.0, %v3209
        %v3211 = vrcp.pop %v2442
        %v3212 = vmul.f32 1.0, %v3211
        %v3213 = vrcp.pop %v2443
        %v3214 = vmul.f32 1.0, %v3213
        %v3215 = vrcp.pop %v2444
        %v3216 = vmul.f32 1.0, %v3215
        %v3217 = vrcp.pop %v2445
        %v3218 = vmul.f32 1.0, %v3217
        %v3219 = vrcp.pop %v2446
        %v3220 = vmul.f32 1.0, %v3219
        %v3221 = vrcp.pop %v2447
        %v3222 = vmul.f32 1.0, %v3221
        %v3223 = vrcp.pop %v2448
        %v3224 = vmul.f32 1.0, %v3223
        %v3225 = vrcp.pop %v2449
        %v3226 = vmul.f32 1.0, %v3225
        %v3227 = vrcp.pop %v2450
        %v3228 = vmul.f32 1.0, %v3227
        %v3229 = vrcp.pop %v2451
        %v3230 = vmul.f32 1.0, %v3229
        %v3231 = vrcp.pop %v2452
        %v3232 = vmul.f32 1.0, %v3231
        %v3233 = vrcp.pop %v2453
        %v3234 = vmul.f32 1.0, %v3233
        %v3235 = vrcp.pop %v2454
        %v3236 = vmul.f32 1.0, %v3235
        %v3237 = vrcp.pop %v2455
        %v3238 = vmul.f32 1.0, %v3237
        %v3239 = vrcp.pop %v2456
        %v3240 = vmul.f32 1.0, %v3239
        %v3241 = vrcp.pop %v2457
        %v3242 = vmul.f32 1.0, %v3241
        %v3243 = vrcp.pop %v2458
        %v3244 = vmul.f32 1.0, %v3243
        %v3245 = vrcp.pop %v2459
        %v3246 = vmul.f32 1.0, %v3245
        %v3247 = vrcp.pop %v2460
        %v3248 = vmul.f32 1.0, %v3247
        %v3249 = vrcp.pop %v2461
        %v3250 = vmul.f32 1.0, %v3249
        %v3251 = vrcp.pop %v2462
        %v3252 = vmul.f32 1.0, %v3251
        %v3253 = vrcp.pop %v2463
        %v3254 = vmul.f32 1.0, %v3253
        %v3255 = vrcp.pop %v2464
        %v3256 = vmul.f32 1.0, %v3255
        %v3257 = vrcp.pop %v2465
        %v3258 = vmul.f32 1.0, %v3257
        %v3259 = vrcp.pop %v2466
        %v3260 = vmul.f32 1.0, %v3259
        %v3261 = vrcp.pop %v2467
        %v3262 = vmul.f32 1.0, %v3261
        %v3263 = vrcp.pop %v2468
        %v3264 = vmul.f32 1.0, %v3263
        %v3265 = vrcp.pop %v2469
        %v3266 = vmul.f32 1.0, %v3265
        %v3267 = vrcp.pop %v2470
        %v3268 = vmul.f32 1.0, %v3267
        %v3269 = vrcp.pop %v2471
        %v3270 = vmul.f32 1.0, %v3269
        %v3271 = vrcp.pop %v2472
        %v3272 = vmul.f32 1.0, %v3271
        %v3273 = vrcp.pop %v2473
        %v3274 = vmul.f32 1.0, %v3273
        %v3275 = vrcp.pop %v2474
        %v3276 = vmul.f32 1.0, %v3275
        %v3277 = vrcp.pop %v2475
        %v3278 = vmul.f32 1.0, %v3277
        %v3279 = vrcp.pop %v2476
        %v3280 = vmul.f32 1.0, %v3279
        %v3281 = vrcp.pop %v2477
        %v3282 = vmul.f32 1.0, %v3281
        %v3283 = vrcp.pop %v2478
        %v3284 = vmul.f32 1.0, %v3283
        %v3285 = vrcp.pop %v2479
        %v3286 = vmul.f32 1.0, %v3285
        %v3287 = vrcp.pop %v2480
        %v3288 = vmul.f32 1.0, %v3287
        %v3289 = vrcp.pop %v2481
        %v3290 = vmul.f32 1.0, %v3289
        %v3291 = vrcp.pop %v2482
        %v3292 = vmul.f32 1.0, %v3291
        %v3293 = vrcp.pop %v2483
        %v3294 = vmul.f32 1.0, %v3293
        %v3295 = vrcp.pop %v2484
        %v3296 = vmul.f32 1.0, %v3295
        %v3297 = vrcp.pop %v2485
        %v3298 = vmul.f32 1.0, %v3297
        %v3299 = vrcp.pop %v2486
        %v3300 = vmul.f32 1.0, %v3299
        %v3301 = vrcp.pop %v2487
        %v3302 = vmul.f32 1.0, %v3301
        %v3303 = vrcp.pop %v2488
        %v3304 = vmul.f32 1.0, %v3303
        %v3305 = vrcp.pop %v2489
        %v3306 = vmul.f32 1.0, %v3305
        %v3307 = vrcp.pop %v2490
        %v3308 = vmul.f32 1.0, %v3307
        %v3309 = vrcp.pop %v2491
        %v3310 = vmul.f32 1.0, %v3309
        %v3311 = vrcp.pop %v2492
        %v3312 = vmul.f32 1.0, %v3311
        %v3313 = vrcp.pop %v2493
        %v3314 = vmul.f32 1.0, %v3313
        %v3315 = vrcp.pop %v2494
        %v3316 = vmul.f32 1.0, %v3315
        %v3317 = vrcp.pop %v2495
        %v3318 = vmul.f32 1.0, %v3317
        %v3319 = vrcp.pop %v2496
        %v3320 = vmul.f32 1.0, %v3319
        %v3321 = vrcp.pop %v2497
        %v3322 = vmul.f32 1.0, %v3321
        %v3323 = vrcp.pop %v2498
        %v3324 = vmul.f32 1.0, %v3323
        %v3325 = vrcp.pop %v2499
        %v3326 = vmul.f32 1.0, %v3325
        %v3327 = vrcp.pop %v2500
        %v3328 = vmul.f32 1.0, %v3327
        %v3329 = vrcp.pop %v2501
        %v3330 = vmul.f32 1.0, %v3329
        %v3331 = vrcp.pop %v2502
        %v3332 = vmul.f32 1.0, %v3331
        %v3333 = vrcp.pop %v2503
        %v3334 = vmul.f32 1.0, %v3333
        %v3335 = vrcp.pop %v2504
        %v3336 = vmul.f32 1.0, %v3335
        %v3337 = vrcp.pop %v2505
        %v3338 = vmul.f32 1.0, %v3337
        %v3339 = vrcp.pop %v2506
        %v3340 = vmul.f32 1.0, %v3339
        %v3341 = vrcp.pop %v2507
        %v3342 = vmul.f32 1.0, %v3341
        %v3343 = vrcp.pop %v2508
        %v3344 = vmul.f32 1.0, %v3343
        %v3345 = vrcp.pop %v2509
        %v3346 = vmul.f32 1.0, %v3345
        %v3347 = vrcp.pop %v2510
        %v3348 = vmul.f32 1.0, %v3347
        %v3349 = vrcp.pop %v2511
        %v3350 = vmul.f32 1.0, %v3349
        %v3351 = vrcp.pop %v2512
        %v3352 = vmul.f32 1.0, %v3351
        %v3353 = vrcp.pop %v2513
        %v3354 = vmul.f32 1.0, %v3353
        %v3355 = vrcp.pop %v2514
        %v3356 = vmul.f32 1.0, %v3355
        %v3357 = vrcp.pop %v2515
        %v3358 = vmul.f32 1.0, %v3357
        %v3359 = vrcp.pop %v2516
        %v3360 = vmul.f32 1.0, %v3359
        %v3361 = vrcp.pop %v2517
        %v3362 = vmul.f32 1.0, %v3361
        %v3363 = vrcp.pop %v2518
        %v3364 = vmul.f32 1.0, %v3363
        %v3365 = vrcp.pop %v2519
        %v3366 = vmul.f32 1.0, %v3365
        %v3367 = vrcp.pop %v2520
        %v3368 = vmul.f32 1.0, %v3367
        %v3369 = vrcp.pop %v2521
        %v3370 = vmul.f32 1.0, %v3369
        %v3371 = vrcp.pop %v2522
        %v3372 = vmul.f32 1.0, %v3371
        %v3373 = vrcp.pop %v2523
        %v3374 = vmul.f32 1.0, %v3373
        %v3375 = vrcp.pop %v2524
        %v3376 = vmul.f32 1.0, %v3375
        %v3377 = vrcp.pop %v2525
        %v3378 = vmul.f32 1.0, %v3377
        %v3379 = vrcp.pop %v2526
        %v3380 = vmul.f32 1.0, %v3379
        %v3381 = vrcp.pop %v2527
        %v3382 = vmul.f32 1.0, %v3381
        %v3383 = vrcp.pop %v2528
        %v3384 = vmul.f32 1.0, %v3383
        %v3385 = vrcp.pop %v2529
        %v3386 = vmul.f32 1.0, %v3385
        %v3387 = vrcp.pop %v2530
        %v3388 = vmul.f32 1.0, %v3387
        %v3389 = vrcp.pop %v2531
        %v3390 = vmul.f32 1.0, %v3389
        %v3391 = vrcp.pop %v2532
        %v3392 = vmul.f32 1.0, %v3391
        %v3393 = vrcp.pop %v2533
        %v3394 = vmul.f32 1.0, %v3393
        %v3395 = vrcp.pop %v2534
        %v3396 = vmul.f32 1.0, %v3395
        %v3397 = vrcp.pop %v2535
        %v3398 = vmul.f32 1.0, %v3397
        %v3399 = vrcp.pop %v2536
        %v3400 = vmul.f32 1.0, %v3399
        %v3401 = vrcp.pop %v2537
        %v3402 = vmul.f32 1.0, %v3401
        %v3403 = vrcp.pop %v2538
        %v3404 = vmul.f32 1.0, %v3403
        %v3405 = vrcp.pop %v2539
        %v3406 = vmul.f32 1.0, %v3405
        %v3407 = vrcp.pop %v2540
        %v3408 = vmul.f32 1.0, %v3407
        %v3409 = vrcp.pop %v2541
        %v3410 = vmul.f32 1.0, %v3409
        %v3411 = vrcp.pop %v2542
        %v3412 = vmul.f32 1.0, %v3411
        %v3413 = vrcp.pop %v2543
        %v3414 = vmul.f32 1.0, %v3413
        %v3415 = vrcp.pop %v2544
        %v3416 = vmul.f32 1.0, %v3415
        %v3417 = vrcp.pop %v2545
        %v3418 = vmul.f32 1.0, %v3417
        %v3419 = vrcp.pop %v2546
        %v3420 = vmul.f32 1.0, %v3419
        %v3421 = vrcp.pop %v2547
        %v3422 = vmul.f32 1.0, %v3421
        %v3423 = vrcp.pop %v2548
        %v3424 = vmul.f32 1.0, %v3423
        %v3425 = vrcp.pop %v2549
        %v3426 = vmul.f32 1.0, %v3425
        %v3427 = vrcp.pop %v2550
        %v3428 = vmul.f32 1.0, %v3427
        %v3429 = vrcp.pop %v2551
        %v3430 = vmul.f32 1.0, %v3429
        %v3431 = vrcp.pop %v2552
        %v3432 = vmul.f32 1.0, %v3431
        %v3433 = vrcp.pop %v2553
        %v3434 = vmul.f32 1.0, %v3433
        %v3435 = vrcp.pop %v2554
        %v3436 = vmul.f32 1.0, %v3435
        %v3437 = vrcp.pop %v2555
        %v3438 = vmul.f32 1.0, %v3437
        %v3439 = vrcp.pop %v2556
        %v3440 = vmul.f32 1.0, %v3439
        %v3441 = vrcp.pop %v2557
        %v3442 = vmul.f32 1.0, %v3441
        %v3443 = vrcp.pop %v2558
        %v3444 = vmul.f32 1.0, %v3443
        %v3445 = vrcp.pop %v2559
        %v3446 = vmul.f32 1.0, %v3445
        %v3447 = vrcp.pop %v2560
        %v3448 = vmul.f32 1.0, %v3447
        %v3449 = vrcp.pop %v2561
        %v3450 = vmul.f32 1.0, %v3449
        %v3451 = vrcp.pop %v2562
        %v3452 = vmul.f32 1.0, %v3451
        %v3453 = vrcp.pop %v2563
        %v3454 = vmul.f32 1.0, %v3453
        %v3455 = vrcp.pop %v2564
        %v3456 = vmul.f32 1.0, %v3455
        %v3457 = vrcp.pop %v2565
        %v3458 = vmul.f32 1.0, %v3457
        %v3459 = vrcp.pop %v2566
        %v3460 = vmul.f32 1.0, %v3459
        %v3461 = vrcp.pop %v2567
        %v3462 = vmul.f32 1.0, %v3461
        %v3463 = vrcp.pop %v2568
        %v3464 = vmul.f32 1.0, %v3463
        %v3465 = vrcp.pop %v2569
        %v3466 = vmul.f32 1.0, %v3465
        %v3467 = vrcp.pop %v2570
        %v3468 = vmul.f32 1.0, %v3467
        %v3469 = vrcp.pop %v2571
        %v3470 = vmul.f32 1.0, %v3469
        %v3471 = vrcp.pop %v2572
        %v3472 = vmul.f32 1.0, %v3471
        %v3473 = vrcp.pop %v2573
        %v3474 = vmul.f32 1.0, %v3473
        %v3475 = vrcp.pop %v2574
        %v3476 = vmul.f32 1.0, %v3475
        %v3477 = vrcp.pop %v2575
        %v3478 = vmul.f32 1.0, %v3477
        %v3479 = vrcp.pop %v2576
        %v3480 = vmul.f32 1.0, %v3479
        %v3481 = vrcp.pop %v2577
        %v3482 = vmul.f32 1.0, %v3481
        %v3483 = vrcp.pop %v2578
        %v3484 = vmul.f32 1.0, %v3483
        %v3485 = vrcp.pop %v2579
        %v3486 = vmul.f32 1.0, %v3485
        %v3487 = vrcp.pop %v2580
        %v3488 = vmul.f32 1.0, %v3487
        %v3489 = vrcp.pop %v2581
        %v3490 = vmul.f32 1.0, %v3489
        %v3491 = vrcp.pop %v2582
        %v3492 = vmul.f32 1.0, %v3491
        %v3493 = vrcp.pop %v2583
        %v3494 = vmul.f32 1.0, %v3493
        %v3495 = vrcp.pop %v2584
        %v3496 = vmul.f32 1.0, %v3495
        %v3497 = vrcp.pop %v2585
        %v3498 = vmul.f32 1.0, %v3497
        %v3499 = vrcp.pop %v2586
        %v3500 = vmul.f32 1.0, %v3499
        %v3501 = vrcp.pop %v2587
        %v3502 = vmul.f32 1.0, %v3501
        %v3503 = vrcp.pop %v2588
        %v3504 = vmul.f32 1.0, %v3503
        %v3505 = vrcp.pop %v2589
        %v3506 = vmul.f32 1.0, %v3505
        %v3507 = vrcp.pop %v2590
        %v3508 = vmul.f32 1.0, %v3507
        %v3509 = vrcp.pop %v2591
        %v3510 = vmul.f32 1.0, %v3509
        %v3511 = vrcp.pop %v2592
        %v3512 = vmul.f32 1.0, %v3511
        %v3513 = vrcp.pop %v2593
        %v3514 = vmul.f32 1.0, %v3513
        %v3515 = vrcp.pop %v2594
        %v3516 = vmul.f32 1.0, %v3515
        %v3517 = vrcp.pop %v2595
        %v3518 = vmul.f32 1.0, %v3517
        %v3519 = vrcp.pop %v2596
        %v3520 = vmul.f32 1.0, %v3519
        %v3521 = vrcp.pop %v2597
        %v3522 = vmul.f32 1.0, %v3521
        %v3523 = vrcp.pop %v2598
        %v3524 = vmul.f32 1.0, %v3523
        %v3525 = vrcp.pop %v2599
        %v3526 = vmul.f32 1.0, %v3525
        %v3527 = vrcp.pop %v2600
        %v3528 = vmul.f32 1.0, %v3527
        %v3529 = vrcp.pop %v2601
        %v3530 = vmul.f32 1.0, %v3529
        %v3531 = vrcp.pop %v2602
        %v3532 = vmul.f32 1.0, %v3531
        %v3533 = vrcp.pop %v2603
        %v3534 = vmul.f32 1.0, %v3533
        %v3535 = vrcp.pop %v2604
        %v3536 = vmul.f32 1.0, %v3535
        %v3537 = vrcp.pop %v2605
        %v3538 = vmul.f32 1.0, %v3537
        %v3539 = vrcp.pop %v2606
        %v3540 = vmul.f32 1.0, %v3539
        %v3541 = vrcp.pop %v2607
        %v3542 = vmul.f32 1.0, %v3541
        %v3543 = vrcp.pop %v2608
        %v3544 = vmul.f32 1.0, %v3543
        %v3545 = vrcp.pop %v2609
        %v3546 = vmul.f32 1.0, %v3545
        %v3547 = vrcp.pop %v2610
        %v3548 = vmul.f32 1.0, %v3547
        %v3549 = vrcp.pop %v2611
        %v3550 = vmul.f32 1.0, %v3549
        %v3551 = vrcp.pop %v2612
        %v3552 = vmul.f32 1.0, %v3551
        %v3553 = vrcp.pop %v2613
        %v3554 = vmul.f32 1.0, %v3553
        %v3555 = vrcp.pop %v2614
        %v3556 = vmul.f32 1.0, %v3555
        %v3557 = vrcp.pop %v2615
        %v3558 = vmul.f32 1.0, %v3557
        %v3559 = vrcp.pop %v2616
        %v3560 = vmul.f32 1.0, %v3559
        %v3561 = vrcp.pop %v2617
        %v3562 = vmul.f32 1.0, %v3561
        %v3563 = vrcp.pop %v2618
        %v3564 = vmul.f32 1.0, %v3563
        %v3565 = vrcp.pop %v2619
        %v3566 = vmul.f32 1.0, %v3565
        %v3567 = vrcp.pop %v2620
        %v3568 = vmul.f32 1.0, %v3567
        %v3569 = vrcp.pop %v2621
        %v3570 = vmul.f32 1.0, %v3569
        %v3571 = vrcp.pop %v2622
        %v3572 = vmul.f32 1.0, %v3571
        %v3573 = vrcp.pop %v2623
        %v3574 = vmul.f32 1.0, %v3573
        %v3575 = vrcp.pop %v2624
        %v3576 = vmul.f32 1.0, %v3575
        %v3577 = vrcp.pop %v2625
        %v3578 = vmul.f32 1.0, %v3577
        %v3579 = vrcp.pop %v2626
        %v3580 = vmul.f32 1.0, %v3579
        %v3581 = vrcp.pop %v2627
        %v3582 = vmul.f32 1.0, %v3581
        %v3583 = vrcp.pop %v2628
        %v3584 = vmul.f32 1.0, %v3583
        %v3585 = vrcp.pop %v2629
        %v3586 = vmul.f32 1.0, %v3585
        %v3587 = vrcp.pop %v2630
        %v3588 = vmul.f32 1.0, %v3587
        %v3589 = vrcp.pop %v2631
        %v3590 = vmul.f32 1.0, %v3589
        %v3591 = vrcp.pop %v2632
        %v3592 = vmul.f32 1.0, %v3591
        %v3593 = vrcp.pop %v2633
        %v3594 = vmul.f32 1.0, %v3593
        %v3595 = vrcp.pop %v2634
        %v3596 = vmul.f32 1.0, %v3595
        %v3597 = vrcp.pop %v2635
        %v3598 = vmul.f32 1.0, %v3597
        %v3599 = vrcp.pop %v2636
        %v3600 = vmul.f32 1.0, %v3599
        %v3601 = vrcp.pop %v2637
        %v3602 = vmul.f32 1.0, %v3601
        %v3603 = vrcp.pop %v2638
        %v3604 = vmul.f32 1.0, %v3603
        %v3605 = vrcp.pop %v2639
        %v3606 = vmul.f32 1.0, %v3605
        %v3607 = vrcp.pop %v2640
        %v3608 = vmul.f32 1.0, %v3607
        %v3609 = vrcp.pop %v2641
        %v3610 = vmul.f32 1.0, %v3609
        %v3611 = vrcp.pop %v2642
        %v3612 = vmul.f32 1.0, %v3611
        %v3613 = vrcp.pop %v2643
        %v3614 = vmul.f32 1.0, %v3613
        %v3615 = vrcp.pop %v2644
        %v3616 = vmul.f32 1.0, %v3615
        %v3617 = vrcp.pop %v2645
        %v3618 = vmul.f32 1.0, %v3617
        %v3619 = vrcp.pop %v2646
        %v3620 = vmul.f32 1.0, %v3619
        %v3621 = vrcp.pop %v2647
        %v3622 = vmul.f32 1.0, %v3621
        %v3623 = vrcp.pop %v2648
        %v3624 = vmul.f32 1.0, %v3623
        %v3625 = vrcp.pop %v2649
        %v3626 = vmul.f32 1.0, %v3625
        %v3627 = vrcp.pop %v2650
        %v3628 = vmul.f32 1.0, %v3627
        %v3629 = vrcp.pop %v2651
        %v3630 = vmul.f32 1.0, %v3629
        %v3631 = vrcp.pop %v2652
        %v3632 = vmul.f32 1.0, %v3631
        %v3633 = vrcp.pop %v2653
        %v3634 = vmul.f32 1.0, %v3633
        %v3635 = vrcp.pop %v2654
        %v3636 = vmul.f32 1.0, %v3635
        %v3637 = vrcp.pop %v2655
        %v3638 = vmul.f32 1.0, %v3637
        %v3639 = vrcp.pop %v2656
        %v3640 = vmul.f32 1.0, %v3639
        %v3641 = vrcp.pop %v2657
        %v3642 = vmul.f32 1.0, %v3641
        %v3643 = vrcp.pop %v2658
        %v3644 = vmul.f32 1.0, %v3643
        %v3645 = vrcp.pop %v2659
        %v3646 = vmul.f32 1.0, %v3645
        %v3647 = vrcp.pop %v2660
        %v3648 = vmul.f32 1.0, %v3647
        %v3649 = vrcp.pop %v2661
        %v3650 = vmul.f32 1.0, %v3649
        %v3651 = vrcp.pop %v2662
        %v3652 = vmul.f32 1.0, %v3651
        %v3653 = vrcp.pop %v2663
        %v3654 = vmul.f32 1.0, %v3653
        %v3655 = vrcp.pop %v2664
        %v3656 = vmul.f32 1.0, %v3655
        %v3657 = vrcp.pop %v2665
        %v3658 = vmul.f32 1.0, %v3657
        %v3659 = vrcp.pop %v2666
        %v3660 = vmul.f32 1.0, %v3659
        %v3661 = vrcp.pop %v2667
        %v3662 = vmul.f32 1.0, %v3661
        %v3663 = vrcp.pop %v2668
        %v3664 = vmul.f32 1.0, %v3663
        %v3665 = vrcp.pop %v2669
        %v3666 = vmul.f32 1.0, %v3665
        %v3667 = vrcp.pop %v2670
        %v3668 = vmul.f32 1.0, %v3667
        %v3669 = vrcp.pop %v2671
        %v3670 = vmul.f32 1.0, %v3669
        %v3671 = vrcp.pop %v2672
        %v3672 = vmul.f32 1.0, %v3671
        %v3673 = vrcp.pop %v2673
        %v3674 = vmul.f32 1.0, %v3673
        %v3675 = vrcp.pop %v2674
        %v3676 = vmul.f32 1.0, %v3675
        %v3677 = vrcp.pop %v2675
        %v3678 = vmul.f32 1.0, %v3677
        %v3679 = vrcp.pop %v2676
        %v3680 = vmul.f32 1.0, %v3679
        %v3681 = vrcp.pop %v2677
        %v3682 = vmul.f32 1.0, %v3681
        %v3683 = vrcp.pop %v2678
        %v3684 = vmul.f32 1.0, %v3683
        %v3685 = vrcp.pop %v2679
        %v3686 = vmul.f32 1.0, %v3685
        %v3687 = vrcp.pop %v2680
        %v3688 = vmul.f32 1.0, %v3687
        %v3689 = vrcp.pop %v2681
        %v3690 = vmul.f32 1.0, %v3689
        %v3691 = vrcp.pop %v2682
        %v3692 = vmul.f32 1.0, %v3691
        %v3693 = vrcp.pop %v2683
        %v3694 = vmul.f32 1.0, %v3693
        %v3695 = vrcp.pop %v2684
        %v3696 = vmul.f32 1.0, %v3695
        %v3697 = vrcp.pop %v2685
        %v3698 = vmul.f32 1.0, %v3697
        %v3699 = vrcp.pop %v2686
        %v3700 = vmul.f32 1.0, %v3699
        %v3701 = vrcp.pop %v2687
        %v3702 = vmul.f32 1.0, %v3701
        %v3703 = vrcp.pop %v2688
        %v3704 = vmul.f32 1.0, %v3703
        %v3705 = vrcp.pop %v2689
        %v3706 = vmul.f32 1.0, %v3705
        %v3707 = vrcp.pop %v2690
        %v3708 = vmul.f32 1.0, %v3707
        %v3709 = vrcp.pop %v2691
        %v3710 = vmul.f32 1.0, %v3709
        %v3711 = vrcp.pop %v2692
        %v3712 = vmul.f32 1.0, %v3711
        %v3713 = vrcp.pop %v2693
        %v3714 = vmul.f32 1.0, %v3713
        %v3715 = vrcp.pop %v2694
        %v3716 = vmul.f32 1.0, %v3715
        %v3717 = vrcp.pop %v2695
        %v3718 = vmul.f32 1.0, %v3717
        %v3719 = vrcp.pop %v2696
        %v3720 = vmul.f32 1.0, %v3719
        %v3721 = vmul.f32 %v137, %v2698
        %v3722 = vmul.f32 %v138, %v2700
        %v3723 = vmul.f32 %v139, %v2702
        %v3724 = vmul.f32 %v140, %v2704
        %v3725 = vmul.f32 %v141, %v2706
        %v3726 = vmul.f32 %v142, %v2708
        %v3727 = vmul.f32 %v143, %v2710
        %v3728 = vmul.f32 %v144, %v2712
        %v3729 = vmul.f32 %v145, %v2714
        %v3730 = vmul.f32 %v146, %v2716
        %v3731 = vmul.f32 %v147, %v2718
        %v3732 = vmul.f32 %v148, %v2720
        %v3733 = vmul.f32 %v149, %v2722
        %v3734 = vmul.f32 %v150, %v2724
        %v3735 = vmul.f32 %v151, %v2726
        %v3736 = vmul.f32 %v152, %v2728
        %v3737 = vmul.f32 %v153, %v2730
        %v3738 = vmul.f32 %v154, %v2732
        %v3739 = vmul.f32 %v155, %v2734
        %v3740 = vmul.f32 %v156, %v2736
        %v3741 = vmul.f32 %v157, %v2738
        %v3742 = vmul.f32 %v158, %v2740
        %v3743 = vmul.f32 %v159, %v2742
        %v3744 = vmul.f32 %v160, %v2744
        %v3745 = vmul.f32 %v161, %v2746
        %v3746 = vmul.f32 %v162, %v2748
        %v3747 = vmul.f32 %v163, %v2750
        %v3748 = vmul.f32 %v164, %v2752
        %v3749 = vmul.f32 %v165, %v2754
        %v3750 = vmul.f32 %v166, %v2756
        %v3751 = vmul.f32 %v167, %v2758
        %v3752 = vmul.f32 %v168, %v2760
        %v3753 = vmul.f32 %v169, %v2762
        %v3754 = vmul.f32 %v170, %v2764
        %v3755 = vmul.f32 %v171, %v2766
        %v3756 = vmul.f32 %v172, %v2768
        %v3757 = vmul.f32 %v173, %v2770
        %v3758 = vmul.f32 %v174, %v2772
        %v3759 = vmul.f32 %v175, %v2774
        %v3760 = vmul.f32 %v176, %v2776
        %v3761 = vmul.f32 %v177, %v2778
        %v3762 = vmul.f32 %v178, %v2780
        %v3763 = vmul.f32 %v179, %v2782
        %v3764 = vmul.f32 %v180, %v2784
        %v3765 = vmul.f32 %v181, %v2786
        %v3766 = vmul.f32 %v182, %v2788
        %v3767 = vmul.f32 %v183, %v2790
        %v3768 = vmul.f32 %v184, %v2792
        %v3769 = vmul.f32 %v185, %v2794
        %v3770 = vmul.f32 %v186, %v2796
        %v3771 = vmul.f32 %v187, %v2798
        %v3772 = vmul.f32 %v188, %v2800
        %v3773 = vmul.f32 %v189, %v2802
        %v3774 = vmul.f32 %v190, %v2804
        %v3775 = vmul.f32 %v191, %v2806
        %v3776 = vmul.f32 %v192, %v2808
        %v3777 = vmul.f32 %v193, %v2810
        %v3778 = vmul.f32 %v194, %v2812
        %v3779 = vmul.f32 %v195, %v2814
        %v3780 = vmul.f32 %v196, %v2816
        %v3781 = vmul.f32 %v197, %v2818
        %v3782 = vmul.f32 %v198, %v2820
        %v3783 = vmul.f32 %v199, %v2822
        %v3784 = vmul.f32 %v200, %v2824
        %v3785 = vmul.f32 %v201, %v2826
        %v3786 = vmul.f32 %v202, %v2828
        %v3787 = vmul.f32 %v203, %v2830
        %v3788 = vmul.f32 %v204, %v2832
        %v3789 = vmul.f32 %v205, %v2834
        %v3790 = vmul.f32 %v206, %v2836
        %v3791 = vmul.f32 %v207, %v2838
        %v3792 = vmul.f32 %v208, %v2840
        %v3793 = vmul.f32 %v209, %v2842
        %v3794 = vmul.f32 %v210, %v2844
        %v3795 = vmul.f32 %v211, %v2846
        %v3796 = vmul.f32 %v212, %v2848
        %v3797 = vmul.f32 %v213, %v2850
        %v3798 = vmul.f32 %v214, %v2852
        %v3799 = vmul.f32 %v215, %v2854
        %v3800 = vmul.f32 %v216, %v2856
        %v3801 = vmul.f32 %v217, %v2858
        %v3802 = vmul.f32 %v218, %v2860
        %v3803 = vmul.f32 %v219, %v2862
        %v3804 = vmul.f32 %v220, %v2864
        %v3805 = vmul.f32 %v221, %v2866
        %v3806 = vmul.f32 %v222, %v2868
        %v3807 = vmul.f32 %v223, %v2870
        %v3808 = vmul.f32 %v224, %v2872
        %v3809 = vmul.f32 %v225, %v2874
        %v3810 = vmul.f32 %v226, %v2876
        %v3811 = vmul.f32 %v227, %v2878
        %v3812 = vmul.f32 %v228, %v2880
        %v3813 = vmul.f32 %v229, %v2882
        %v3814 = vmul.f32 %v230, %v2884
        %v3815 = vmul.f32 %v231, %v2886
        %v3816 = vmul.f32 %v232, %v2888
        %v3817 = vmul.f32 %v233, %v2890
        %v3818 = vmul.f32 %v234, %v2892
        %v3819 = vmul.f32 %v235, %v2894
        %v3820 = vmul.f32 %v236, %v2896
        %v3821 = vmul.f32 %v237, %v2898
        %v3822 = vmul.f32 %v238, %v2900
        %v3823 = vmul.f32 %v239, %v2902
        %v3824 = vmul.f32 %v240, %v2904
        %v3825 = vmul.f32 %v241, %v2906
        %v3826 = vmul.f32 %v242, %v2908
        %v3827 = vmul.f32 %v243, %v2910
        %v3828 = vmul.f32 %v244, %v2912
        %v3829 = vmul.f32 %v245, %v2914
        %v3830 = vmul.f32 %v246, %v2916
        %v3831 = vmul.f32 %v247, %v2918
        %v3832 = vmul.f32 %v248, %v2920
        %v3833 = vmul.f32 %v249, %v2922
        %v3834 = vmul.f32 %v250, %v2924
        %v3835 = vmul.f32 %v251, %v2926
        %v3836 = vmul.f32 %v252, %v2928
        %v3837 = vmul.f32 %v253, %v2930
        %v3838 = vmul.f32 %v254, %v2932
        %v3839 = vmul.f32 %v255, %v2934
        %v3840 = vmul.f32 %v256, %v2936
        %v3841 = vmul.f32 %v257, %v2938
        %v3842 = vmul.f32 %v258, %v2940
        %v3843 = vmul.f32 %v259, %v2942
        %v3844 = vmul.f32 %v260, %v2944
        %v3845 = vmul.f32 %v261, %v2946
        %v3846 = vmul.f32 %v262, %v2948
        %v3847 = vmul.f32 %v263, %v2950
        %v3848 = vmul.f32 %v264, %v2952
        %v3849 = vmul.f32 %v265, %v2954
        %v3850 = vmul.f32 %v266, %v2956
        %v3851 = vmul.f32 %v267, %v2958
        %v3852 = vmul.f32 %v268, %v2960
        %v3853 = vmul.f32 %v269, %v2962
        %v3854 = vmul.f32 %v270, %v2964
        %v3855 = vmul.f32 %v271, %v2966
        %v3856 = vmul.f32 %v272, %v2968
        %v3857 = vmul.f32 %v273, %v2970
        %v3858 = vmul.f32 %v274, %v2972
        %v3859 = vmul.f32 %v275, %v2974
        %v3860 = vmul.f32 %v276, %v2976
        %v3861 = vmul.f32 %v277, %v2978
        %v3862 = vmul.f32 %v278, %v2980
        %v3863 = vmul.f32 %v279, %v2982
        %v3864 = vmul.f32 %v280, %v2984
        %v3865 = vmul.f32 %v281, %v2986
        %v3866 = vmul.f32 %v282, %v2988
        %v3867 = vmul.f32 %v283, %v2990
        %v3868 = vmul.f32 %v284, %v2992
        %v3869 = vmul.f32 %v285, %v2994
        %v3870 = vmul.f32 %v286, %v2996
        %v3871 = vmul.f32 %v287, %v2998
        %v3872 = vmul.f32 %v288, %v3000
        %v3873 = vmul.f32 %v289, %v3002
        %v3874 = vmul.f32 %v290, %v3004
        %v3875 = vmul.f32 %v291, %v3006
        %v3876 = vmul.f32 %v292, %v3008
        %v3877 = vmul.f32 %v293, %v3010
        %v3878 = vmul.f32 %v294, %v3012
        %v3879 = vmul.f32 %v295, %v3014
        %v3880 = vmul.f32 %v296, %v3016
        %v3881 = vmul.f32 %v297, %v3018
        %v3882 = vmul.f32 %v298, %v3020
        %v3883 = vmul.f32 %v299, %v3022
        %v3884 = vmul.f32 %v300, %v3024
        %v3885 = vmul.f32 %v301, %v3026
        %v3886 = vmul.f32 %v302, %v3028
        %v3887 = vmul.f32 %v303, %v3030
        %v3888 = vmul.f32 %v304, %v3032
        %v3889 = vmul.f32 %v305, %v3034
        %v3890 = vmul.f32 %v306, %v3036
        %v3891 = vmul.f32 %v307, %v3038
        %v3892 = vmul.f32 %v308, %v3040
        %v3893 = vmul.f32 %v309, %v3042
        %v3894 = vmul.f32 %v310, %v3044
        %v3895 = vmul.f32 %v311, %v3046
        %v3896 = vmul.f32 %v312, %v3048
        %v3897 = vmul.f32 %v313, %v3050
        %v3898 = vmul.f32 %v314, %v3052
        %v3899 = vmul.f32 %v315, %v3054
        %v3900 = vmul.f32 %v316, %v3056
        %v3901 = vmul.f32 %v317, %v3058
        %v3902 = vmul.f32 %v318, %v3060
        %v3903 = vmul.f32 %v319, %v3062
        %v3904 = vmul.f32 %v320, %v3064
        %v3905 = vmul.f32 %v321, %v3066
        %v3906 = vmul.f32 %v322, %v3068
        %v3907 = vmul.f32 %v323, %v3070
        %v3908 = vmul.f32 %v324, %v3072
        %v3909 = vmul.f32 %v325, %v3074
        %v3910 = vmul.f32 %v326, %v3076
        %v3911 = vmul.f32 %v327, %v3078
        %v3912 = vmul.f32 %v328, %v3080
        %v3913 = vmul.f32 %v329, %v3082
        %v3914 = vmul.f32 %v330, %v3084
        %v3915 = vmul.f32 %v331, %v3086
        %v3916 = vmul.f32 %v332, %v3088
        %v3917 = vmul.f32 %v333, %v3090
        %v3918 = vmul.f32 %v334, %v3092
        %v3919 = vmul.f32 %v335, %v3094
        %v3920 = vmul.f32 %v336, %v3096
        %v3921 = vmul.f32 %v337, %v3098
        %v3922 = vmul.f32 %v338, %v3100
        %v3923 = vmul.f32 %v339, %v3102
        %v3924 = vmul.f32 %v340, %v3104
        %v3925 = vmul.f32 %v341, %v3106
        %v3926 = vmul.f32 %v342, %v3108
        %v3927 = vmul.f32 %v343, %v3110
        %v3928 = vmul.f32 %v344, %v3112
        %v3929 = vmul.f32 %v345, %v3114
        %v3930 = vmul.f32 %v346, %v3116
        %v3931 = vmul.f32 %v347, %v3118
        %v3932 = vmul.f32 %v348, %v3120
        %v3933 = vmul.f32 %v349, %v3122
        %v3934 = vmul.f32 %v350, %v3124
        %v3935 = vmul.f32 %v351, %v3126
        %v3936 = vmul.f32 %v352, %v3128
        %v3937 = vmul.f32 %v353, %v3130
        %v3938 = vmul.f32 %v354, %v3132
        %v3939 = vmul.f32 %v355, %v3134
        %v3940 = vmul.f32 %v356, %v3136
        %v3941 = vmul.f32 %v357, %v3138
        %v3942 = vmul.f32 %v358, %v3140
        %v3943 = vmul.f32 %v359, %v3142
        %v3944 = vmul.f32 %v360, %v3144
        %v3945 = vmul.f32 %v361, %v3146
        %v3946 = vmul.f32 %v362, %v3148
        %v3947 = vmul.f32 %v363, %v3150
        %v3948 = vmul.f32 %v364, %v3152
        %v3949 = vmul.f32 %v365, %v3154
        %v3950 = vmul.f32 %v366, %v3156
        %v3951 = vmul.f32 %v367, %v3158
        %v3952 = vmul.f32 %v368, %v3160
        %v3953 = vmul.f32 %v369, %v3162
        %v3954 = vmul.f32 %v370, %v3164
        %v3955 = vmul.f32 %v371, %v3166
        %v3956 = vmul.f32 %v372, %v3168
        %v3957 = vmul.f32 %v373, %v3170
        %v3958 = vmul.f32 %v374, %v3172
        %v3959 = vmul.f32 %v375, %v3174
        %v3960 = vmul.f32 %v376, %v3176
        %v3961 = vmul.f32 %v377, %v3178
        %v3962 = vmul.f32 %v378, %v3180
        %v3963 = vmul.f32 %v379, %v3182
        %v3964 = vmul.f32 %v380, %v3184
        %v3965 = vmul.f32 %v381, %v3186
        %v3966 = vmul.f32 %v382, %v3188
        %v3967 = vmul.f32 %v383, %v3190
        %v3968 = vmul.f32 %v384, %v3192
        %v3969 = vmul.f32 %v385, %v3194
        %v3970 = vmul.f32 %v386, %v3196
        %v3971 = vmul.f32 %v387, %v3198
        %v3972 = vmul.f32 %v388, %v3200
        %v3973 = vmul.f32 %v389, %v3202
        %v3974 = vmul.f32 %v390, %v3204
        %v3975 = vmul.f32 %v391, %v3206
        %v3976 = vmul.f32 %v392, %v3208
        %v3977 = vmul.f32 %v393, %v3210
        %v3978 = vmul.f32 %v394, %v3212
        %v3979 = vmul.f32 %v395, %v3214
        %v3980 = vmul.f32 %v396, %v3216
        %v3981 = vmul.f32 %v397, %v3218
        %v3982 = vmul.f32 %v398, %v3220
        %v3983 = vmul.f32 %v399, %v3222
        %v3984 = vmul.f32 %v400, %v3224
        %v3985 = vmul.f32 %v401, %v3226
        %v3986 = vmul.f32 %v402, %v3228
        %v3987 = vmul.f32 %v403, %v3230
        %v3988 = vmul.f32 %v404, %v3232
        %v3989 = vmul.f32 %v405, %v3234
        %v3990 = vmul.f32 %v406, %v3236
        %v3991 = vmul.f32 %v407, %v3238
        %v3992 = vmul.f32 %v408, %v3240
        %v3993 = vmul.f32 %v409, %v3242
        %v3994 = vmul.f32 %v410, %v3244
        %v3995 = vmul.f32 %v411, %v3246
        %v3996 = vmul.f32 %v412, %v3248
        %v3997 = vmul.f32 %v413, %v3250
        %v3998 = vmul.f32 %v414, %v3252
        %v3999 = vmul.f32 %v415, %v3254
        %v4000 = vmul.f32 %v416, %v3256
        %v4001 = vmul.f32 %v417, %v3258
        %v4002 = vmul.f32 %v418, %v3260
        %v4003 = vmul.f32 %v419, %v3262
        %v4004 = vmul.f32 %v420, %v3264
        %v4005 = vmul.f32 %v421, %v3266
        %v4006 = vmul.f32 %v422, %v3268
        %v4007 = vmul.f32 %v423, %v3270
        %v4008 = vmul.f32 %v424, %v3272
        %v4009 = vmul.f32 %v425, %v3274
        %v4010 = vmul.f32 %v426, %v3276
        %v4011 = vmul.f32 %v427, %v3278
        %v4012 = vmul.f32 %v428, %v3280
        %v4013 = vmul.f32 %v429, %v3282
        %v4014 = vmul.f32 %v430, %v3284
        %v4015 = vmul.f32 %v431, %v3286
        %v4016 = vmul.f32 %v432, %v3288
        %v4017 = vmul.f32 %v433, %v3290
        %v4018 = vmul.f32 %v434, %v3292
        %v4019 = vmul.f32 %v435, %v3294
        %v4020 = vmul.f32 %v436, %v3296
        %v4021 = vmul.f32 %v437, %v3298
        %v4022 = vmul.f32 %v438, %v3300
        %v4023 = vmul.f32 %v439, %v3302
        %v4024 = vmul.f32 %v440, %v3304
        %v4025 = vmul.f32 %v441, %v3306
        %v4026 = vmul.f32 %v442, %v3308
        %v4027 = vmul.f32 %v443, %v3310
        %v4028 = vmul.f32 %v444, %v3312
        %v4029 = vmul.f32 %v445, %v3314
        %v4030 = vmul.f32 %v446, %v3316
        %v4031 = vmul.f32 %v447, %v3318
        %v4032 = vmul.f32 %v448, %v3320
        %v4033 = vmul.f32 %v449, %v3322
        %v4034 = vmul.f32 %v450, %v3324
        %v4035 = vmul.f32 %v451, %v3326
        %v4036 = vmul.f32 %v452, %v3328
        %v4037 = vmul.f32 %v453, %v3330
        %v4038 = vmul.f32 %v454, %v3332
        %v4039 = vmul.f32 %v455, %v3334
        %v4040 = vmul.f32 %v456, %v3336
        %v4041 = vmul.f32 %v457, %v3338
        %v4042 = vmul.f32 %v458, %v3340
        %v4043 = vmul.f32 %v459, %v3342
        %v4044 = vmul.f32 %v460, %v3344
        %v4045 = vmul.f32 %v461, %v3346
        %v4046 = vmul.f32 %v462, %v3348
        %v4047 = vmul.f32 %v463, %v3350
        %v4048 = vmul.f32 %v464, %v3352
        %v4049 = vmul.f32 %v465, %v3354
        %v4050 = vmul.f32 %v466, %v3356
        %v4051 = vmul.f32 %v467, %v3358
        %v4052 = vmul.f32 %v468, %v3360
        %v4053 = vmul.f32 %v469, %v3362
        %v4054 = vmul.f32 %v470, %v3364
        %v4055 = vmul.f32 %v471, %v3366
        %v4056 = vmul.f32 %v472, %v3368
        %v4057 = vmul.f32 %v473, %v3370
        %v4058 = vmul.f32 %v474, %v3372
        %v4059 = vmul.f32 %v475, %v3374
        %v4060 = vmul.f32 %v476, %v3376
        %v4061 = vmul.f32 %v477, %v3378
        %v4062 = vmul.f32 %v478, %v3380
        %v4063 = vmul.f32 %v479, %v3382
        %v4064 = vmul.f32 %v480, %v3384
        %v4065 = vmul.f32 %v481, %v3386
        %v4066 = vmul.f32 %v482, %v3388
        %v4067 = vmul.f32 %v483, %v3390
        %v4068 = vmul.f32 %v484, %v3392
        %v4069 = vmul.f32 %v485, %v3394
        %v4070 = vmul.f32 %v486, %v3396
        %v4071 = vmul.f32 %v487, %v3398
        %v4072 = vmul.f32 %v488, %v3400
        %v4073 = vmul.f32 %v489, %v3402
        %v4074 = vmul.f32 %v490, %v3404
        %v4075 = vmul.f32 %v491, %v3406
        %v4076 = vmul.f32 %v492, %v3408
        %v4077 = vmul.f32 %v493, %v3410
        %v4078 = vmul.f32 %v494, %v3412
        %v4079 = vmul.f32 %v495, %v3414
        %v4080 = vmul.f32 %v496, %v3416
        %v4081 = vmul.f32 %v497, %v3418
        %v4082 = vmul.f32 %v498, %v3420
        %v4083 = vmul.f32 %v499, %v3422
        %v4084 = vmul.f32 %v500, %v3424
        %v4085 = vmul.f32 %v501, %v3426
        %v4086 = vmul.f32 %v502, %v3428
        %v4087 = vmul.f32 %v503, %v3430
        %v4088 = vmul.f32 %v504, %v3432
        %v4089 = vmul.f32 %v505, %v3434
        %v4090 = vmul.f32 %v506, %v3436
        %v4091 = vmul.f32 %v507, %v3438
        %v4092 = vmul.f32 %v508, %v3440
        %v4093 = vmul.f32 %v509, %v3442
        %v4094 = vmul.f32 %v510, %v3444
        %v4095 = vmul.f32 %v511, %v3446
        %v4096 = vmul.f32 %v512, %v3448
        %v4097 = vmul.f32 %v513, %v3450
        %v4098 = vmul.f32 %v514, %v3452
        %v4099 = vmul.f32 %v515, %v3454
        %v4100 = vmul.f32 %v516, %v3456
        %v4101 = vmul.f32 %v517, %v3458
        %v4102 = vmul.f32 %v518, %v3460
        %v4103 = vmul.f32 %v519, %v3462
        %v4104 = vmul.f32 %v520, %v3464
        %v4105 = vmul.f32 %v521, %v3466
        %v4106 = vmul.f32 %v522, %v3468
        %v4107 = vmul.f32 %v523, %v3470
        %v4108 = vmul.f32 %v524, %v3472
        %v4109 = vmul.f32 %v525, %v3474
        %v4110 = vmul.f32 %v526, %v3476
        %v4111 = vmul.f32 %v527, %v3478
        %v4112 = vmul.f32 %v528, %v3480
        %v4113 = vmul.f32 %v529, %v3482
        %v4114 = vmul.f32 %v530, %v3484
        %v4115 = vmul.f32 %v531, %v3486
        %v4116 = vmul.f32 %v532, %v3488
        %v4117 = vmul.f32 %v533, %v3490
        %v4118 = vmul.f32 %v534, %v3492
        %v4119 = vmul.f32 %v535, %v3494
        %v4120 = vmul.f32 %v536, %v3496
        %v4121 = vmul.f32 %v537, %v3498
        %v4122 = vmul.f32 %v538, %v3500
        %v4123 = vmul.f32 %v539, %v3502
        %v4124 = vmul.f32 %v540, %v3504
        %v4125 = vmul.f32 %v541, %v3506
        %v4126 = vmul.f32 %v542, %v3508
        %v4127 = vmul.f32 %v543, %v3510
        %v4128 = vmul.f32 %v544, %v3512
        %v4129 = vmul.f32 %v545, %v3514
        %v4130 = vmul.f32 %v546, %v3516
        %v4131 = vmul.f32 %v547, %v3518
        %v4132 = vmul.f32 %v548, %v3520
        %v4133 = vmul.f32 %v549, %v3522
        %v4134 = vmul.f32 %v550, %v3524
        %v4135 = vmul.f32 %v551, %v3526
        %v4136 = vmul.f32 %v552, %v3528
        %v4137 = vmul.f32 %v553, %v3530
        %v4138 = vmul.f32 %v554, %v3532
        %v4139 = vmul.f32 %v555, %v3534
        %v4140 = vmul.f32 %v556, %v3536
        %v4141 = vmul.f32 %v557, %v3538
        %v4142 = vmul.f32 %v558, %v3540
        %v4143 = vmul.f32 %v559, %v3542
        %v4144 = vmul.f32 %v560, %v3544
        %v4145 = vmul.f32 %v561, %v3546
        %v4146 = vmul.f32 %v562, %v3548
        %v4147 = vmul.f32 %v563, %v3550
        %v4148 = vmul.f32 %v564, %v3552
        %v4149 = vmul.f32 %v565, %v3554
        %v4150 = vmul.f32 %v566, %v3556
        %v4151 = vmul.f32 %v567, %v3558
        %v4152 = vmul.f32 %v568, %v3560
        %v4153 = vmul.f32 %v569, %v3562
        %v4154 = vmul.f32 %v570, %v3564
        %v4155 = vmul.f32 %v571, %v3566
        %v4156 = vmul.f32 %v572, %v3568
        %v4157 = vmul.f32 %v573, %v3570
        %v4158 = vmul.f32 %v574, %v3572
        %v4159 = vmul.f32 %v575, %v3574
        %v4160 = vmul.f32 %v576, %v3576
        %v4161 = vmul.f32 %v577, %v3578
        %v4162 = vmul.f32 %v578, %v3580
        %v4163 = vmul.f32 %v579, %v3582
        %v4164 = vmul.f32 %v580, %v3584
        %v4165 = vmul.f32 %v581, %v3586
        %v4166 = vmul.f32 %v582, %v3588
        %v4167 = vmul.f32 %v583, %v3590
        %v4168 = vmul.f32 %v584, %v3592
        %v4169 = vmul.f32 %v585, %v3594
        %v4170 = vmul.f32 %v586, %v3596
        %v4171 = vmul.f32 %v587, %v3598
        %v4172 = vmul.f32 %v588, %v3600
        %v4173 = vmul.f32 %v589, %v3602
        %v4174 = vmul.f32 %v590, %v3604
        %v4175 = vmul.f32 %v591, %v3606
        %v4176 = vmul.f32 %v592, %v3608
        %v4177 = vmul.f32 %v593, %v3610
        %v4178 = vmul.f32 %v594, %v3612
        %v4179 = vmul.f32 %v595, %v3614
        %v4180 = vmul.f32 %v596, %v3616
        %v4181 = vmul.f32 %v597, %v3618
        %v4182 = vmul.f32 %v598, %v3620
        %v4183 = vmul.f32 %v599, %v3622
        %v4184 = vmul.f32 %v600, %v3624
        %v4185 = vmul.f32 %v601, %v3626
        %v4186 = vmul.f32 %v602, %v3628
        %v4187 = vmul.f32 %v603, %v3630
        %v4188 = vmul.f32 %v604, %v3632
        %v4189 = vmul.f32 %v605, %v3634
        %v4190 = vmul.f32 %v606, %v3636
        %v4191 = vmul.f32 %v607, %v3638
        %v4192 = vmul.f32 %v608, %v3640
        %v4193 = vmul.f32 %v609, %v3642
        %v4194 = vmul.f32 %v610, %v3644
        %v4195 = vmul.f32 %v611, %v3646
        %v4196 = vmul.f32 %v612, %v3648
        %v4197 = vmul.f32 %v613, %v3650
        %v4198 = vmul.f32 %v614, %v3652
        %v4199 = vmul.f32 %v615, %v3654
        %v4200 = vmul.f32 %v616, %v3656
        %v4201 = vmul.f32 %v617, %v3658
        %v4202 = vmul.f32 %v618, %v3660
        %v4203 = vmul.f32 %v619, %v3662
        %v4204 = vmul.f32 %v620, %v3664
        %v4205 = vmul.f32 %v621, %v3666
        %v4206 = vmul.f32 %v622, %v3668
        %v4207 = vmul.f32 %v623, %v3670
        %v4208 = vmul.f32 %v624, %v3672
        %v4209 = vmul.f32 %v625, %v3674
        %v4210 = vmul.f32 %v626, %v3676
        %v4211 = vmul.f32 %v627, %v3678
        %v4212 = vmul.f32 %v628, %v3680
        %v4213 = vmul.f32 %v629, %v3682
        %v4214 = vmul.f32 %v630, %v3684
        %v4215 = vmul.f32 %v631, %v3686
        %v4216 = vmul.f32 %v632, %v3688
        %v4217 = vmul.f32 %v633, %v3690
        %v4218 = vmul.f32 %v634, %v3692
        %v4219 = vmul.f32 %v635, %v3694
        %v4220 = vmul.f32 %v636, %v3696
        %v4221 = vmul.f32 %v637, %v3698
        %v4222 = vmul.f32 %v638, %v3700
        %v4223 = vmul.f32 %v639, %v3702
        %v4224 = vmul.f32 %v640, %v3704
        %v4225 = vmul.f32 %v641, %v3706
        %v4226 = vmul.f32 %v642, %v3708
        %v4227 = vmul.f32 %v643, %v3710
        %v4228 = vmul.f32 %v644, %v3712
        %v4229 = vmul.f32 %v645, %v3714
        %v4230 = vmul.f32 %v646, %v3716
        %v4231 = vmul.f32 %v647, %v3718
        %v4232 = vmul.f32 %v648, %v3720
        %4233 = vst [vmem:[%s134] sm:$0xff] %v3721
        %4234 = vst [vmem:[%s134 + $0x8] sm:$0xff] %v3722
        %4235 = vst [vmem:[%s134 + $0x10] sm:$0xff] %v3723
        %4236 = vst [vmem:[%s134 + $0x18] sm:$0xff] %v3724
        %4237 = vst [vmem:[%s134 + $0x20] sm:$0xff] %v3725
        %4238 = vst [vmem:[%s134 + $0x28] sm:$0xff] %v3726
        %4239 = vst [vmem:[%s134 + $0x30] sm:$0xff] %v3727
        %4240 = vst [vmem:[%s134 + $0x38] sm:$0xff] %v3728
        %4241 = vst [vmem:[%s134 + $0x40] sm:$0xff] %v3729
        %4242 = vst [vmem:[%s134 + $0x48] sm:$0xff] %v3730
        %4243 = vst [vmem:[%s134 + $0x50] sm:$0xff] %v3731
        %4244 = vst [vmem:[%s134 + $0x58] sm:$0xff] %v3732
        %4245 = vst [vmem:[%s134 + $0x60] sm:$0xff] %v3733
        %4246 = vst [vmem:[%s134 + $0x68] sm:$0xff] %v3734
        %4247 = vst [vmem:[%s134 + $0x70] sm:$0xff] %v3735
        %4248 = vst [vmem:[%s134 + $0x78] sm:$0xff] %v3736
        %4249 = vst [vmem:[%s134 + $0x80] sm:$0xff] %v3737
        %4250 = vst [vmem:[%s134 + $0x88] sm:$0xff] %v3738
        %4251 = vst [vmem:[%s134 + $0x90] sm:$0xff] %v3739
        %4252 = vst [vmem:[%s134 + $0x98] sm:$0xff] %v3740
        %4253 = vst [vmem:[%s134 + $0xa0] sm:$0xff] %v3741
        %4254 = vst [vmem:[%s134 + $0xa8] sm:$0xff] %v3742
        %4255 = vst [vmem:[%s134 + $0xb0] sm:$0xff] %v3743
        %4256 = vst [vmem:[%s134 + $0xb8] sm:$0xff] %v3744
        %4257 = vst [vmem:[%s134 + $0xc0] sm:$0xff] %v3745
        %4258 = vst [vmem:[%s134 + $0xc8] sm:$0xff] %v3746
        %4259 = vst [vmem:[%s134 + $0xd0] sm:$0xff] %v3747
        %4260 = vst [vmem:[%s134 + $0xd8] sm:$0xff] %v3748
        %4261 = vst [vmem:[%s134 + $0xe0] sm:$0xff] %v3749
        %4262 = vst [vmem:[%s134 + $0xe8] sm:$0xff] %v3750
        %4263 = vst [vmem:[%s134 + $0xf0] sm:$0xff] %v3751
        %4264 = vst [vmem:[%s134 + $0xf8] sm:$0xff] %v3752
        %4265 = vst [vmem:[%s134 + $0x100] sm:$0xff] %v3753
        %4266 = vst [vmem:[%s134 + $0x108] sm:$0xff] %v3754
        %4267 = vst [vmem:[%s134 + $0x110] sm:$0xff] %v3755
        %4268 = vst [vmem:[%s134 + $0x118] sm:$0xff] %v3756
        %4269 = vst [vmem:[%s134 + $0x120] sm:$0xff] %v3757
        %4270 = vst [vmem:[%s134 + $0x128] sm:$0xff] %v3758
        %4271 = vst [vmem:[%s134 + $0x130] sm:$0xff] %v3759
        %4272 = vst [vmem:[%s134 + $0x138] sm:$0xff] %v3760
        %4273 = vst [vmem:[%s134 + $0x140] sm:$0xff] %v3761
        %4274 = vst [vmem:[%s134 + $0x148] sm:$0xff] %v3762
        %4275 = vst [vmem:[%s134 + $0x150] sm:$0xff] %v3763
        %4276 = vst [vmem:[%s134 + $0x158] sm:$0xff] %v3764
        %4277 = vst [vmem:[%s134 + $0x160] sm:$0xff] %v3765
        %4278 = vst [vmem:[%s134 + $0x168] sm:$0xff] %v3766
        %4279 = vst [vmem:[%s134 + $0x170] sm:$0xff] %v3767
        %4280 = vst [vmem:[%s134 + $0x178] sm:$0xff] %v3768
        %4281 = vst [vmem:[%s134 + $0x180] sm:$0xff] %v3769
        %4282 = vst [vmem:[%s134 + $0x188] sm:$0xff] %v3770
        %4283 = vst [vmem:[%s134 + $0x190] sm:$0xff] %v3771
        %4284 = vst [vmem:[%s134 + $0x198] sm:$0xff] %v3772
        %4285 = vst [vmem:[%s134 + $0x1a0] sm:$0xff] %v3773
        %4286 = vst [vmem:[%s134 + $0x1a8] sm:$0xff] %v3774
        %4287 = vst [vmem:[%s134 + $0x1b0] sm:$0xff] %v3775
        %4288 = vst [vmem:[%s134 + $0x1b8] sm:$0xff] %v3776
        %4289 = vst [vmem:[%s134 + $0x1c0] sm:$0xff] %v3777
        %4290 = vst [vmem:[%s134 + $0x1c8] sm:$0xff] %v3778
        %4291 = vst [vmem:[%s134 + $0x1d0] sm:$0xff] %v3779
        %4292 = vst [vmem:[%s134 + $0x1d8] sm:$0xff] %v3780
        %4293 = vst [vmem:[%s134 + $0x1e0] sm:$0xff] %v3781
        %4294 = vst [vmem:[%s134 + $0x1e8] sm:$0xff] %v3782
        %4295 = vst [vmem:[%s134 + $0x1f0] sm:$0xff] %v3783
        %4296 = vst [vmem:[%s134 + $0x1f8] sm:$0xff] %v3784
        %4297 = vst [vmem:[%s134 + $0x200] sm:$0xff] %v3785
        %4298 = vst [vmem:[%s134 + $0x208] sm:$0xff] %v3786
        %4299 = vst [vmem:[%s134 + $0x210] sm:$0xff] %v3787
        %4300 = vst [vmem:[%s134 + $0x218] sm:$0xff] %v3788
        %4301 = vst [vmem:[%s134 + $0x220] sm:$0xff] %v3789
        %4302 = vst [vmem:[%s134 + $0x228] sm:$0xff] %v3790
        %4303 = vst [vmem:[%s134 + $0x230] sm:$0xff] %v3791
        %4304 = vst [vmem:[%s134 + $0x238] sm:$0xff] %v3792
        %4305 = vst [vmem:[%s134 + $0x240] sm:$0xff] %v3793
        %4306 = vst [vmem:[%s134 + $0x248] sm:$0xff] %v3794
        %4307 = vst [vmem:[%s134 + $0x250] sm:$0xff] %v3795
        %4308 = vst [vmem:[%s134 + $0x258] sm:$0xff] %v3796
        %4309 = vst [vmem:[%s134 + $0x260] sm:$0xff] %v3797
        %4310 = vst [vmem:[%s134 + $0x268] sm:$0xff] %v3798
        %4311 = vst [vmem:[%s134 + $0x270] sm:$0xff] %v3799
        %4312 = vst [vmem:[%s134 + $0x278] sm:$0xff] %v3800
        %4313 = vst [vmem:[%s134 + $0x280] sm:$0xff] %v3801
        %4314 = vst [vmem:[%s134 + $0x288] sm:$0xff] %v3802
        %4315 = vst [vmem:[%s134 + $0x290] sm:$0xff] %v3803
        %4316 = vst [vmem:[%s134 + $0x298] sm:$0xff] %v3804
        %4317 = vst [vmem:[%s134 + $0x2a0] sm:$0xff] %v3805
        %4318 = vst [vmem:[%s134 + $0x2a8] sm:$0xff] %v3806
        %4319 = vst [vmem:[%s134 + $0x2b0] sm:$0xff] %v3807
        %4320 = vst [vmem:[%s134 + $0x2b8] sm:$0xff] %v3808
        %4321 = vst [vmem:[%s134 + $0x2c0] sm:$0xff] %v3809
        %4322 = vst [vmem:[%s134 + $0x2c8] sm:$0xff] %v3810
        %4323 = vst [vmem:[%s134 + $0x2d0] sm:$0xff] %v3811
        %4324 = vst [vmem:[%s134 + $0x2d8] sm:$0xff] %v3812
        %4325 = vst [vmem:[%s134 + $0x2e0] sm:$0xff] %v3813
        %4326 = vst [vmem:[%s134 + $0x2e8] sm:$0xff] %v3814
        %4327 = vst [vmem:[%s134 + $0x2f0] sm:$0xff] %v3815
        %4328 = vst [vmem:[%s134 + $0x2f8] sm:$0xff] %v3816
        %4329 = vst [vmem:[%s134 + $0x300] sm:$0xff] %v3817
        %4330 = vst [vmem:[%s134 + $0x308] sm:$0xff] %v3818
        %4331 = vst [vmem:[%s134 + $0x310] sm:$0xff] %v3819
        %4332 = vst [vmem:[%s134 + $0x318] sm:$0xff] %v3820
        %4333 = vst [vmem:[%s134 + $0x320] sm:$0xff] %v3821
        %4334 = vst [vmem:[%s134 + $0x328] sm:$0xff] %v3822
        %4335 = vst [vmem:[%s134 + $0x330] sm:$0xff] %v3823
        %4336 = vst [vmem:[%s134 + $0x338] sm:$0xff] %v3824
        %4337 = vst [vmem:[%s134 + $0x340] sm:$0xff] %v3825
        %4338 = vst [vmem:[%s134 + $0x348] sm:$0xff] %v3826
        %4339 = vst [vmem:[%s134 + $0x350] sm:$0xff] %v3827
        %4340 = vst [vmem:[%s134 + $0x358] sm:$0xff] %v3828
        %4341 = vst [vmem:[%s134 + $0x360] sm:$0xff] %v3829
        %4342 = vst [vmem:[%s134 + $0x368] sm:$0xff] %v3830
        %4343 = vst [vmem:[%s134 + $0x370] sm:$0xff] %v3831
        %4344 = vst [vmem:[%s134 + $0x378] sm:$0xff] %v3832
        %4345 = vst [vmem:[%s134 + $0x380] sm:$0xff] %v3833
        %4346 = vst [vmem:[%s134 + $0x388] sm:$0xff] %v3834
        %4347 = vst [vmem:[%s134 + $0x390] sm:$0xff] %v3835
        %4348 = vst [vmem:[%s134 + $0x398] sm:$0xff] %v3836
        %4349 = vst [vmem:[%s134 + $0x3a0] sm:$0xff] %v3837
        %4350 = vst [vmem:[%s134 + $0x3a8] sm:$0xff] %v3838
        %4351 = vst [vmem:[%s134 + $0x3b0] sm:$0xff] %v3839
        %4352 = vst [vmem:[%s134 + $0x3b8] sm:$0xff] %v3840
        %4353 = vst [vmem:[%s134 + $0x3c0] sm:$0xff] %v3841
        %4354 = vst [vmem:[%s134 + $0x3c8] sm:$0xff] %v3842
        %4355 = vst [vmem:[%s134 + $0x3d0] sm:$0xff] %v3843
        %4356 = vst [vmem:[%s134 + $0x3d8] sm:$0xff] %v3844
        %4357 = vst [vmem:[%s134 + $0x3e0] sm:$0xff] %v3845
        %4358 = vst [vmem:[%s134 + $0x3e8] sm:$0xff] %v3846
        %4359 = vst [vmem:[%s134 + $0x3f0] sm:$0xff] %v3847
        %4360 = vst [vmem:[%s134 + $0x3f8] sm:$0xff] %v3848
        %4361 = vst [vmem:[%s134 + $0x400] sm:$0xff] %v3849
        %4362 = vst [vmem:[%s134 + $0x408] sm:$0xff] %v3850
        %4363 = vst [vmem:[%s134 + $0x410] sm:$0xff] %v3851
        %4364 = vst [vmem:[%s134 + $0x418] sm:$0xff] %v3852
        %4365 = vst [vmem:[%s134 + $0x420] sm:$0xff] %v3853
        %4366 = vst [vmem:[%s134 + $0x428] sm:$0xff] %v3854
        %4367 = vst [vmem:[%s134 + $0x430] sm:$0xff] %v3855
        %4368 = vst [vmem:[%s134 + $0x438] sm:$0xff] %v3856
        %4369 = vst [vmem:[%s134 + $0x440] sm:$0xff] %v3857
        %4370 = vst [vmem:[%s134 + $0x448] sm:$0xff] %v3858
        %4371 = vst [vmem:[%s134 + $0x450] sm:$0xff] %v3859
        %4372 = vst [vmem:[%s134 + $0x458] sm:$0xff] %v3860
        %4373 = vst [vmem:[%s134 + $0x460] sm:$0xff] %v3861
        %4374 = vst [vmem:[%s134 + $0x468] sm:$0xff] %v3862
        %4375 = vst [vmem:[%s134 + $0x470] sm:$0xff] %v3863
        %4376 = vst [vmem:[%s134 + $0x478] sm:$0xff] %v3864
        %4377 = vst [vmem:[%s134 + $0x480] sm:$0xff] %v3865
        %4378 = vst [vmem:[%s134 + $0x488] sm:$0xff] %v3866
        %4379 = vst [vmem:[%s134 + $0x490] sm:$0xff] %v3867
        %4380 = vst [vmem:[%s134 + $0x498] sm:$0xff] %v3868
        %4381 = vst [vmem:[%s134 + $0x4a0] sm:$0xff] %v3869
        %4382 = vst [vmem:[%s134 + $0x4a8] sm:$0xff] %v3870
        %4383 = vst [vmem:[%s134 + $0x4b0] sm:$0xff] %v3871
        %4384 = vst [vmem:[%s134 + $0x4b8] sm:$0xff] %v3872
        %4385 = vst [vmem:[%s134 + $0x4c0] sm:$0xff] %v3873
        %4386 = vst [vmem:[%s134 + $0x4c8] sm:$0xff] %v3874
        %4387 = vst [vmem:[%s134 + $0x4d0] sm:$0xff] %v3875
        %4388 = vst [vmem:[%s134 + $0x4d8] sm:$0xff] %v3876
        %4389 = vst [vmem:[%s134 + $0x4e0] sm:$0xff] %v3877
        %4390 = vst [vmem:[%s134 + $0x4e8] sm:$0xff] %v3878
        %4391 = vst [vmem:[%s134 + $0x4f0] sm:$0xff] %v3879
        %4392 = vst [vmem:[%s134 + $0x4f8] sm:$0xff] %v3880
        %4393 = vst [vmem:[%s134 + $0x500] sm:$0xff] %v3881
        %4394 = vst [vmem:[%s134 + $0x508] sm:$0xff] %v3882
        %4395 = vst [vmem:[%s134 + $0x510] sm:$0xff] %v3883
        %4396 = vst [vmem:[%s134 + $0x518] sm:$0xff] %v3884
        %4397 = vst [vmem:[%s134 + $0x520] sm:$0xff] %v3885
        %4398 = vst [vmem:[%s134 + $0x528] sm:$0xff] %v3886
        %4399 = vst [vmem:[%s134 + $0x530] sm:$0xff] %v3887
        %4400 = vst [vmem:[%s134 + $0x538] sm:$0xff] %v3888
        %4401 = vst [vmem:[%s134 + $0x540] sm:$0xff] %v3889
        %4402 = vst [vmem:[%s134 + $0x548] sm:$0xff] %v3890
        %4403 = vst [vmem:[%s134 + $0x550] sm:$0xff] %v3891
        %4404 = vst [vmem:[%s134 + $0x558] sm:$0xff] %v3892
        %4405 = vst [vmem:[%s134 + $0x560] sm:$0xff] %v3893
        %4406 = vst [vmem:[%s134 + $0x568] sm:$0xff] %v3894
        %4407 = vst [vmem:[%s134 + $0x570] sm:$0xff] %v3895
        %4408 = vst [vmem:[%s134 + $0x578] sm:$0xff] %v3896
        %4409 = vst [vmem:[%s134 + $0x580] sm:$0xff] %v3897
        %4410 = vst [vmem:[%s134 + $0x588] sm:$0xff] %v3898
        %4411 = vst [vmem:[%s134 + $0x590] sm:$0xff] %v3899
        %4412 = vst [vmem:[%s134 + $0x598] sm:$0xff] %v3900
        %4413 = vst [vmem:[%s134 + $0x5a0] sm:$0xff] %v3901
        %4414 = vst [vmem:[%s134 + $0x5a8] sm:$0xff] %v3902
        %4415 = vst [vmem:[%s134 + $0x5b0] sm:$0xff] %v3903
        %4416 = vst [vmem:[%s134 + $0x5b8] sm:$0xff] %v3904
        %4417 = vst [vmem:[%s134 + $0x5c0] sm:$0xff] %v3905
        %4418 = vst [vmem:[%s134 + $0x5c8] sm:$0xff] %v3906
        %4419 = vst [vmem:[%s134 + $0x5d0] sm:$0xff] %v3907
        %4420 = vst [vmem:[%s134 + $0x5d8] sm:$0xff] %v3908
        %4421 = vst [vmem:[%s134 + $0x5e0] sm:$0xff] %v3909
        %4422 = vst [vmem:[%s134 + $0x5e8] sm:$0xff] %v3910
        %4423 = vst [vmem:[%s134 + $0x5f0] sm:$0xff] %v3911
        %4424 = vst [vmem:[%s134 + $0x5f8] sm:$0xff] %v3912
        %4425 = vst [vmem:[%s134 + $0x600] sm:$0xff] %v3913
        %4426 = vst [vmem:[%s134 + $0x608] sm:$0xff] %v3914
        %4427 = vst [vmem:[%s134 + $0x610] sm:$0xff] %v3915
        %4428 = vst [vmem:[%s134 + $0x618] sm:$0xff] %v3916
        %4429 = vst [vmem:[%s134 + $0x620] sm:$0xff] %v3917
        %4430 = vst [vmem:[%s134 + $0x628] sm:$0xff] %v3918
        %4431 = vst [vmem:[%s134 + $0x630] sm:$0xff] %v3919
        %4432 = vst [vmem:[%s134 + $0x638] sm:$0xff] %v3920
        %4433 = vst [vmem:[%s134 + $0x640] sm:$0xff] %v3921
        %4434 = vst [vmem:[%s134 + $0x648] sm:$0xff] %v3922
        %4435 = vst [vmem:[%s134 + $0x650] sm:$0xff] %v3923
        %4436 = vst [vmem:[%s134 + $0x658] sm:$0xff] %v3924
        %4437 = vst [vmem:[%s134 + $0x660] sm:$0xff] %v3925
        %4438 = vst [vmem:[%s134 + $0x668] sm:$0xff] %v3926
        %4439 = vst [vmem:[%s134 + $0x670] sm:$0xff] %v3927
        %4440 = vst [vmem:[%s134 + $0x678] sm:$0xff] %v3928
        %4441 = vst [vmem:[%s134 + $0x680] sm:$0xff] %v3929
        %4442 = vst [vmem:[%s134 + $0x688] sm:$0xff] %v3930
        %4443 = vst [vmem:[%s134 + $0x690] sm:$0xff] %v3931
        %4444 = vst [vmem:[%s134 + $0x698] sm:$0xff] %v3932
        %4445 = vst [vmem:[%s134 + $0x6a0] sm:$0xff] %v3933
        %4446 = vst [vmem:[%s134 + $0x6a8] sm:$0xff] %v3934
        %4447 = vst [vmem:[%s134 + $0x6b0] sm:$0xff] %v3935
        %4448 = vst [vmem:[%s134 + $0x6b8] sm:$0xff] %v3936
        %4449 = vst [vmem:[%s134 + $0x6c0] sm:$0xff] %v3937
        %4450 = vst [vmem:[%s134 + $0x6c8] sm:$0xff] %v3938
        %4451 = vst [vmem:[%s134 + $0x6d0] sm:$0xff] %v3939
        %4452 = vst [vmem:[%s134 + $0x6d8] sm:$0xff] %v3940
        %4453 = vst [vmem:[%s134 + $0x6e0] sm:$0xff] %v3941
        %4454 = vst [vmem:[%s134 + $0x6e8] sm:$0xff] %v3942
        %4455 = vst [vmem:[%s134 + $0x6f0] sm:$0xff] %v3943
        %4456 = vst [vmem:[%s134 + $0x6f8] sm:$0xff] %v3944
        %4457 = vst [vmem:[%s134 + $0x700] sm:$0xff] %v3945
        %4458 = vst [vmem:[%s134 + $0x708] sm:$0xff] %v3946
        %4459 = vst [vmem:[%s134 + $0x710] sm:$0xff] %v3947
        %4460 = vst [vmem:[%s134 + $0x718] sm:$0xff] %v3948
        %4461 = vst [vmem:[%s134 + $0x720] sm:$0xff] %v3949
        %4462 = vst [vmem:[%s134 + $0x728] sm:$0xff] %v3950
        %4463 = vst [vmem:[%s134 + $0x730] sm:$0xff] %v3951
        %4464 = vst [vmem:[%s134 + $0x738] sm:$0xff] %v3952
        %4465 = vst [vmem:[%s134 + $0x740] sm:$0xff] %v3953
        %4466 = vst [vmem:[%s134 + $0x748] sm:$0xff] %v3954
        %4467 = vst [vmem:[%s134 + $0x750] sm:$0xff] %v3955
        %4468 = vst [vmem:[%s134 + $0x758] sm:$0xff] %v3956
        %4469 = vst [vmem:[%s134 + $0x760] sm:$0xff] %v3957
        %4470 = vst [vmem:[%s134 + $0x768] sm:$0xff] %v3958
        %4471 = vst [vmem:[%s134 + $0x770] sm:$0xff] %v3959
        %4472 = vst [vmem:[%s134 + $0x778] sm:$0xff] %v3960
        %4473 = vst [vmem:[%s134 + $0x780] sm:$0xff] %v3961
        %4474 = vst [vmem:[%s134 + $0x788] sm:$0xff] %v3962
        %4475 = vst [vmem:[%s134 + $0x790] sm:$0xff] %v3963
        %4476 = vst [vmem:[%s134 + $0x798] sm:$0xff] %v3964
        %4477 = vst [vmem:[%s134 + $0x7a0] sm:$0xff] %v3965
        %4478 = vst [vmem:[%s134 + $0x7a8] sm:$0xff] %v3966
        %4479 = vst [vmem:[%s134 + $0x7b0] sm:$0xff] %v3967
        %4480 = vst [vmem:[%s134 + $0x7b8] sm:$0xff] %v3968
        %4481 = vst [vmem:[%s134 + $0x7c0] sm:$0xff] %v3969
        %4482 = vst [vmem:[%s134 + $0x7c8] sm:$0xff] %v3970
        %4483 = vst [vmem:[%s134 + $0x7d0] sm:$0xff] %v3971
        %4484 = vst [vmem:[%s134 + $0x7d8] sm:$0xff] %v3972
        %4485 = vst [vmem:[%s134 + $0x7e0] sm:$0xff] %v3973
        %4486 = vst [vmem:[%s134 + $0x7e8] sm:$0xff] %v3974
        %4487 = vst [vmem:[%s134 + $0x7f0] sm:$0xff] %v3975
        %4488 = vst [vmem:[%s134 + $0x7f8] sm:$0xff] %v3976
        %4489 = vst [vmem:[%s134 + $0x800] sm:$0xff] %v3977
        %4490 = vst [vmem:[%s134 + $0x808] sm:$0xff] %v3978
        %4491 = vst [vmem:[%s134 + $0x810] sm:$0xff] %v3979
        %4492 = vst [vmem:[%s134 + $0x818] sm:$0xff] %v3980
        %4493 = vst [vmem:[%s134 + $0x820] sm:$0xff] %v3981
        %4494 = vst [vmem:[%s134 + $0x828] sm:$0xff] %v3982
        %4495 = vst [vmem:[%s134 + $0x830] sm:$0xff] %v3983
        %4496 = vst [vmem:[%s134 + $0x838] sm:$0xff] %v3984
        %4497 = vst [vmem:[%s134 + $0x840] sm:$0xff] %v3985
        %4498 = vst [vmem:[%s134 + $0x848] sm:$0xff] %v3986
        %4499 = vst [vmem:[%s134 + $0x850] sm:$0xff] %v3987
        %4500 = vst [vmem:[%s134 + $0x858] sm:$0xff] %v3988
        %4501 = vst [vmem:[%s134 + $0x860] sm:$0xff] %v3989
        %4502 = vst [vmem:[%s134 + $0x868] sm:$0xff] %v3990
        %4503 = vst [vmem:[%s134 + $0x870] sm:$0xff] %v3991
        %4504 = vst [vmem:[%s134 + $0x878] sm:$0xff] %v3992
        %4505 = vst [vmem:[%s134 + $0x880] sm:$0xff] %v3993
        %4506 = vst [vmem:[%s134 + $0x888] sm:$0xff] %v3994
        %4507 = vst [vmem:[%s134 + $0x890] sm:$0xff] %v3995
        %4508 = vst [vmem:[%s134 + $0x898] sm:$0xff] %v3996
        %4509 = vst [vmem:[%s134 + $0x8a0] sm:$0xff] %v3997
        %4510 = vst [vmem:[%s134 + $0x8a8] sm:$0xff] %v3998
        %4511 = vst [vmem:[%s134 + $0x8b0] sm:$0xff] %v3999
        %4512 = vst [vmem:[%s134 + $0x8b8] sm:$0xff] %v4000
        %4513 = vst [vmem:[%s134 + $0x8c0] sm:$0xff] %v4001
        %4514 = vst [vmem:[%s134 + $0x8c8] sm:$0xff] %v4002
        %4515 = vst [vmem:[%s134 + $0x8d0] sm:$0xff] %v4003
        %4516 = vst [vmem:[%s134 + $0x8d8] sm:$0xff] %v4004
        %4517 = vst [vmem:[%s134 + $0x8e0] sm:$0xff] %v4005
        %4518 = vst [vmem:[%s134 + $0x8e8] sm:$0xff] %v4006
        %4519 = vst [vmem:[%s134 + $0x8f0] sm:$0xff] %v4007
        %4520 = vst [vmem:[%s134 + $0x8f8] sm:$0xff] %v4008
        %4521 = vst [vmem:[%s134 + $0x900] sm:$0xff] %v4009
        %4522 = vst [vmem:[%s134 + $0x908] sm:$0xff] %v4010
        %4523 = vst [vmem:[%s134 + $0x910] sm:$0xff] %v4011
        %4524 = vst [vmem:[%s134 + $0x918] sm:$0xff] %v4012
        %4525 = vst [vmem:[%s134 + $0x920] sm:$0xff] %v4013
        %4526 = vst [vmem:[%s134 + $0x928] sm:$0xff] %v4014
        %4527 = vst [vmem:[%s134 + $0x930] sm:$0xff] %v4015
        %4528 = vst [vmem:[%s134 + $0x938] sm:$0xff] %v4016
        %4529 = vst [vmem:[%s134 + $0x940] sm:$0xff] %v4017
        %4530 = vst [vmem:[%s134 + $0x948] sm:$0xff] %v4018
        %4531 = vst [vmem:[%s134 + $0x950] sm:$0xff] %v4019
        %4532 = vst [vmem:[%s134 + $0x958] sm:$0xff] %v4020
        %4533 = vst [vmem:[%s134 + $0x960] sm:$0xff] %v4021
        %4534 = vst [vmem:[%s134 + $0x968] sm:$0xff] %v4022
        %4535 = vst [vmem:[%s134 + $0x970] sm:$0xff] %v4023
        %4536 = vst [vmem:[%s134 + $0x978] sm:$0xff] %v4024
        %4537 = vst [vmem:[%s134 + $0x980] sm:$0xff] %v4025
        %4538 = vst [vmem:[%s134 + $0x988] sm:$0xff] %v4026
        %4539 = vst [vmem:[%s134 + $0x990] sm:$0xff] %v4027
        %4540 = vst [vmem:[%s134 + $0x998] sm:$0xff] %v4028
        %4541 = vst [vmem:[%s134 + $0x9a0] sm:$0xff] %v4029
        %4542 = vst [vmem:[%s134 + $0x9a8] sm:$0xff] %v4030
        %4543 = vst [vmem:[%s134 + $0x9b0] sm:$0xff] %v4031
        %4544 = vst [vmem:[%s134 + $0x9b8] sm:$0xff] %v4032
        %4545 = vst [vmem:[%s134 + $0x9c0] sm:$0xff] %v4033
        %4546 = vst [vmem:[%s134 + $0x9c8] sm:$0xff] %v4034
        %4547 = vst [vmem:[%s134 + $0x9d0] sm:$0xff] %v4035
        %4548 = vst [vmem:[%s134 + $0x9d8] sm:$0xff] %v4036
        %4549 = vst [vmem:[%s134 + $0x9e0] sm:$0xff] %v4037
        %4550 = vst [vmem:[%s134 + $0x9e8] sm:$0xff] %v4038
        %4551 = vst [vmem:[%s134 + $0x9f0] sm:$0xff] %v4039
        %4552 = vst [vmem:[%s134 + $0x9f8] sm:$0xff] %v4040
        %4553 = vst [vmem:[%s134 + $0xa00] sm:$0xff] %v4041
        %4554 = vst [vmem:[%s134 + $0xa08] sm:$0xff] %v4042
        %4555 = vst [vmem:[%s134 + $0xa10] sm:$0xff] %v4043
        %4556 = vst [vmem:[%s134 + $0xa18] sm:$0xff] %v4044
        %4557 = vst [vmem:[%s134 + $0xa20] sm:$0xff] %v4045
        %4558 = vst [vmem:[%s134 + $0xa28] sm:$0xff] %v4046
        %4559 = vst [vmem:[%s134 + $0xa30] sm:$0xff] %v4047
        %4560 = vst [vmem:[%s134 + $0xa38] sm:$0xff] %v4048
        %4561 = vst [vmem:[%s134 + $0xa40] sm:$0xff] %v4049
        %4562 = vst [vmem:[%s134 + $0xa48] sm:$0xff] %v4050
        %4563 = vst [vmem:[%s134 + $0xa50] sm:$0xff] %v4051
        %4564 = vst [vmem:[%s134 + $0xa58] sm:$0xff] %v4052
        %4565 = vst [vmem:[%s134 + $0xa60] sm:$0xff] %v4053
        %4566 = vst [vmem:[%s134 + $0xa68] sm:$0xff] %v4054
        %4567 = vst [vmem:[%s134 + $0xa70] sm:$0xff] %v4055
        %4568 = vst [vmem:[%s134 + $0xa78] sm:$0xff] %v4056
        %4569 = vst [vmem:[%s134 + $0xa80] sm:$0xff] %v4057
        %4570 = vst [vmem:[%s134 + $0xa88] sm:$0xff] %v4058
        %4571 = vst [vmem:[%s134 + $0xa90] sm:$0xff] %v4059
        %4572 = vst [vmem:[%s134 + $0xa98] sm:$0xff] %v4060
        %4573 = vst [vmem:[%s134 + $0xaa0] sm:$0xff] %v4061
        %4574 = vst [vmem:[%s134 + $0xaa8] sm:$0xff] %v4062
        %4575 = vst [vmem:[%s134 + $0xab0] sm:$0xff] %v4063
        %4576 = vst [vmem:[%s134 + $0xab8] sm:$0xff] %v4064
        %4577 = vst [vmem:[%s134 + $0xac0] sm:$0xff] %v4065
        %4578 = vst [vmem:[%s134 + $0xac8] sm:$0xff] %v4066
        %4579 = vst [vmem:[%s134 + $0xad0] sm:$0xff] %v4067
        %4580 = vst [vmem:[%s134 + $0xad8] sm:$0xff] %v4068
        %4581 = vst [vmem:[%s134 + $0xae0] sm:$0xff] %v4069
        %4582 = vst [vmem:[%s134 + $0xae8] sm:$0xff] %v4070
        %4583 = vst [vmem:[%s134 + $0xaf0] sm:$0xff] %v4071
        %4584 = vst [vmem:[%s134 + $0xaf8] sm:$0xff] %v4072
        %4585 = vst [vmem:[%s134 + $0xb00] sm:$0xff] %v4073
        %4586 = vst [vmem:[%s134 + $0xb08] sm:$0xff] %v4074
        %4587 = vst [vmem:[%s134 + $0xb10] sm:$0xff] %v4075
        %4588 = vst [vmem:[%s134 + $0xb18] sm:$0xff] %v4076
        %4589 = vst [vmem:[%s134 + $0xb20] sm:$0xff] %v4077
        %4590 = vst [vmem:[%s134 + $0xb28] sm:$0xff] %v4078
        %4591 = vst [vmem:[%s134 + $0xb30] sm:$0xff] %v4079
        %4592 = vst [vmem:[%s134 + $0xb38] sm:$0xff] %v4080
        %4593 = vst [vmem:[%s134 + $0xb40] sm:$0xff] %v4081
        %4594 = vst [vmem:[%s134 + $0xb48] sm:$0xff] %v4082
        %4595 = vst [vmem:[%s134 + $0xb50] sm:$0xff] %v4083
        %4596 = vst [vmem:[%s134 + $0xb58] sm:$0xff] %v4084
        %4597 = vst [vmem:[%s134 + $0xb60] sm:$0xff] %v4085
        %4598 = vst [vmem:[%s134 + $0xb68] sm:$0xff] %v4086
        %4599 = vst [vmem:[%s134 + $0xb70] sm:$0xff] %v4087
        %4600 = vst [vmem:[%s134 + $0xb78] sm:$0xff] %v4088
        %4601 = vst [vmem:[%s134 + $0xb80] sm:$0xff] %v4089
        %4602 = vst [vmem:[%s134 + $0xb88] sm:$0xff] %v4090
        %4603 = vst [vmem:[%s134 + $0xb90] sm:$0xff] %v4091
        %4604 = vst [vmem:[%s134 + $0xb98] sm:$0xff] %v4092
        %4605 = vst [vmem:[%s134 + $0xba0] sm:$0xff] %v4093
        %4606 = vst [vmem:[%s134 + $0xba8] sm:$0xff] %v4094
        %4607 = vst [vmem:[%s134 + $0xbb0] sm:$0xff] %v4095
        %4608 = vst [vmem:[%s134 + $0xbb8] sm:$0xff] %v4096
        %4609 = vst [vmem:[%s134 + $0xbc0] sm:$0xff] %v4097
        %4610 = vst [vmem:[%s134 + $0xbc8] sm:$0xff] %v4098
        %4611 = vst [vmem:[%s134 + $0xbd0] sm:$0xff] %v4099
        %4612 = vst [vmem:[%s134 + $0xbd8] sm:$0xff] %v4100
        %4613 = vst [vmem:[%s134 + $0xbe0] sm:$0xff] %v4101
        %4614 = vst [vmem:[%s134 + $0xbe8] sm:$0xff] %v4102
        %4615 = vst [vmem:[%s134 + $0xbf0] sm:$0xff] %v4103
        %4616 = vst [vmem:[%s134 + $0xbf8] sm:$0xff] %v4104
        %4617 = vst [vmem:[%s134 + $0xc00] sm:$0xff] %v4105
        %4618 = vst [vmem:[%s134 + $0xc08] sm:$0xff] %v4106
        %4619 = vst [vmem:[%s134 + $0xc10] sm:$0xff] %v4107
        %4620 = vst [vmem:[%s134 + $0xc18] sm:$0xff] %v4108
        %4621 = vst [vmem:[%s134 + $0xc20] sm:$0xff] %v4109
        %4622 = vst [vmem:[%s134 + $0xc28] sm:$0xff] %v4110
        %4623 = vst [vmem:[%s134 + $0xc30] sm:$0xff] %v4111
        %4624 = vst [vmem:[%s134 + $0xc38] sm:$0xff] %v4112
        %4625 = vst [vmem:[%s134 + $0xc40] sm:$0xff] %v4113
        %4626 = vst [vmem:[%s134 + $0xc48] sm:$0xff] %v4114
        %4627 = vst [vmem:[%s134 + $0xc50] sm:$0xff] %v4115
        %4628 = vst [vmem:[%s134 + $0xc58] sm:$0xff] %v4116
        %4629 = vst [vmem:[%s134 + $0xc60] sm:$0xff] %v4117
        %4630 = vst [vmem:[%s134 + $0xc68] sm:$0xff] %v4118
        %4631 = vst [vmem:[%s134 + $0xc70] sm:$0xff] %v4119
        %4632 = vst [vmem:[%s134 + $0xc78] sm:$0xff] %v4120
        %4633 = vst [vmem:[%s134 + $0xc80] sm:$0xff] %v4121
        %4634 = vst [vmem:[%s134 + $0xc88] sm:$0xff] %v4122
        %4635 = vst [vmem:[%s134 + $0xc90] sm:$0xff] %v4123
        %4636 = vst [vmem:[%s134 + $0xc98] sm:$0xff] %v4124
        %4637 = vst [vmem:[%s134 + $0xca0] sm:$0xff] %v4125
        %4638 = vst [vmem:[%s134 + $0xca8] sm:$0xff] %v4126
        %4639 = vst [vmem:[%s134 + $0xcb0] sm:$0xff] %v4127
        %4640 = vst [vmem:[%s134 + $0xcb8] sm:$0xff] %v4128
        %4641 = vst [vmem:[%s134 + $0xcc0] sm:$0xff] %v4129
        %4642 = vst [vmem:[%s134 + $0xcc8] sm:$0xff] %v4130
        %4643 = vst [vmem:[%s134 + $0xcd0] sm:$0xff] %v4131
        %4644 = vst [vmem:[%s134 + $0xcd8] sm:$0xff] %v4132
        %4645 = vst [vmem:[%s134 + $0xce0] sm:$0xff] %v4133
        %4646 = vst [vmem:[%s134 + $0xce8] sm:$0xff] %v4134
        %4647 = vst [vmem:[%s134 + $0xcf0] sm:$0xff] %v4135
        %4648 = vst [vmem:[%s134 + $0xcf8] sm:$0xff] %v4136
        %4649 = vst [vmem:[%s134 + $0xd00] sm:$0xff] %v4137
        %4650 = vst [vmem:[%s134 + $0xd08] sm:$0xff] %v4138
        %4651 = vst [vmem:[%s134 + $0xd10] sm:$0xff] %v4139
        %4652 = vst [vmem:[%s134 + $0xd18] sm:$0xff] %v4140
        %4653 = vst [vmem:[%s134 + $0xd20] sm:$0xff] %v4141
        %4654 = vst [vmem:[%s134 + $0xd28] sm:$0xff] %v4142
        %4655 = vst [vmem:[%s134 + $0xd30] sm:$0xff] %v4143
        %4656 = vst [vmem:[%s134 + $0xd38] sm:$0xff] %v4144
        %4657 = vst [vmem:[%s134 + $0xd40] sm:$0xff] %v4145
        %4658 = vst [vmem:[%s134 + $0xd48] sm:$0xff] %v4146
        %4659 = vst [vmem:[%s134 + $0xd50] sm:$0xff] %v4147
        %4660 = vst [vmem:[%s134 + $0xd58] sm:$0xff] %v4148
        %4661 = vst [vmem:[%s134 + $0xd60] sm:$0xff] %v4149
        %4662 = vst [vmem:[%s134 + $0xd68] sm:$0xff] %v4150
        %4663 = vst [vmem:[%s134 + $0xd70] sm:$0xff] %v4151
        %4664 = vst [vmem:[%s134 + $0xd78] sm:$0xff] %v4152
        %4665 = vst [vmem:[%s134 + $0xd80] sm:$0xff] %v4153
        %4666 = vst [vmem:[%s134 + $0xd88] sm:$0xff] %v4154
        %4667 = vst [vmem:[%s134 + $0xd90] sm:$0xff] %v4155
        %4668 = vst [vmem:[%s134 + $0xd98] sm:$0xff] %v4156
        %4669 = vst [vmem:[%s134 + $0xda0] sm:$0xff] %v4157
        %4670 = vst [vmem:[%s134 + $0xda8] sm:$0xff] %v4158
        %4671 = vst [vmem:[%s134 + $0xdb0] sm:$0xff] %v4159
        %4672 = vst [vmem:[%s134 + $0xdb8] sm:$0xff] %v4160
        %4673 = vst [vmem:[%s134 + $0xdc0] sm:$0xff] %v4161
        %4674 = vst [vmem:[%s134 + $0xdc8] sm:$0xff] %v4162
        %4675 = vst [vmem:[%s134 + $0xdd0] sm:$0xff] %v4163
        %4676 = vst [vmem:[%s134 + $0xdd8] sm:$0xff] %v4164
        %4677 = vst [vmem:[%s134 + $0xde0] sm:$0xff] %v4165
        %4678 = vst [vmem:[%s134 + $0xde8] sm:$0xff] %v4166
        %4679 = vst [vmem:[%s134 + $0xdf0] sm:$0xff] %v4167
        %4680 = vst [vmem:[%s134 + $0xdf8] sm:$0xff] %v4168
        %4681 = vst [vmem:[%s134 + $0xe00] sm:$0xff] %v4169
        %4682 = vst [vmem:[%s134 + $0xe08] sm:$0xff] %v4170
        %4683 = vst [vmem:[%s134 + $0xe10] sm:$0xff] %v4171
        %4684 = vst [vmem:[%s134 + $0xe18] sm:$0xff] %v4172
        %4685 = vst [vmem:[%s134 + $0xe20] sm:$0xff] %v4173
        %4686 = vst [vmem:[%s134 + $0xe28] sm:$0xff] %v4174
        %4687 = vst [vmem:[%s134 + $0xe30] sm:$0xff] %v4175
        %4688 = vst [vmem:[%s134 + $0xe38] sm:$0xff] %v4176
        %4689 = vst [vmem:[%s134 + $0xe40] sm:$0xff] %v4177
        %4690 = vst [vmem:[%s134 + $0xe48] sm:$0xff] %v4178
        %4691 = vst [vmem:[%s134 + $0xe50] sm:$0xff] %v4179
        %4692 = vst [vmem:[%s134 + $0xe58] sm:$0xff] %v4180
        %4693 = vst [vmem:[%s134 + $0xe60] sm:$0xff] %v4181
        %4694 = vst [vmem:[%s134 + $0xe68] sm:$0xff] %v4182
        %4695 = vst [vmem:[%s134 + $0xe70] sm:$0xff] %v4183
        %4696 = vst [vmem:[%s134 + $0xe78] sm:$0xff] %v4184
        %4697 = vst [vmem:[%s134 + $0xe80] sm:$0xff] %v4185
        %4698 = vst [vmem:[%s134 + $0xe88] sm:$0xff] %v4186
        %4699 = vst [vmem:[%s134 + $0xe90] sm:$0xff] %v4187
        %4700 = vst [vmem:[%s134 + $0xe98] sm:$0xff] %v4188
        %4701 = vst [vmem:[%s134 + $0xea0] sm:$0xff] %v4189
        %4702 = vst [vmem:[%s134 + $0xea8] sm:$0xff] %v4190
        %4703 = vst [vmem:[%s134 + $0xeb0] sm:$0xff] %v4191
        %4704 = vst [vmem:[%s134 + $0xeb8] sm:$0xff] %v4192
        %4705 = vst [vmem:[%s134 + $0xec0] sm:$0xff] %v4193
        %4706 = vst [vmem:[%s134 + $0xec8] sm:$0xff] %v4194
        %4707 = vst [vmem:[%s134 + $0xed0] sm:$0xff] %v4195
        %4708 = vst [vmem:[%s134 + $0xed8] sm:$0xff] %v4196
        %4709 = vst [vmem:[%s134 + $0xee0] sm:$0xff] %v4197
        %4710 = vst [vmem:[%s134 + $0xee8] sm:$0xff] %v4198
        %4711 = vst [vmem:[%s134 + $0xef0] sm:$0xff] %v4199
        %4712 = vst [vmem:[%s134 + $0xef8] sm:$0xff] %v4200
        %4713 = vst [vmem:[%s134 + $0xf00] sm:$0xff] %v4201
        %4714 = vst [vmem:[%s134 + $0xf08] sm:$0xff] %v4202
        %4715 = vst [vmem:[%s134 + $0xf10] sm:$0xff] %v4203
        %4716 = vst [vmem:[%s134 + $0xf18] sm:$0xff] %v4204
        %4717 = vst [vmem:[%s134 + $0xf20] sm:$0xff] %v4205
        %4718 = vst [vmem:[%s134 + $0xf28] sm:$0xff] %v4206
        %4719 = vst [vmem:[%s134 + $0xf30] sm:$0xff] %v4207
        %4720 = vst [vmem:[%s134 + $0xf38] sm:$0xff] %v4208
        %4721 = vst [vmem:[%s134 + $0xf40] sm:$0xff] %v4209
        %4722 = vst [vmem:[%s134 + $0xf48] sm:$0xff] %v4210
        %4723 = vst [vmem:[%s134 + $0xf50] sm:$0xff] %v4211
        %4724 = vst [vmem:[%s134 + $0xf58] sm:$0xff] %v4212
        %4725 = vst [vmem:[%s134 + $0xf60] sm:$0xff] %v4213
        %4726 = vst [vmem:[%s134 + $0xf68] sm:$0xff] %v4214
        %4727 = vst [vmem:[%s134 + $0xf70] sm:$0xff] %v4215
        %4728 = vst [vmem:[%s134 + $0xf78] sm:$0xff] %v4216
        %4729 = vst [vmem:[%s134 + $0xf80] sm:$0xff] %v4217
        %4730 = vst [vmem:[%s134 + $0xf88] sm:$0xff] %v4218
        %4731 = vst [vmem:[%s134 + $0xf90] sm:$0xff] %v4219
        %4732 = vst [vmem:[%s134 + $0xf98] sm:$0xff] %v4220
        %4733 = vst [vmem:[%s134 + $0xfa0] sm:$0xff] %v4221
        %4734 = vst [vmem:[%s134 + $0xfa8] sm:$0xff] %v4222
        %4735 = vst [vmem:[%s134 + $0xfb0] sm:$0xff] %v4223
        %4736 = vst [vmem:[%s134 + $0xfb8] sm:$0xff] %v4224
        %4737 = vst [vmem:[%s134 + $0xfc0] sm:$0xff] %v4225
        %4738 = vst [vmem:[%s134 + $0xfc8] sm:$0xff] %v4226
        %4739 = vst [vmem:[%s134 + $0xfd0] sm:$0xff] %v4227
        %4740 = vst [vmem:[%s134 + $0xfd8] sm:$0xff] %v4228
        %4741 = vst [vmem:[%s134 + $0xfe0] sm:$0xff] %v4229
        %4742 = vst [vmem:[%s134 + $0xfe8] sm:$0xff] %v4230
        %4743 = vst [vmem:[%s134 + $0xff0] sm:$0xff] %v4231
        %4744 = vst [vmem:[%s134 + $0xff8] sm:$0xff] %v4232
        %s4745 = sand.u32 %s52, 1
        %s4746 = scalar_lea.sflag [#allocation4], %s4745
        %s4747 = sand.u32 %s52, 1
        %s4748 = smul.addr %s4747, 4096
        %s4749 = scalar_lea.vmem [#allocation5], %s4748
        // Predicated region
        $region29: #{tpu_custom_call.1} parent=23 // pred_check
          %p4750 = pneg %p62
        $region30: #{tpu_custom_call.1} parent=23 // pred_check_branch
          %4752 = sbr.rel (%p4750) target = $region32
        $region31: #{tpu_custom_call.1} parent=23 // pred_region
          %s4753 = smul.u32 512, %s18
          %s4755 = ssub.s32 65536, 65536
          %4756 = vsyncadd %s4746, %s4755
          %s4757 = smul.addr %s4753, 128
          %s4758 = scalar_lea.hbm %s1, %s4757
          %s4759 = sshll.u32 %s4749, 4
          %s4760 = int_to_ptr.vmem [resolvable:$true] %s4759
          %4765 = dma.vmem_to_hbm [thread:$0]  %s4760, 65536, %s4758, %s4746, 128, 128, 8
        $region32: #{tpu_custom_call.1} parent=23 // pred_fallthru
          _
      $region24: #{tpu_custom_call.1} parent=5 // pred_fallthru
        _
      %p4766 = scmp.le.s32.totalorder 2, %s13
      // Predicated region
      $region33: #{tpu_custom_call.1} parent=5 // pred_check
        %p4767 = pneg %p4766
      $region34: #{tpu_custom_call.1} parent=5 // pred_check_branch
        %4769 = sbr.rel (%p4767) target = $region36
      $region35: #{tpu_custom_call.1} parent=5 // pred_region
        %s4770 = ssub.s32 %s13, 2
        // Predicated region
        $region37: #{tpu_custom_call.1} parent=35 // pred_check
          %p4771 = pneg %p68
        $region38: #{tpu_custom_call.1} parent=35 // pred_check_branch
          %4773 = sbr.rel (%p4771) target = $region40
        $region39: #{tpu_custom_call.1} parent=35 // pred_region
          %s4774 = sand.u32 %s53, 1
          %s4775 = scalar_lea.sflag [#allocation4], %s4774
          %s4776 = sand.u32 %s53, 1
          %s4777 = smul.addr %s4776, 4096
          %s4778 = scalar_lea.vmem [#allocation5], %s4777
          %4779 = dma.done %s4775, 65536
        $region40: #{tpu_custom_call.1} parent=35 // pred_fallthru
          _
      $region36: #{tpu_custom_call.1} parent=5 // pred_fallthru
        _
    $region6: #{tpu_custom_call.1} parent=1 // loop_footer
      %s17 = sadd.s32 1, %s13
    $region7: #{tpu_custom_call.1} parent=1 // loop_footer_branch
      %12 = sbr.rel target = $region3
    $region8: #{tpu_custom_call.1} parent=1 // loop_exit
      _
    %4780 = vsyncpa [#allocation3], 1
    %s4781 = scalar_lea.sflag [#allocation3], 1
    %4782 = vsyncpa %s4781, 1
    %4783 = vsyncpa [#allocation4], 1
    %s4784 = scalar_lea.sflag [#allocation4], 1
    %4785 = vsyncpa %s4784, 1

</llo_original>
